<compile_context>
chip_gen: v6e
topology: v6e:2x2x1
jax: 0.10.0
libtpu: 0.0.40
codegen_flags: <defaults>
</compile_context>

<pallas_src>
import math

import jax
import jax.numpy as jnp
from jax.experimental import pallas as pl
from jax.experimental.pallas import tpu as pltpu

# (cin, cout) of the six 3x3 / stride-1 / pad-1 layers
# (encoder Conv2d x3, decoder ConvTranspose2d x3), each followed by Sigmoid.
LAYERS = ((1, 8), (8, 16), (16, 32), (32, 4), (4, 4), (4, 1))
N_LAYERS = len(LAYERS)
C_MAX = 32                      # widest channel count inside CAE_M
BLOCK_BATCH = 8                 # images processed per grid step


def _round_up(x, m):
    return ((x + m - 1) // m) * m


def _stable_sigmoid(x):
    # exp() runs on the EUP; the |x| trick keeps it overflow-free.
    e = jnp.exp(-jnp.abs(x))
    pos = 1.0 / (1.0 + e)
    return jnp.where(x >= 0, pos, 1.0 - pos)


def _make_kernel(offs, n_lanes):
    """offs: the 9 flattened tap offsets (kh-1)*Wp + (kw-1) (static ints)."""

    def kernel(x_ref, mask_ref, bias_ref, *rest):
        w_refs = rest[:N_LAYERS]
        o_ref = rest[N_LAYERS]

        mask = mask_ref[...]                    # (1, N) f32: 1 = interior pixel
        act = x_ref[0]                          # (1, N) f32: layer-1 input (cin = 1)

        for l, (cin, cout) in enumerate(LAYERS):
            k_real = 9 * cin
            cout_p, k_pad = w_refs[l].shape     # host-padded to multiples of 8

            # im2col^T: row (t*cin + ci) holds channel ci shifted by tap offset t.
            # (lane roll; wrap-around only hits padding-ring pixels -> masked)
            pieces = [act if off == 0 else jnp.roll(act, -off, axis=1)
                      for off in offs]
            if k_pad > k_real:
                pieces.append(jnp.zeros((k_pad - k_real, n_lanes), jnp.float32))
            a_t = jnp.concatenate(pieces, axis=0).astype(jnp.bfloat16)

            # one fused MXU matmul per layer: (cout_p, K) x (K, N) -> (cout_p, N)
            z = jnp.dot(w_refs[l][...], a_t,
                        preferred_element_type=jnp.float32)
            z = z + bias_ref[0:cout_p, l:l + 1]          # bias column broadcast
            y = _stable_sigmoid(z[0:cout, :])            # drop channel-pad rows

            if l + 1 < N_LAYERS:
                # zero the padding ring so the next layer's taps see a correct halo
                act = y * mask
            else:
                o_ref[0] = y                             # (1, N) lane-dense store

    return kernel


def cae_m_forward(g, params, n_feats, n_window):
    """Fused CAE_M forward.  g: (B, n_window, n_feats) float32."""
    B = g.shape[0]
    H, W = n_feats, n_window                # torch: g.view(-1, 1, feats, window)
    Hp, Wp = H + 2, W + 2                   # zero-padded ("same" 3x3 conv) image
    M = Hp * Wp                             # flattened padded image size

    TB = max(1, min(BLOCK_BATCH, B))        # images per grid step
    B_pad = _round_up(B, TB)
    NB = B_pad // TB                        # grid length
    N = TB * M                              # lane extent of every block

    # ---- host-side glue (tiny, one-off) ------------------------------------
    x = g.reshape(B, H, W).astype(jnp.float32)          # flat reinterpretation
    xp = jnp.pad(x, ((0, B_pad - B), (1, 1), (1, 1)))   # (B_pad, Hp, Wp)
    xb = xp.reshape(NB, 1, N)                            # lane-dense blocks

    # interior mask (1 on real pixels, 0 on the padding ring), lane-major
    rows = jnp.arange(Hp)[:, None]
    cols = jnp.arange(Wp)[None, :]
    m_img = (rows >= 1) & (rows <= H) & (cols >= 1) & (cols <= W)
    mask = jnp.tile(m_img.astype(jnp.float32).reshape(-1), TB).reshape(1, N)

    # biases packed into one resident column table: column l = bias of layer l
    bias_pack = jnp.zeros((C_MAX, 8), jnp.float32)
    for l, (_, b) in enumerate(params):
        bias_pack = bias_pack.at[: b.shape[0], l].set(b)

    # flattened 3x3 tap offsets
    offs = tuple((kh - 1) * Wp + (kw - 1) for kh in range(3) for kw in range(3))

    # ---- fused pallas_call ---------------------------------------------------
    flat_inputs = [xb, mask, bias_pack]
    in_specs = [
        pl.BlockSpec((1, 1, N), lambda i: (i, 0, 0)),         # batch block of images
        pl.BlockSpec((1, N), lambda i: (0, 0)),               # resident mask
        pl.BlockSpec(bias_pack.shape, lambda i: (0, 0)),      # resident biases
    ]
    for w, _ in params:
        flat_inputs.append(w)
        in_specs.append(pl.BlockSpec(w.shape, lambda i: (0, 0)))  # resident weights

    out = pl.pallas_call(
        _make_kernel(offs, N),
        out_shape=jax.ShapeDtypeStruct((NB, 1, N), jnp.float32),
        grid=(NB,),
        in_specs=in_specs,
        out_specs=pl.BlockSpec((1, 1, N), lambda i: (i, 0, 0)),
        compiler_params=pltpu.CompilerParams(
            dimension_semantics=("parallel",)),   # v7x: blocks split across 2 TCs
    )(*flat_inputs)

    # crop the padding ring; torch: x.view(-1, n_window, n_feats) (flat reinterpret)
    out = out.reshape(B_pad, Hp, Wp)[:B, 1:1 + H, 1:1 + W]
    return out.reshape(B, n_window, n_feats)


# ----------------------------------------------------------------------------
# Deterministic parameters matching the torch layer shapes, pre-converted to
# "same-padded cross-correlation" form:
#   w: (round_up(cout, 8), round_up(9*cin, 8)) bf16, column index = (kh*3+kw)*cin+ci
#   b: (cout,) f32
# ----------------------------------------------------------------------------
def init_params(key):
    params = []

    def _pack(w_oihw, bias, cin, cout):
        wm = jnp.transpose(w_oihw, (0, 2, 3, 1)).reshape(cout, 9 * cin)
        wm = jnp.pad(wm, ((0, _round_up(cout, 8) - cout),
                          (0, _round_up(9 * cin, 8) - 9 * cin)))
        return wm.astype(jnp.bfloat16), bias

    # encoder: Conv2d, torch weight layout (cout, cin, 3, 3)
    for cin, cout in LAYERS[:3]:
        key, kw_, kb_ = jax.random.split(key, 3)
        bound = 1.0 / math.sqrt(cin * 9)
        w = jax.random.uniform(kw_, (cout, cin, 3, 3), jnp.float32, -bound, bound)
        b = jax.random.uniform(kb_, (cout,), jnp.float32, -bound, bound)
        params.append(_pack(w, b, cin, cout))

    # decoder: ConvTranspose2d, torch weight layout (cin, cout, 3, 3)
    # ConvTranspose2d(k=3, s=1, p=1) == same-padded cross-correlation with the
    # spatially flipped kernel and swapped channel axes.
    for cin, cout in LAYERS[3:]:
        key, kw_, kb_ = jax.random.split(key, 3)
        bound = 1.0 / math.sqrt(cout * 9)
        wt = jax.random.uniform(kw_, (cin, cout, 3, 3), jnp.float32, -bound, bound)
        b = jax.random.uniform(kb_, (cout,), jnp.float32, -bound, bound)
        w_eff = jnp.transpose(wt[:, :, ::-1, ::-1], (1, 0, 2, 3))  # (cout, cin, 3, 3)
        params.append(_pack(w_eff, b, cin, cout))

    return params


if __name__ == "__main__":
    n_window = 16
    n_feats = 4
    batch = 16          # -> 2 grid steps of 8 images each

    key = jax.random.PRNGKey(0)
    key, pkey, xkey = jax.random.split(key, 3)
    params = init_params(pkey)

    # input as fed to forward(): (batch, window, feats), float32
    g = jax.random.normal(xkey, (batch, n_window, n_feats), dtype=jnp.float32)

    fwd = jax.jit(cae_m_forward, static_argnums=(2, 3))
    out = jax.block_until_ready(fwd(g, params, n_feats, n_window))

    assert out.shape == (batch, n_window, n_feats), out.shape
    assert bool(jnp.all(jnp.isfinite(out)))
    # sigmoid output lies strictly in (0, 1) for these moderate pre-activations
    assert bool(jnp.all((out > 0.0) & (out < 1.0)))

    print("KERNEL_OK")
</pallas_src>

<mosaic_0001>
module attributes {stable_mosaic.version = 11 : i64} {
  func.func @kernel(%arg0: i32, %arg1: memref<1x1x864xf32, #tpu.memory_space<vmem>>, %arg2: memref<1x864xf32, #tpu.memory_space<vmem>>, %arg3: memref<32x8xf32, #tpu.memory_space<vmem>>, %arg4: memref<8x16xbf16, #tpu.memory_space<vmem>>, %arg5: memref<16x72xbf16, #tpu.memory_space<vmem>>, %arg6: memref<32x144xbf16, #tpu.memory_space<vmem>>, %arg7: memref<8x288xbf16, #tpu.memory_space<vmem>>, %arg8: memref<8x40xbf16, #tpu.memory_space<vmem>>, %arg9: memref<8x40xbf16, #tpu.memory_space<vmem>>, %arg10: memref<1x1x864xf32, #tpu.memory_space<vmem>>) attributes {dimension_semantics = [#tpu.dimension_semantics<parallel>], iteration_bounds = array<i64: 2>, scalar_prefetch = 0 : i64, scratch_operands = 0 : i64, tpu.core_type = #tpu.core_type<tc>, window_params = [{transform_indices = @transform_0, window_bounds = array<i64: 1, 1, 864>}, {pipeline_mode = #tpu.pipeline_mode<synchronous>, transform_indices = @transform_1, window_bounds = array<i64: 1, 864>}, {pipeline_mode = #tpu.pipeline_mode<synchronous>, transform_indices = @transform_2, window_bounds = array<i64: 32, 8>}, {pipeline_mode = #tpu.pipeline_mode<synchronous>, transform_indices = @transform_3, window_bounds = array<i64: 8, 16>}, {pipeline_mode = #tpu.pipeline_mode<synchronous>, transform_indices = @transform_4, window_bounds = array<i64: 16, 72>}, {pipeline_mode = #tpu.pipeline_mode<synchronous>, transform_indices = @transform_5, window_bounds = array<i64: 32, 144>}, {pipeline_mode = #tpu.pipeline_mode<synchronous>, transform_indices = @transform_6, window_bounds = array<i64: 8, 288>}, {pipeline_mode = #tpu.pipeline_mode<synchronous>, transform_indices = @transform_7, window_bounds = array<i64: 8, 40>}, {pipeline_mode = #tpu.pipeline_mode<synchronous>, transform_indices = @transform_8, window_bounds = array<i64: 8, 40>}, {transform_indices = @transform_9, window_bounds = array<i64: 1, 1, 864>}]} {
    %c0 = arith.constant 0 : index
    %c0_0 = arith.constant 0 : index
    %0 = vector.load %arg2[%c0, %c0_0] : memref<1x864xf32, #tpu.memory_space<vmem>>, vector<1x864xf32>
    %c0_1 = arith.constant 0 : index
    %c0_2 = arith.constant 0 : index
    %c0_3 = arith.constant 0 : index
    %1 = vector.load %arg1[%c0_1, %c0_2, %c0_3] : memref<1x1x864xf32, #tpu.memory_space<vmem>>, vector<1x1x864xf32>
    %2 = vector.shape_cast %1 : vector<1x1x864xf32> to vector<1x864xf32>
    %3 = vector.extract_strided_slice %2 {offsets = [0, 845], sizes = [1, 19], strides = [1, 1]} : vector<1x864xf32> to vector<1x19xf32>
    %4 = vector.extract_strided_slice %2 {offsets = [0, 0], sizes = [1, 845], strides = [1, 1]} : vector<1x864xf32> to vector<1x845xf32>
    %5 = tpu.concatenate %3, %4 in 1 : vector<1x19xf32>, vector<1x845xf32> -> vector<1x864xf32>
    %6 = vector.extract_strided_slice %2 {offsets = [0, 846], sizes = [1, 18], strides = [1, 1]} : vector<1x864xf32> to vector<1x18xf32>
    %7 = vector.extract_strided_slice %2 {offsets = [0, 0], sizes = [1, 846], strides = [1, 1]} : vector<1x864xf32> to vector<1x846xf32>
    %8 = tpu.concatenate %6, %7 in 1 : vector<1x18xf32>, vector<1x846xf32> -> vector<1x864xf32>
    %9 = vector.extract_strided_slice %2 {offsets = [0, 847], sizes = [1, 17], strides = [1, 1]} : vector<1x864xf32> to vector<1x17xf32>
    %10 = vector.extract_strided_slice %2 {offsets = [0, 0], sizes = [1, 847], strides = [1, 1]} : vector<1x864xf32> to vector<1x847xf32>
    %11 = tpu.concatenate %9, %10 in 1 : vector<1x17xf32>, vector<1x847xf32> -> vector<1x864xf32>
    %12 = vector.extract_strided_slice %2 {offsets = [0, 863], sizes = [1, 1], strides = [1, 1]} : vector<1x864xf32> to vector<1x1xf32>
    %13 = vector.extract_strided_slice %2 {offsets = [0, 0], sizes = [1, 863], strides = [1, 1]} : vector<1x864xf32> to vector<1x863xf32>
    %14 = tpu.concatenate %12, %13 in 1 : vector<1x1xf32>, vector<1x863xf32> -> vector<1x864xf32>
    %15 = vector.extract_strided_slice %2 {offsets = [0, 1], sizes = [1, 863], strides = [1, 1]} : vector<1x864xf32> to vector<1x863xf32>
    %16 = vector.extract_strided_slice %2 {offsets = [0, 0], sizes = [1, 1], strides = [1, 1]} : vector<1x864xf32> to vector<1x1xf32>
    %17 = tpu.concatenate %15, %16 in 1 : vector<1x863xf32>, vector<1x1xf32> -> vector<1x864xf32>
    %18 = vector.extract_strided_slice %2 {offsets = [0, 17], sizes = [1, 847], strides = [1, 1]} : vector<1x864xf32> to vector<1x847xf32>
    %19 = vector.extract_strided_slice %2 {offsets = [0, 0], sizes = [1, 17], strides = [1, 1]} : vector<1x864xf32> to vector<1x17xf32>
    %20 = tpu.concatenate %18, %19 in 1 : vector<1x847xf32>, vector<1x17xf32> -> vector<1x864xf32>
    %21 = vector.extract_strided_slice %2 {offsets = [0, 18], sizes = [1, 846], strides = [1, 1]} : vector<1x864xf32> to vector<1x846xf32>
    %22 = vector.extract_strided_slice %2 {offsets = [0, 0], sizes = [1, 18], strides = [1, 1]} : vector<1x864xf32> to vector<1x18xf32>
    %23 = tpu.concatenate %21, %22 in 1 : vector<1x846xf32>, vector<1x18xf32> -> vector<1x864xf32>
    %24 = vector.extract_strided_slice %2 {offsets = [0, 19], sizes = [1, 845], strides = [1, 1]} : vector<1x864xf32> to vector<1x845xf32>
    %25 = vector.extract_strided_slice %2 {offsets = [0, 0], sizes = [1, 19], strides = [1, 1]} : vector<1x864xf32> to vector<1x19xf32>
    %26 = tpu.concatenate %24, %25 in 1 : vector<1x845xf32>, vector<1x19xf32> -> vector<1x864xf32>
    %cst = arith.constant 0.000000e+00 : f32
    %27 = vector.broadcast %cst : f32 to vector<7x864xf32>
    %28 = tpu.concatenate %5, %8, %11, %14, %2, %17, %20, %23, %26, %27 in 0 : vector<1x864xf32>, vector<1x864xf32>, vector<1x864xf32>, vector<1x864xf32>, vector<1x864xf32>, vector<1x864xf32>, vector<1x864xf32>, vector<1x864xf32>, vector<1x864xf32>, vector<7x864xf32> -> vector<16x864xf32>
    %29 = arith.truncf %28 : vector<16x864xf32> to vector<16x864xbf16>
    %c0_4 = arith.constant 0 : index
    %c0_5 = arith.constant 0 : index
    %30 = vector.load %arg4[%c0_4, %c0_5] : memref<8x16xbf16, #tpu.memory_space<vmem>>, vector<8x16xbf16>
    %cst_6 = arith.constant dense<0.000000e+00> : vector<8x864xf32>
    %31 = tpu.matmul %30, %29, %cst_6 {dimension_numbers = #tpu.dot_dimension_numbers<[1], [0], [0], [1], [0, 0, 1, 1], [], []>} : vector<8x16xbf16>, vector<16x864xbf16>, vector<8x864xf32> -> vector<8x864xf32>
    %c0_7 = arith.constant 0 : index
    %c0_8 = arith.constant 0 : index
    %32 = vector.load %arg3[%c0_7, %c0_8] : memref<32x8xf32, #tpu.memory_space<vmem>>, vector<8x1xf32>
    %33 = vector.broadcast %32 : vector<8x1xf32> to vector<8x864xf32>
    %34 = arith.addf %31, %33 : vector<8x864xf32>
    %35 = math.absf %34 : vector<8x864xf32>
    %cst_9 = arith.constant 0.000000e+00 : f32
    %36 = vector.broadcast %cst_9 : f32 to vector<8x864xf32>
    %37 = arith.subf %36, %35 : vector<8x864xf32>
    %38 = math.exp %37 : vector<8x864xf32>
    %cst_10 = arith.constant 1.000000e+00 : f32
    %39 = vector.broadcast %cst_10 : f32 to vector<8x864xf32>
    %40 = arith.addf %39, %38 : vector<8x864xf32>
    %cst_11 = arith.constant 1.000000e+00 : f32
    %41 = vector.broadcast %cst_11 : f32 to vector<8x864xf32>
    %42 = arith.divf %41, %40 : vector<8x864xf32>
    %cst_12 = arith.constant 0.000000e+00 : f32
    %43 = vector.broadcast %cst_12 : f32 to vector<8x864xf32>
    %44 = arith.cmpf oge, %34, %43 : vector<8x864xf32>
    %cst_13 = arith.constant 1.000000e+00 : f32
    %45 = vector.broadcast %cst_13 : f32 to vector<8x864xf32>
    %46 = arith.subf %45, %42 : vector<8x864xf32>
    %47 = arith.select %44, %42, %46 : vector<8x864xi1>, vector<8x864xf32>
    %48 = vector.broadcast %0 : vector<1x864xf32> to vector<8x864xf32>
    %49 = arith.mulf %47, %48 : vector<8x864xf32>
    %50 = vector.extract_strided_slice %49 {offsets = [0, 845], sizes = [8, 19], strides = [1, 1]} : vector<8x864xf32> to vector<8x19xf32>
    %51 = vector.extract_strided_slice %49 {offsets = [0, 0], sizes = [8, 845], strides = [1, 1]} : vector<8x864xf32> to vector<8x845xf32>
    %52 = tpu.concatenate %50, %51 in 1 : vector<8x19xf32>, vector<8x845xf32> -> vector<8x864xf32>
    %53 = vector.extract_strided_slice %49 {offsets = [0, 846], sizes = [8, 18], strides = [1, 1]} : vector<8x864xf32> to vector<8x18xf32>
    %54 = vector.extract_strided_slice %49 {offsets = [0, 0], sizes = [8, 846], strides = [1, 1]} : vector<8x864xf32> to vector<8x846xf32>
    %55 = tpu.concatenate %53, %54 in 1 : vector<8x18xf32>, vector<8x846xf32> -> vector<8x864xf32>
    %56 = vector.extract_strided_slice %49 {offsets = [0, 847], sizes = [8, 17], strides = [1, 1]} : vector<8x864xf32> to vector<8x17xf32>
    %57 = vector.extract_strided_slice %49 {offsets = [0, 0], sizes = [8, 847], strides = [1, 1]} : vector<8x864xf32> to vector<8x847xf32>
    %58 = tpu.concatenate %56, %57 in 1 : vector<8x17xf32>, vector<8x847xf32> -> vector<8x864xf32>
    %59 = vector.extract_strided_slice %49 {offsets = [0, 863], sizes = [8, 1], strides = [1, 1]} : vector<8x864xf32> to vector<8x1xf32>
    %60 = vector.extract_strided_slice %49 {offsets = [0, 0], sizes = [8, 863], strides = [1, 1]} : vector<8x864xf32> to vector<8x863xf32>
    %61 = tpu.concatenate %59, %60 in 1 : vector<8x1xf32>, vector<8x863xf32> -> vector<8x864xf32>
    %62 = vector.extract_strided_slice %49 {offsets = [0, 1], sizes = [8, 863], strides = [1, 1]} : vector<8x864xf32> to vector<8x863xf32>
    %63 = vector.extract_strided_slice %49 {offsets = [0, 0], sizes = [8, 1], strides = [1, 1]} : vector<8x864xf32> to vector<8x1xf32>
    %64 = tpu.concatenate %62, %63 in 1 : vector<8x863xf32>, vector<8x1xf32> -> vector<8x864xf32>
    %65 = vector.extract_strided_slice %49 {offsets = [0, 17], sizes = [8, 847], strides = [1, 1]} : vector<8x864xf32> to vector<8x847xf32>
    %66 = vector.extract_strided_slice %49 {offsets = [0, 0], sizes = [8, 17], strides = [1, 1]} : vector<8x864xf32> to vector<8x17xf32>
    %67 = tpu.concatenate %65, %66 in 1 : vector<8x847xf32>, vector<8x17xf32> -> vector<8x864xf32>
    %68 = vector.extract_strided_slice %49 {offsets = [0, 18], sizes = [8, 846], strides = [1, 1]} : vector<8x864xf32> to vector<8x846xf32>
    %69 = vector.extract_strided_slice %49 {offsets = [0, 0], sizes = [8, 18], strides = [1, 1]} : vector<8x864xf32> to vector<8x18xf32>
    %70 = tpu.concatenate %68, %69 in 1 : vector<8x846xf32>, vector<8x18xf32> -> vector<8x864xf32>
    %71 = vector.extract_strided_slice %49 {offsets = [0, 19], sizes = [8, 845], strides = [1, 1]} : vector<8x864xf32> to vector<8x845xf32>
    %72 = vector.extract_strided_slice %49 {offsets = [0, 0], sizes = [8, 19], strides = [1, 1]} : vector<8x864xf32> to vector<8x19xf32>
    %73 = tpu.concatenate %71, %72 in 1 : vector<8x845xf32>, vector<8x19xf32> -> vector<8x864xf32>
    %74 = tpu.concatenate %52, %55, %58, %61, %49, %64, %67, %70, %73 in 0 : vector<8x864xf32>, vector<8x864xf32>, vector<8x864xf32>, vector<8x864xf32>, vector<8x864xf32>, vector<8x864xf32>, vector<8x864xf32>, vector<8x864xf32>, vector<8x864xf32> -> vector<72x864xf32>
    %75 = arith.truncf %74 : vector<72x864xf32> to vector<72x864xbf16>
    %c0_14 = arith.constant 0 : index
    %c0_15 = arith.constant 0 : index
    %76 = vector.load %arg5[%c0_14, %c0_15] : memref<16x72xbf16, #tpu.memory_space<vmem>>, vector<16x72xbf16>
    %cst_16 = arith.constant dense<0.000000e+00> : vector<16x864xf32>
    %77 = tpu.matmul %76, %75, %cst_16 {dimension_numbers = #tpu.dot_dimension_numbers<[1], [0], [0], [1], [0, 0, 1, 1], [], []>} : vector<16x72xbf16>, vector<72x864xbf16>, vector<16x864xf32> -> vector<16x864xf32>
    %c0_17 = arith.constant 0 : index
    %c1 = arith.constant 1 : index
    %78 = vector.load %arg3[%c0_17, %c1] : memref<32x8xf32, #tpu.memory_space<vmem>>, vector<16x1xf32>
    %79 = vector.broadcast %78 : vector<16x1xf32> to vector<16x864xf32>
    %80 = arith.addf %77, %79 : vector<16x864xf32>
    %81 = math.absf %80 : vector<16x864xf32>
    %cst_18 = arith.constant 0.000000e+00 : f32
    %82 = vector.broadcast %cst_18 : f32 to vector<16x864xf32>
    %83 = arith.subf %82, %81 : vector<16x864xf32>
    %84 = math.exp %83 : vector<16x864xf32>
    %cst_19 = arith.constant 1.000000e+00 : f32
    %85 = vector.broadcast %cst_19 : f32 to vector<16x864xf32>
    %86 = arith.addf %85, %84 : vector<16x864xf32>
    %cst_20 = arith.constant 1.000000e+00 : f32
    %87 = vector.broadcast %cst_20 : f32 to vector<16x864xf32>
    %88 = arith.divf %87, %86 : vector<16x864xf32>
    %cst_21 = arith.constant 0.000000e+00 : f32
    %89 = vector.broadcast %cst_21 : f32 to vector<16x864xf32>
    %90 = arith.cmpf oge, %80, %89 : vector<16x864xf32>
    %cst_22 = arith.constant 1.000000e+00 : f32
    %91 = vector.broadcast %cst_22 : f32 to vector<16x864xf32>
    %92 = arith.subf %91, %88 : vector<16x864xf32>
    %93 = arith.select %90, %88, %92 : vector<16x864xi1>, vector<16x864xf32>
    %94 = vector.broadcast %0 : vector<1x864xf32> to vector<16x864xf32>
    %95 = arith.mulf %93, %94 : vector<16x864xf32>
    %96 = vector.extract_strided_slice %95 {offsets = [0, 845], sizes = [16, 19], strides = [1, 1]} : vector<16x864xf32> to vector<16x19xf32>
    %97 = vector.extract_strided_slice %95 {offsets = [0, 0], sizes = [16, 845], strides = [1, 1]} : vector<16x864xf32> to vector<16x845xf32>
    %98 = tpu.concatenate %96, %97 in 1 : vector<16x19xf32>, vector<16x845xf32> -> vector<16x864xf32>
    %99 = vector.extract_strided_slice %95 {offsets = [0, 846], sizes = [16, 18], strides = [1, 1]} : vector<16x864xf32> to vector<16x18xf32>
    %100 = vector.extract_strided_slice %95 {offsets = [0, 0], sizes = [16, 846], strides = [1, 1]} : vector<16x864xf32> to vector<16x846xf32>
    %101 = tpu.concatenate %99, %100 in 1 : vector<16x18xf32>, vector<16x846xf32> -> vector<16x864xf32>
    %102 = vector.extract_strided_slice %95 {offsets = [0, 847], sizes = [16, 17], strides = [1, 1]} : vector<16x864xf32> to vector<16x17xf32>
    %103 = vector.extract_strided_slice %95 {offsets = [0, 0], sizes = [16, 847], strides = [1, 1]} : vector<16x864xf32> to vector<16x847xf32>
    %104 = tpu.concatenate %102, %103 in 1 : vector<16x17xf32>, vector<16x847xf32> -> vector<16x864xf32>
    %105 = vector.extract_strided_slice %95 {offsets = [0, 863], sizes = [16, 1], strides = [1, 1]} : vector<16x864xf32> to vector<16x1xf32>
    %106 = vector.extract_strided_slice %95 {offsets = [0, 0], sizes = [16, 863], strides = [1, 1]} : vector<16x864xf32> to vector<16x863xf32>
    %107 = tpu.concatenate %105, %106 in 1 : vector<16x1xf32>, vector<16x863xf32> -> vector<16x864xf32>
    %108 = vector.extract_strided_slice %95 {offsets = [0, 1], sizes = [16, 863], strides = [1, 1]} : vector<16x864xf32> to vector<16x863xf32>
    %109 = vector.extract_strided_slice %95 {offsets = [0, 0], sizes = [16, 1], strides = [1, 1]} : vector<16x864xf32> to vector<16x1xf32>
    %110 = tpu.concatenate %108, %109 in 1 : vector<16x863xf32>, vector<16x1xf32> -> vector<16x864xf32>
    %111 = vector.extract_strided_slice %95 {offsets = [0, 17], sizes = [16, 847], strides = [1, 1]} : vector<16x864xf32> to vector<16x847xf32>
    %112 = vector.extract_strided_slice %95 {offsets = [0, 0], sizes = [16, 17], strides = [1, 1]} : vector<16x864xf32> to vector<16x17xf32>
    %113 = tpu.concatenate %111, %112 in 1 : vector<16x847xf32>, vector<16x17xf32> -> vector<16x864xf32>
    %114 = vector.extract_strided_slice %95 {offsets = [0, 18], sizes = [16, 846], strides = [1, 1]} : vector<16x864xf32> to vector<16x846xf32>
    %115 = vector.extract_strided_slice %95 {offsets = [0, 0], sizes = [16, 18], strides = [1, 1]} : vector<16x864xf32> to vector<16x18xf32>
    %116 = tpu.concatenate %114, %115 in 1 : vector<16x846xf32>, vector<16x18xf32> -> vector<16x864xf32>
    %117 = vector.extract_strided_slice %95 {offsets = [0, 19], sizes = [16, 845], strides = [1, 1]} : vector<16x864xf32> to vector<16x845xf32>
    %118 = vector.extract_strided_slice %95 {offsets = [0, 0], sizes = [16, 19], strides = [1, 1]} : vector<16x864xf32> to vector<16x19xf32>
    %119 = tpu.concatenate %117, %118 in 1 : vector<16x845xf32>, vector<16x19xf32> -> vector<16x864xf32>
    %120 = tpu.concatenate %98, %101, %104, %107, %95, %110, %113, %116, %119 in 0 : vector<16x864xf32>, vector<16x864xf32>, vector<16x864xf32>, vector<16x864xf32>, vector<16x864xf32>, vector<16x864xf32>, vector<16x864xf32>, vector<16x864xf32>, vector<16x864xf32> -> vector<144x864xf32>
    %121 = arith.truncf %120 : vector<144x864xf32> to vector<144x864xbf16>
    %c0_23 = arith.constant 0 : index
    %c0_24 = arith.constant 0 : index
    %122 = vector.load %arg6[%c0_23, %c0_24] : memref<32x144xbf16, #tpu.memory_space<vmem>>, vector<32x144xbf16>
    %cst_25 = arith.constant dense<0.000000e+00> : vector<32x864xf32>
    %123 = tpu.matmul %122, %121, %cst_25 {dimension_numbers = #tpu.dot_dimension_numbers<[1], [0], [0], [1], [0, 0, 1, 1], [], []>} : vector<32x144xbf16>, vector<144x864xbf16>, vector<32x864xf32> -> vector<32x864xf32>
    %c0_26 = arith.constant 0 : index
    %c2 = arith.constant 2 : index
    %124 = vector.load %arg3[%c0_26, %c2] : memref<32x8xf32, #tpu.memory_space<vmem>>, vector<32x1xf32>
    %125 = vector.broadcast %124 : vector<32x1xf32> to vector<32x864xf32>
    %126 = arith.addf %123, %125 : vector<32x864xf32>
    %127 = math.absf %126 : vector<32x864xf32>
    %cst_27 = arith.constant 0.000000e+00 : f32
    %128 = vector.broadcast %cst_27 : f32 to vector<32x864xf32>
    %129 = arith.subf %128, %127 : vector<32x864xf32>
    %130 = math.exp %129 : vector<32x864xf32>
    %cst_28 = arith.constant 1.000000e+00 : f32
    %131 = vector.broadcast %cst_28 : f32 to vector<32x864xf32>
    %132 = arith.addf %131, %130 : vector<32x864xf32>
    %cst_29 = arith.constant 1.000000e+00 : f32
    %133 = vector.broadcast %cst_29 : f32 to vector<32x864xf32>
    %134 = arith.divf %133, %132 : vector<32x864xf32>
    %cst_30 = arith.constant 0.000000e+00 : f32
    %135 = vector.broadcast %cst_30 : f32 to vector<32x864xf32>
    %136 = arith.cmpf oge, %126, %135 : vector<32x864xf32>
    %cst_31 = arith.constant 1.000000e+00 : f32
    %137 = vector.broadcast %cst_31 : f32 to vector<32x864xf32>
    %138 = arith.subf %137, %134 : vector<32x864xf32>
    %139 = arith.select %136, %134, %138 : vector<32x864xi1>, vector<32x864xf32>
    %140 = vector.broadcast %0 : vector<1x864xf32> to vector<32x864xf32>
    %141 = arith.mulf %139, %140 : vector<32x864xf32>
    %142 = vector.extract_strided_slice %141 {offsets = [0, 845], sizes = [32, 19], strides = [1, 1]} : vector<32x864xf32> to vector<32x19xf32>
    %143 = vector.extract_strided_slice %141 {offsets = [0, 0], sizes = [32, 845], strides = [1, 1]} : vector<32x864xf32> to vector<32x845xf32>
    %144 = tpu.concatenate %142, %143 in 1 : vector<32x19xf32>, vector<32x845xf32> -> vector<32x864xf32>
    %145 = vector.extract_strided_slice %141 {offsets = [0, 846], sizes = [32, 18], strides = [1, 1]} : vector<32x864xf32> to vector<32x18xf32>
    %146 = vector.extract_strided_slice %141 {offsets = [0, 0], sizes = [32, 846], strides = [1, 1]} : vector<32x864xf32> to vector<32x846xf32>
    %147 = tpu.concatenate %145, %146 in 1 : vector<32x18xf32>, vector<32x846xf32> -> vector<32x864xf32>
    %148 = vector.extract_strided_slice %141 {offsets = [0, 847], sizes = [32, 17], strides = [1, 1]} : vector<32x864xf32> to vector<32x17xf32>
    %149 = vector.extract_strided_slice %141 {offsets = [0, 0], sizes = [32, 847], strides = [1, 1]} : vector<32x864xf32> to vector<32x847xf32>
    %150 = tpu.concatenate %148, %149 in 1 : vector<32x17xf32>, vector<32x847xf32> -> vector<32x864xf32>
    %151 = vector.extract_strided_slice %141 {offsets = [0, 863], sizes = [32, 1], strides = [1, 1]} : vector<32x864xf32> to vector<32x1xf32>
    %152 = vector.extract_strided_slice %141 {offsets = [0, 0], sizes = [32, 863], strides = [1, 1]} : vector<32x864xf32> to vector<32x863xf32>
    %153 = tpu.concatenate %151, %152 in 1 : vector<32x1xf32>, vector<32x863xf32> -> vector<32x864xf32>
    %154 = vector.extract_strided_slice %141 {offsets = [0, 1], sizes = [32, 863], strides = [1, 1]} : vector<32x864xf32> to vector<32x863xf32>
    %155 = vector.extract_strided_slice %141 {offsets = [0, 0], sizes = [32, 1], strides = [1, 1]} : vector<32x864xf32> to vector<32x1xf32>
    %156 = tpu.concatenate %154, %155 in 1 : vector<32x863xf32>, vector<32x1xf32> -> vector<32x864xf32>
    %157 = vector.extract_strided_slice %141 {offsets = [0, 17], sizes = [32, 847], strides = [1, 1]} : vector<32x864xf32> to vector<32x847xf32>
    %158 = vector.extract_strided_slice %141 {offsets = [0, 0], sizes = [32, 17], strides = [1, 1]} : vector<32x864xf32> to vector<32x17xf32>
    %159 = tpu.concatenate %157, %158 in 1 : vector<32x847xf32>, vector<32x17xf32> -> vector<32x864xf32>
    %160 = vector.extract_strided_slice %141 {offsets = [0, 18], sizes = [32, 846], strides = [1, 1]} : vector<32x864xf32> to vector<32x846xf32>
    %161 = vector.extract_strided_slice %141 {offsets = [0, 0], sizes = [32, 18], strides = [1, 1]} : vector<32x864xf32> to vector<32x18xf32>
    %162 = tpu.concatenate %160, %161 in 1 : vector<32x846xf32>, vector<32x18xf32> -> vector<32x864xf32>
    %163 = vector.extract_strided_slice %141 {offsets = [0, 19], sizes = [32, 845], strides = [1, 1]} : vector<32x864xf32> to vector<32x845xf32>
    %164 = vector.extract_strided_slice %141 {offsets = [0, 0], sizes = [32, 19], strides = [1, 1]} : vector<32x864xf32> to vector<32x19xf32>
    %165 = tpu.concatenate %163, %164 in 1 : vector<32x845xf32>, vector<32x19xf32> -> vector<32x864xf32>
    %166 = tpu.concatenate %144, %147, %150, %153, %141, %156, %159, %162, %165 in 0 : vector<32x864xf32>, vector<32x864xf32>, vector<32x864xf32>, vector<32x864xf32>, vector<32x864xf32>, vector<32x864xf32>, vector<32x864xf32>, vector<32x864xf32>, vector<32x864xf32> -> vector<288x864xf32>
    %167 = arith.truncf %166 : vector<288x864xf32> to vector<288x864xbf16>
    %c0_32 = arith.constant 0 : index
    %c0_33 = arith.constant 0 : index
    %168 = vector.load %arg7[%c0_32, %c0_33] : memref<8x288xbf16, #tpu.memory_space<vmem>>, vector<8x288xbf16>
    %cst_34 = arith.constant dense<0.000000e+00> : vector<8x864xf32>
    %169 = tpu.matmul %168, %167, %cst_34 {dimension_numbers = #tpu.dot_dimension_numbers<[1], [0], [0], [1], [0, 0, 1, 1], [], []>} : vector<8x288xbf16>, vector<288x864xbf16>, vector<8x864xf32> -> vector<8x864xf32>
    %c0_35 = arith.constant 0 : index
    %c3 = arith.constant 3 : index
    %170 = vector.load %arg3[%c0_35, %c3] : memref<32x8xf32, #tpu.memory_space<vmem>>, vector<8x1xf32>
    %171 = vector.broadcast %170 : vector<8x1xf32> to vector<8x864xf32>
    %172 = arith.addf %169, %171 : vector<8x864xf32>
    %173 = vector.extract_strided_slice %172 {offsets = [0, 0], sizes = [4, 864], strides = [1, 1]} : vector<8x864xf32> to vector<4x864xf32>
    %174 = math.absf %173 : vector<4x864xf32>
    %cst_36 = arith.constant 0.000000e+00 : f32
    %175 = vector.broadcast %cst_36 : f32 to vector<4x864xf32>
    %176 = arith.subf %175, %174 : vector<4x864xf32>
    %177 = math.exp %176 : vector<4x864xf32>
    %cst_37 = arith.constant 1.000000e+00 : f32
    %178 = vector.broadcast %cst_37 : f32 to vector<4x864xf32>
    %179 = arith.addf %178, %177 : vector<4x864xf32>
    %cst_38 = arith.constant 1.000000e+00 : f32
    %180 = vector.broadcast %cst_38 : f32 to vector<4x864xf32>
    %181 = arith.divf %180, %179 : vector<4x864xf32>
    %cst_39 = arith.constant 0.000000e+00 : f32
    %182 = vector.broadcast %cst_39 : f32 to vector<4x864xf32>
    %183 = arith.cmpf oge, %173, %182 : vector<4x864xf32>
    %cst_40 = arith.constant 1.000000e+00 : f32
    %184 = vector.broadcast %cst_40 : f32 to vector<4x864xf32>
    %185 = arith.subf %184, %181 : vector<4x864xf32>
    %186 = arith.select %183, %181, %185 : vector<4x864xi1>, vector<4x864xf32>
    %187 = vector.broadcast %0 : vector<1x864xf32> to vector<4x864xf32>
    %188 = arith.mulf %186, %187 : vector<4x864xf32>
    %189 = vector.extract_strided_slice %188 {offsets = [0, 845], sizes = [4, 19], strides = [1, 1]} : vector<4x864xf32> to vector<4x19xf32>
    %190 = vector.extract_strided_slice %188 {offsets = [0, 0], sizes = [4, 845], strides = [1, 1]} : vector<4x864xf32> to vector<4x845xf32>
    %191 = tpu.concatenate %189, %190 in 1 : vector<4x19xf32>, vector<4x845xf32> -> vector<4x864xf32>
    %192 = vector.extract_strided_slice %188 {offsets = [0, 846], sizes = [4, 18], strides = [1, 1]} : vector<4x864xf32> to vector<4x18xf32>
    %193 = vector.extract_strided_slice %188 {offsets = [0, 0], sizes = [4, 846], strides = [1, 1]} : vector<4x864xf32> to vector<4x846xf32>
    %194 = tpu.concatenate %192, %193 in 1 : vector<4x18xf32>, vector<4x846xf32> -> vector<4x864xf32>
    %195 = vector.extract_strided_slice %188 {offsets = [0, 847], sizes = [4, 17], strides = [1, 1]} : vector<4x864xf32> to vector<4x17xf32>
    %196 = vector.extract_strided_slice %188 {offsets = [0, 0], sizes = [4, 847], strides = [1, 1]} : vector<4x864xf32> to vector<4x847xf32>
    %197 = tpu.concatenate %195, %196 in 1 : vector<4x17xf32>, vector<4x847xf32> -> vector<4x864xf32>
    %198 = vector.extract_strided_slice %188 {offsets = [0, 863], sizes = [4, 1], strides = [1, 1]} : vector<4x864xf32> to vector<4x1xf32>
    %199 = vector.extract_strided_slice %188 {offsets = [0, 0], sizes = [4, 863], strides = [1, 1]} : vector<4x864xf32> to vector<4x863xf32>
    %200 = tpu.concatenate %198, %199 in 1 : vector<4x1xf32>, vector<4x863xf32> -> vector<4x864xf32>
    %201 = vector.extract_strided_slice %188 {offsets = [0, 1], sizes = [4, 863], strides = [1, 1]} : vector<4x864xf32> to vector<4x863xf32>
    %202 = vector.extract_strided_slice %188 {offsets = [0, 0], sizes = [4, 1], strides = [1, 1]} : vector<4x864xf32> to vector<4x1xf32>
    %203 = tpu.concatenate %201, %202 in 1 : vector<4x863xf32>, vector<4x1xf32> -> vector<4x864xf32>
    %204 = vector.extract_strided_slice %188 {offsets = [0, 17], sizes = [4, 847], strides = [1, 1]} : vector<4x864xf32> to vector<4x847xf32>
    %205 = vector.extract_strided_slice %188 {offsets = [0, 0], sizes = [4, 17], strides = [1, 1]} : vector<4x864xf32> to vector<4x17xf32>
    %206 = tpu.concatenate %204, %205 in 1 : vector<4x847xf32>, vector<4x17xf32> -> vector<4x864xf32>
    %207 = vector.extract_strided_slice %188 {offsets = [0, 18], sizes = [4, 846], strides = [1, 1]} : vector<4x864xf32> to vector<4x846xf32>
    %208 = vector.extract_strided_slice %188 {offsets = [0, 0], sizes = [4, 18], strides = [1, 1]} : vector<4x864xf32> to vector<4x18xf32>
    %209 = tpu.concatenate %207, %208 in 1 : vector<4x846xf32>, vector<4x18xf32> -> vector<4x864xf32>
    %210 = vector.extract_strided_slice %188 {offsets = [0, 19], sizes = [4, 845], strides = [1, 1]} : vector<4x864xf32> to vector<4x845xf32>
    %211 = vector.extract_strided_slice %188 {offsets = [0, 0], sizes = [4, 19], strides = [1, 1]} : vector<4x864xf32> to vector<4x19xf32>
    %212 = tpu.concatenate %210, %211 in 1 : vector<4x845xf32>, vector<4x19xf32> -> vector<4x864xf32>
    %cst_41 = arith.constant 0.000000e+00 : f32
    %213 = vector.broadcast %cst_41 : f32 to vector<4x864xf32>
    %214 = tpu.concatenate %191, %194, %197, %200, %188, %203, %206, %209, %212, %213 in 0 : vector<4x864xf32>, vector<4x864xf32>, vector<4x864xf32>, vector<4x864xf32>, vector<4x864xf32>, vector<4x864xf32>, vector<4x864xf32>, vector<4x864xf32>, vector<4x864xf32>, vector<4x864xf32> -> vector<40x864xf32>
    %215 = arith.truncf %214 : vector<40x864xf32> to vector<40x864xbf16>
    %c0_42 = arith.constant 0 : index
    %c0_43 = arith.constant 0 : index
    %216 = vector.load %arg8[%c0_42, %c0_43] : memref<8x40xbf16, #tpu.memory_space<vmem>>, vector<8x40xbf16>
    %cst_44 = arith.constant dense<0.000000e+00> : vector<8x864xf32>
    %217 = tpu.matmul %216, %215, %cst_44 {dimension_numbers = #tpu.dot_dimension_numbers<[1], [0], [0], [1], [0, 0, 1, 1], [], []>} : vector<8x40xbf16>, vector<40x864xbf16>, vector<8x864xf32> -> vector<8x864xf32>
    %c0_45 = arith.constant 0 : index
    %c4 = arith.constant 4 : index
    %218 = vector.load %arg3[%c0_45, %c4] : memref<32x8xf32, #tpu.memory_space<vmem>>, vector<8x1xf32>
    %219 = vector.broadcast %218 : vector<8x1xf32> to vector<8x864xf32>
    %220 = arith.addf %217, %219 : vector<8x864xf32>
    %221 = vector.extract_strided_slice %220 {offsets = [0, 0], sizes = [4, 864], strides = [1, 1]} : vector<8x864xf32> to vector<4x864xf32>
    %222 = math.absf %221 : vector<4x864xf32>
    %cst_46 = arith.constant 0.000000e+00 : f32
    %223 = vector.broadcast %cst_46 : f32 to vector<4x864xf32>
    %224 = arith.subf %223, %222 : vector<4x864xf32>
    %225 = math.exp %224 : vector<4x864xf32>
    %cst_47 = arith.constant 1.000000e+00 : f32
    %226 = vector.broadcast %cst_47 : f32 to vector<4x864xf32>
    %227 = arith.addf %226, %225 : vector<4x864xf32>
    %cst_48 = arith.constant 1.000000e+00 : f32
    %228 = vector.broadcast %cst_48 : f32 to vector<4x864xf32>
    %229 = arith.divf %228, %227 : vector<4x864xf32>
    %cst_49 = arith.constant 0.000000e+00 : f32
    %230 = vector.broadcast %cst_49 : f32 to vector<4x864xf32>
    %231 = arith.cmpf oge, %221, %230 : vector<4x864xf32>
    %cst_50 = arith.constant 1.000000e+00 : f32
    %232 = vector.broadcast %cst_50 : f32 to vector<4x864xf32>
    %233 = arith.subf %232, %229 : vector<4x864xf32>
    %234 = arith.select %231, %229, %233 : vector<4x864xi1>, vector<4x864xf32>
    %235 = vector.broadcast %0 : vector<1x864xf32> to vector<4x864xf32>
    %236 = arith.mulf %234, %235 : vector<4x864xf32>
    %237 = vector.extract_strided_slice %236 {offsets = [0, 845], sizes = [4, 19], strides = [1, 1]} : vector<4x864xf32> to vector<4x19xf32>
    %238 = vector.extract_strided_slice %236 {offsets = [0, 0], sizes = [4, 845], strides = [1, 1]} : vector<4x864xf32> to vector<4x845xf32>
    %239 = tpu.concatenate %237, %238 in 1 : vector<4x19xf32>, vector<4x845xf32> -> vector<4x864xf32>
    %240 = vector.extract_strided_slice %236 {offsets = [0, 846], sizes = [4, 18], strides = [1, 1]} : vector<4x864xf32> to vector<4x18xf32>
    %241 = vector.extract_strided_slice %236 {offsets = [0, 0], sizes = [4, 846], strides = [1, 1]} : vector<4x864xf32> to vector<4x846xf32>
    %242 = tpu.concatenate %240, %241 in 1 : vector<4x18xf32>, vector<4x846xf32> -> vector<4x864xf32>
    %243 = vector.extract_strided_slice %236 {offsets = [0, 847], sizes = [4, 17], strides = [1, 1]} : vector<4x864xf32> to vector<4x17xf32>
    %244 = vector.extract_strided_slice %236 {offsets = [0, 0], sizes = [4, 847], strides = [1, 1]} : vector<4x864xf32> to vector<4x847xf32>
    %245 = tpu.concatenate %243, %244 in 1 : vector<4x17xf32>, vector<4x847xf32> -> vector<4x864xf32>
    %246 = vector.extract_strided_slice %236 {offsets = [0, 863], sizes = [4, 1], strides = [1, 1]} : vector<4x864xf32> to vector<4x1xf32>
    %247 = vector.extract_strided_slice %236 {offsets = [0, 0], sizes = [4, 863], strides = [1, 1]} : vector<4x864xf32> to vector<4x863xf32>
    %248 = tpu.concatenate %246, %247 in 1 : vector<4x1xf32>, vector<4x863xf32> -> vector<4x864xf32>
    %249 = vector.extract_strided_slice %236 {offsets = [0, 1], sizes = [4, 863], strides = [1, 1]} : vector<4x864xf32> to vector<4x863xf32>
    %250 = vector.extract_strided_slice %236 {offsets = [0, 0], sizes = [4, 1], strides = [1, 1]} : vector<4x864xf32> to vector<4x1xf32>
    %251 = tpu.concatenate %249, %250 in 1 : vector<4x863xf32>, vector<4x1xf32> -> vector<4x864xf32>
    %252 = vector.extract_strided_slice %236 {offsets = [0, 17], sizes = [4, 847], strides = [1, 1]} : vector<4x864xf32> to vector<4x847xf32>
    %253 = vector.extract_strided_slice %236 {offsets = [0, 0], sizes = [4, 17], strides = [1, 1]} : vector<4x864xf32> to vector<4x17xf32>
    %254 = tpu.concatenate %252, %253 in 1 : vector<4x847xf32>, vector<4x17xf32> -> vector<4x864xf32>
    %255 = vector.extract_strided_slice %236 {offsets = [0, 18], sizes = [4, 846], strides = [1, 1]} : vector<4x864xf32> to vector<4x846xf32>
    %256 = vector.extract_strided_slice %236 {offsets = [0, 0], sizes = [4, 18], strides = [1, 1]} : vector<4x864xf32> to vector<4x18xf32>
    %257 = tpu.concatenate %255, %256 in 1 : vector<4x846xf32>, vector<4x18xf32> -> vector<4x864xf32>
    %258 = vector.extract_strided_slice %236 {offsets = [0, 19], sizes = [4, 845], strides = [1, 1]} : vector<4x864xf32> to vector<4x845xf32>
    %259 = vector.extract_strided_slice %236 {offsets = [0, 0], sizes = [4, 19], strides = [1, 1]} : vector<4x864xf32> to vector<4x19xf32>
    %260 = tpu.concatenate %258, %259 in 1 : vector<4x845xf32>, vector<4x19xf32> -> vector<4x864xf32>
    %cst_51 = arith.constant 0.000000e+00 : f32
    %261 = vector.broadcast %cst_51 : f32 to vector<4x864xf32>
    %262 = tpu.concatenate %239, %242, %245, %248, %236, %251, %254, %257, %260, %261 in 0 : vector<4x864xf32>, vector<4x864xf32>, vector<4x864xf32>, vector<4x864xf32>, vector<4x864xf32>, vector<4x864xf32>, vector<4x864xf32>, vector<4x864xf32>, vector<4x864xf32>, vector<4x864xf32> -> vector<40x864xf32>
    %263 = arith.truncf %262 : vector<40x864xf32> to vector<40x864xbf16>
    %c0_52 = arith.constant 0 : index
    %c0_53 = arith.constant 0 : index
    %264 = vector.load %arg9[%c0_52, %c0_53] : memref<8x40xbf16, #tpu.memory_space<vmem>>, vector<8x40xbf16>
    %cst_54 = arith.constant dense<0.000000e+00> : vector<8x864xf32>
    %265 = tpu.matmul %264, %263, %cst_54 {dimension_numbers = #tpu.dot_dimension_numbers<[1], [0], [0], [1], [0, 0, 1, 1], [], []>} : vector<8x40xbf16>, vector<40x864xbf16>, vector<8x864xf32> -> vector<8x864xf32>
    %c0_55 = arith.constant 0 : index
    %c5 = arith.constant 5 : index
    %266 = vector.load %arg3[%c0_55, %c5] : memref<32x8xf32, #tpu.memory_space<vmem>>, vector<8x1xf32>
    %267 = vector.broadcast %266 : vector<8x1xf32> to vector<8x864xf32>
    %268 = arith.addf %265, %267 : vector<8x864xf32>
    %269 = vector.extract_strided_slice %268 {offsets = [0, 0], sizes = [1, 864], strides = [1, 1]} : vector<8x864xf32> to vector<1x864xf32>
    %270 = math.absf %269 : vector<1x864xf32>
    %cst_56 = arith.constant 0.000000e+00 : f32
    %271 = vector.broadcast %cst_56 : f32 to vector<1x864xf32>
    %272 = arith.subf %271, %270 : vector<1x864xf32>
    %273 = math.exp %272 : vector<1x864xf32>
    %cst_57 = arith.constant 1.000000e+00 : f32
    %274 = vector.broadcast %cst_57 : f32 to vector<1x864xf32>
    %275 = arith.addf %274, %273 : vector<1x864xf32>
    %cst_58 = arith.constant 1.000000e+00 : f32
    %276 = vector.broadcast %cst_58 : f32 to vector<1x864xf32>
    %277 = arith.divf %276, %275 : vector<1x864xf32>
    %cst_59 = arith.constant 0.000000e+00 : f32
    %278 = vector.broadcast %cst_59 : f32 to vector<1x864xf32>
    %279 = arith.cmpf oge, %269, %278 : vector<1x864xf32>
    %cst_60 = arith.constant 1.000000e+00 : f32
    %280 = vector.broadcast %cst_60 : f32 to vector<1x864xf32>
    %281 = arith.subf %280, %277 : vector<1x864xf32>
    %282 = arith.select %279, %277, %281 : vector<1x864xi1>, vector<1x864xf32>
    %c0_61 = arith.constant 0 : index
    %c0_62 = arith.constant 0 : index
    %c0_63 = arith.constant 0 : index
    %283 = vector.load %arg10[%c0_61, %c0_62, %c0_63] : memref<1x1x864xf32, #tpu.memory_space<vmem>>, vector<1x1x864xf32>
    %284 = vector.shape_cast %283 : vector<1x1x864xf32> to vector<1x864xf32>
    %285 = vector.shape_cast %282 : vector<1x864xf32> to vector<1x1x864xf32>
    tpu.vector_store %arg10[%c0_61, %c0_62, %c0_63], %285 {strides = array<i32>} : memref<1x1x864xf32, #tpu.memory_space<vmem>>, vector<1x1x864xf32>,
    return
  }
  func.func @transform_0(%arg0: i32) -> (i32, i32, i32) {
    %c0_i32 = arith.constant 0 : i32
    %c0_i32_0 = arith.constant 0 : i32
    %c0_i32_1 = arith.constant 0 : i32
    return %arg0, %c0_i32, %c0_i32_0 : i32, i32, i32
  }
  func.func @transform_1(%arg0: i32) -> (i32, i32) {
    %c0_i32 = arith.constant 0 : i32
    %c0_i32_0 = arith.constant 0 : i32
    %c0_i32_1 = arith.constant 0 : i32
    return %c0_i32, %c0_i32_0 : i32, i32
  }
  func.func @transform_2(%arg0: i32) -> (i32, i32) {
    %c0_i32 = arith.constant 0 : i32
    %c0_i32_0 = arith.constant 0 : i32
    %c0_i32_1 = arith.constant 0 : i32
    return %c0_i32, %c0_i32_0 : i32, i32
  }
  func.func @transform_3(%arg0: i32) -> (i32, i32) {
    %c0_i32 = arith.constant 0 : i32
    %c0_i32_0 = arith.constant 0 : i32
    %c0_i32_1 = arith.constant 0 : i32
    return %c0_i32, %c0_i32_0 : i32, i32
  }
  func.func @transform_4(%arg0: i32) -> (i32, i32) {
    %c0_i32 = arith.constant 0 : i32
    %c0_i32_0 = arith.constant 0 : i32
    %c0_i32_1 = arith.constant 0 : i32
    return %c0_i32, %c0_i32_0 : i32, i32
  }
  func.func @transform_5(%arg0: i32) -> (i32, i32) {
    %c0_i32 = arith.constant 0 : i32
    %c0_i32_0 = arith.constant 0 : i32
    %c0_i32_1 = arith.constant 0 : i32
    return %c0_i32, %c0_i32_0 : i32, i32
  }
  func.func @transform_6(%arg0: i32) -> (i32, i32) {
    %c0_i32 = arith.constant 0 : i32
    %c0_i32_0 = arith.constant 0 : i32
    %c0_i32_1 = arith.constant 0 : i32
    return %c0_i32, %c0_i32_0 : i32, i32
  }
  func.func @transform_7(%arg0: i32) -> (i32, i32) {
    %c0_i32 = arith.constant 0 : i32
    %c0_i32_0 = arith.constant 0 : i32
    %c0_i32_1 = arith.constant 0 : i32
    return %c0_i32, %c0_i32_0 : i32, i32
  }
  func.func @transform_8(%arg0: i32) -> (i32, i32) {
    %c0_i32 = arith.constant 0 : i32
    %c0_i32_0 = arith.constant 0 : i32
    %c0_i32_1 = arith.constant 0 : i32
    return %c0_i32, %c0_i32_0 : i32, i32
  }
  func.func @transform_9(%arg0: i32) -> (i32, i32, i32) {
    %c0_i32 = arith.constant 0 : i32
    %c0_i32_0 = arith.constant 0 : i32
    %c0_i32_1 = arith.constant 0 : i32
    return %arg0, %c0_i32, %c0_i32_0 : i32, i32, i32
  }
}

</mosaic_0001>

<llo_original>
// kernel: tile.6
$region0: #{tile.6}
  #allocation0 [shape = 's32[1]{0}', space=sflag, size = 0x4, scoped, tag = 'scoped memory for tile.6']
  %s0 = inlined_call_operand.vmem [shape: f32[108], index: 0, kind: input, shape index: {}]
  %s1 = inlined_call_operand.vmem [shape: f32[8,108], index: 1, kind: output, shape index: {}]
  // Predicated region
  $region2: #{tile.6} parent=0 // pred_check
    _
  $region3: #{tile.6} parent=0 // pred_check_branch
    %3 = sbr.rel (0) target = $region5
  $region4: #{tile.6} parent=0 // pred_region
    _
  $region5: #{tile.6} parent=0 // pred_fallthru
    _
  %v4 = vld [vmem:[%s0] ss:$0 sm:$0xff]
  %5 = vst [vmem:[%s1] sm:$0xff] %v4

// kernel: tile.7
$region0: #{tile.7}
  %s0 = inlined_call_operand.vmem [shape: f32[8,108], index: 0, kind: input, shape index: {}]
  %s1 = inlined_call_operand.vmem [shape: f32[1,864], index: 1, kind: output, shape index: {}]
  $region1: #{tile.7} parent=0
    #allocation0 [shape = 'u8[28672]{0}', space=vmem, size = 0x7000, scoped, tag = 'scoped mem for output reshape']
    %v2 = vld [vmem:[%s0] sm:$0x1]
    %vm3 = vcmask 883712
    %4 = vst.msk [vmem:[#allocation0] sm:$0x1] %vm3, %v2
    %s5 = scalar_lea.vmem %s0, 7
    %v6 = vld [vmem:[%s5] sm:$0x1]
    %s7 = scalar_lea.vmem %s0, 7
    %v8 = vld [vmem:[%s7] sm:$0x1]
    %vm9 = vcmask 97280
    %v10 = vsel %vm9, %v8, %v6
    %11 = vrot.lane.b32.xlu0 %v10, 116
    %v12 = vpop.permute.xlu0 %11
    %vm13 = vcmask 785408
    %s14 = scalar_lea.vmem [#allocation0], 48
    %15 = vst.msk [vmem:[%s14] sm:$0x1] %vm13, %v12
    %vm16 = vcmask 1048480
    %s17 = scalar_lea.vmem [#allocation0], 40
    %18 = vst.msk [vmem:[%s17] sm:$0x1] %vm16, %v12
    %s19 = scalar_lea.vmem %s0, 1
    %v20 = vld [vmem:[%s19] sm:$0x1]
    %s21 = scalar_lea.vmem %s0, 1
    %v22 = vld [vmem:[%s21] sm:$0x1]
    %vm23 = vcmask 162816
    %v24 = vsel %vm23, %v22, %v20
    %25 = vrot.lane.b32.xlu0 %v24, 108
    %v26 = vpop.permute.xlu0 %25
    %vm27 = vcmask 719872
    %s28 = scalar_lea.vmem [#allocation0], 8
    %29 = vst.msk [vmem:[%s28] sm:$0x1] %vm27, %v26
    %vm30 = vcmask 1048416
    %31 = vst.msk [vmem:[#allocation0] sm:$0x1] %vm30, %v26
    %s32 = scalar_lea.vmem %s0, 2
    %v33 = vld [vmem:[%s32] sm:$0x1]
    %s34 = scalar_lea.vmem %s0, 2
    %v35 = vld [vmem:[%s34] sm:$0x1]
    %vm36 = vcmask 326656
    %v37 = vsel %vm36, %v35, %v33
    %38 = vrot.lane.b32.xlu0 %v37, 88
    %v39 = vpop.permute.xlu0 %38
    %vm40 = vcmask 556032
    %s41 = scalar_lea.vmem [#allocation0], 16
    %42 = vst.msk [vmem:[%s41] sm:$0x1] %vm40, %v39
    %vm43 = vcmask 1048256
    %s44 = scalar_lea.vmem [#allocation0], 8
    %45 = vst.msk [vmem:[%s44] sm:$0x1] %vm43, %v39
    %s46 = scalar_lea.vmem %s0, 3
    %v47 = vld [vmem:[%s46] sm:$0x1]
    %s48 = scalar_lea.vmem %s0, 3
    %v49 = vld [vmem:[%s48] sm:$0x1]
    %vm50 = vcmask 490496
    %v51 = vsel %vm50, %v49, %v47
    %52 = vrot.lane.b32.xlu0 %v51, 68
    %v53 = vpop.permute.xlu0 %52
    %vm54 = vcmask 392192
    %s55 = scalar_lea.vmem [#allocation0], 24
    %56 = vst.msk [vmem:[%s55] sm:$0x1] %vm54, %v53
    %vm57 = vcmask 1048096
    %s58 = scalar_lea.vmem [#allocation0], 16
    %59 = vst.msk [vmem:[%s58] sm:$0x1] %vm57, %v53
    %s60 = scalar_lea.vmem %s0, 4
    %v61 = vld [vmem:[%s60] sm:$0x1]
    %s62 = scalar_lea.vmem %s0, 4
    %v63 = vld [vmem:[%s62] sm:$0x1]
    %vm64 = vcmask 654336
    %v65 = vsel %vm64, %v63, %v61
    %66 = vrot.lane.b32.xlu0 %v65, 48
    %v67 = vpop.permute.xlu0 %66
    %vm68 = vcmask 228352
    %s69 = scalar_lea.vmem [#allocation0], 32
    %70 = vst.msk [vmem:[%s69] sm:$0x1] %vm68, %v67
    %vm71 = vcmask 1047936
    %s72 = scalar_lea.vmem [#allocation0], 24
    %73 = vst.msk [vmem:[%s72] sm:$0x1] %vm71, %v67
    %s74 = scalar_lea.vmem %s0, 5
    %v75 = vld [vmem:[%s74] sm:$0x1]
    %s76 = scalar_lea.vmem %s0, 5
    %v77 = vld [vmem:[%s76] sm:$0x1]
    %vm78 = vcmask 818176
    %v79 = vsel %vm78, %v77, %v75
    %80 = vrot.lane.b32.xlu0 %v79, 28
    %v81 = vpop.permute.xlu0 %80
    %vm82 = vcmask 64512
    %s83 = scalar_lea.vmem [#allocation0], 40
    %84 = vst.msk [vmem:[%s83] sm:$0x1] %vm82, %v81
    %vm85 = vcmask 1047776
    %s86 = scalar_lea.vmem [#allocation0], 32
    %87 = vst.msk [vmem:[%s86] sm:$0x1] %vm85, %v81
    %s88 = scalar_lea.vmem %s0, 6
    %v89 = vld [vmem:[%s88] sm:$0x1]
    %90 = vrot.lane.b32.xlu0 %v89, 8
    %v91 = vpop.permute.xlu0 %90
    %vm92 = vcmask 949312
    %s93 = scalar_lea.vmem [#allocation0], 40
    %94 = vst.msk [vmem:[%s93] sm:$0x1] %vm92, %v91
    %s96 = sshll.u32 1, 1
    %s97 = ssub.s32 %s96, 1
    %v99 = vld [vmem:[#allocation0] sm:%s97]
    %s100 = sshll.u32 1, 1
    %s101 = ssub.s32 %s100, 1
    %102 = vst [vmem:[%s1] sm:%s101] %v99
    %s103 = scalar_lea.vmem [#allocation0], 8
    %v104 = vld [vmem:[%s103] sm:%s97]
    %s105 = sshll.u32 1, 1
    %s106 = ssub.s32 %s105, 1
    %s107 = scalar_lea.vmem %s1, 1
    %108 = vst [vmem:[%s107] sm:%s106] %v104
    %s109 = scalar_lea.vmem [#allocation0], 16
    %v110 = vld [vmem:[%s109] sm:%s97]
    %s111 = sshll.u32 1, 1
    %s112 = ssub.s32 %s111, 1
    %s113 = smul.addr 1, 2
    %s114 = scalar_lea.vmem %s1, %s113
    %115 = vst [vmem:[%s114] sm:%s112] %v110
    %s116 = scalar_lea.vmem [#allocation0], 24
    %v117 = vld [vmem:[%s116] sm:%s97]
    %s118 = sshll.u32 1, 1
    %s119 = ssub.s32 %s118, 1
    %s120 = smul.addr 1, 3
    %s121 = scalar_lea.vmem %s1, %s120
    %122 = vst [vmem:[%s121] sm:%s119] %v117
    %s123 = scalar_lea.vmem [#allocation0], 32
    %v124 = vld [vmem:[%s123] sm:%s97]
    %s125 = sshll.u32 1, 1
    %s126 = ssub.s32 %s125, 1
    %s127 = smul.addr 1, 4
    %s128 = scalar_lea.vmem %s1, %s127
    %129 = vst [vmem:[%s128] sm:%s126] %v124
    %s130 = scalar_lea.vmem [#allocation0], 40
    %v131 = vld [vmem:[%s130] sm:%s97]
    %s132 = sshll.u32 1, 1
    %s133 = ssub.s32 %s132, 1
    %s134 = smul.addr 1, 5
    %s135 = scalar_lea.vmem %s1, %s134
    %136 = vst [vmem:[%s135] sm:%s133] %v131
    %s137 = scalar_lea.vmem [#allocation0], 48
    %v138 = vld [vmem:[%s137] sm:%s97]
    %s139 = sshll.u32 1, 1
    %s140 = ssub.s32 %s139, 1
    %s141 = smul.addr 1, 6
    %s142 = scalar_lea.vmem %s1, %s141
    %143 = vst [vmem:[%s142] sm:%s140] %v138

// kernel: cae_m_forward.1
$region0: #{cae_m_forward.1}
  #allocation0 [shape = 'u32[]', space=smem, size = 0x4, offset = 0x4, fixed_abs, tag = 'smem constant byte address 0x4 - core index']
  #allocation1 [shape = 'u32[144,128]{1,0:T(1,128)}', space=vmem, size = 0x12000, scoped, tag = 'internal scratch']
  %s0 = inlined_call_operand.vmem [shape: f32[2,1,864], index: 0, kind: input, shape index: {}]
  %s1 = inlined_call_operand.vmem [shape: f32[1,864], index: 1, kind: input, shape index: {}]
  %s2 = inlined_call_operand.vmem [shape: f32[32,8], index: 2, kind: input, shape index: {}]
  %s3 = inlined_call_operand.vmem [shape: bf16[8,16], index: 3, kind: input, shape index: {}]
  %s4 = inlined_call_operand.vmem [shape: bf16[16,72], index: 4, kind: input, shape index: {}]
  %s5 = inlined_call_operand.vmem [shape: bf16[32,144], index: 5, kind: input, shape index: {}]
  %s6 = inlined_call_operand.vmem [shape: bf16[8,288], index: 6, kind: input, shape index: {}]
  %s7 = inlined_call_operand.vmem [shape: bf16[8,40], index: 7, kind: input, shape index: {}]
  %s8 = inlined_call_operand.vmem [shape: bf16[8,40], index: 8, kind: input, shape index: {}]
  %s9 = inlined_call_operand.vmem [shape: f32[2,1,864], index: 9, kind: output, shape index: {}]
  %s10 = sld [smem:[#allocation0]]
  $region69: #{cae_m_forward.1} parent=0
    _
  %s12 = ssub.s32 1, %s10
  %s13 = scalar_select 0, %s12, %s10
  loop: start=0, step=1, limit=4
  $region2: #{cae_m_forward.1} parent=0 // loop_pre_header
    _
  $region3: #{cae_m_forward.1} parent=0 // loop_header
    %s15 = sphi 0, %s19
    %p16 = scmp.ge.s32.totalorder %s15, 4
    %s25 = sphi 0, %s27
    %s28 = sphi 0, %s25
    %s29 = sphi 0, %s28
    %s45 = sphi 0, %s29
    %s49 = sphi 0, %s49
    %s51 = sphi 0, %s49
    %s52 = sphi 0, %s51
    %s66 = sphi 0, %s52
    %s70 = sphi 0, %s70
    %s72 = sphi 0, %s70
    %s73 = sphi 0, %s72
    %s87 = sphi 0, %s73
    %s91 = sphi 0, %s91
    %s93 = sphi 0, %s91
    %s94 = sphi 0, %s93
    %s108 = sphi 0, %s94
    %s112 = sphi 0, %s112
    %s114 = sphi 0, %s112
    %s115 = sphi 0, %s114
    %s129 = sphi 0, %s115
    %s133 = sphi 0, %s133
    %s135 = sphi 0, %s133
    %s136 = sphi 0, %s135
    %s150 = sphi 0, %s136
    %s154 = sphi 0, %s154
    %s156 = sphi 0, %s154
    %s157 = sphi 0, %s156
    %s171 = sphi 0, %s157
    %s175 = sphi 0, %s175
    %s177 = sphi 0, %s175
    %s178 = sphi 0, %s177
    %s192 = sphi 0, %s178
    %s196 = sphi 0, %s196
    %s198 = sphi 0, %s196
    %s199 = sphi 0, %s198
    %s213 = sphi 0, %s199
    %s219 = sphi 0, %s221
    %s222 = sphi 0, %s219
    %s223 = sphi 0, %s222
    %s239 = sphi 0, %s223
  $region4: #{cae_m_forward.1} parent=0 // loop_header_branch
    %18 = sbr.rel (%p16) target = $region8
  $region5: #{cae_m_forward.1} parent=0 // loop_body
    %s20 = ssub.s32 %s15, 1
    %s21 = ssub.s32 %s15, 2
    %s22 = sadd.s32 %s15, 1
    %s23 = ssub.s32 %s15, %s22
    %p24 = scmp.eq.s32.totalorder %s23, 0
    %s26 = sadd.s32 %s25, 1
    %s27 = scalar_select %p24, %s25, %s26
    %p30 = pneg %p24
    %p31 = scmp.eq.s32.totalorder %s15, 1
    %p32 = por %p30, %p31
    %p33 = scmp.ne.s32.totalorder %s25, %s28
    %p34 = scmp.eq.s32.totalorder %s15, 0
    %p35 = por %p33, %p34
    %p36 = scmp.ne.s32.totalorder %s25, %s28
    %p37 = scmp.eq.s32.totalorder %s20, 1
    %p38 = por %p36, %p37
    %p39 = scmp.ne.s32.totalorder %s28, %s29
    %p40 = scmp.eq.s32.totalorder %s20, 0
    %p41 = por %p39, %p40
    %p42 = scmp.ne.s32.totalorder %s28, %s29
    %p43 = scmp.eq.s32.totalorder %s21, 1
    %p44 = por %p42, %p43
    %p46 = scmp.ne.s32.totalorder %s29, %s45
    %p47 = scmp.eq.s32.totalorder %s21, 0
    %p48 = por %p46, %p47
    %s50 = sadd.s32 %s49, 1
    %p53 = scmp.eq.s32.totalorder %s15, 1
    %p54 = scmp.ne.s32.totalorder %s49, %s51
    %p55 = scmp.eq.s32.totalorder %s15, 0
    %p56 = por %p54, %p55
    %p57 = scmp.ne.s32.totalorder %s49, %s51
    %p58 = scmp.eq.s32.totalorder %s20, 1
    %p59 = por %p57, %p58
    %p60 = scmp.ne.s32.totalorder %s51, %s52
    %p61 = scmp.eq.s32.totalorder %s20, 0
    %p62 = por %p60, %p61
    %p63 = scmp.ne.s32.totalorder %s51, %s52
    %p64 = scmp.eq.s32.totalorder %s21, 1
    %p65 = por %p63, %p64
    %p67 = scmp.ne.s32.totalorder %s52, %s66
    %p68 = scmp.eq.s32.totalorder %s21, 0
    %p69 = por %p67, %p68
    %s71 = sadd.s32 %s70, 1
    %p74 = scmp.eq.s32.totalorder %s15, 1
    %p75 = scmp.ne.s32.totalorder %s70, %s72
    %p76 = scmp.eq.s32.totalorder %s15, 0
    %p77 = por %p75, %p76
    %p78 = scmp.ne.s32.totalorder %s70, %s72
    %p79 = scmp.eq.s32.totalorder %s20, 1
    %p80 = por %p78, %p79
    %p81 = scmp.ne.s32.totalorder %s72, %s73
    %p82 = scmp.eq.s32.totalorder %s20, 0
    %p83 = por %p81, %p82
    %p84 = scmp.ne.s32.totalorder %s72, %s73
    %p85 = scmp.eq.s32.totalorder %s21, 1
    %p86 = por %p84, %p85
    %p88 = scmp.ne.s32.totalorder %s73, %s87
    %p89 = scmp.eq.s32.totalorder %s21, 0
    %p90 = por %p88, %p89
    %s92 = sadd.s32 %s91, 1
    %p95 = scmp.eq.s32.totalorder %s15, 1
    %p96 = scmp.ne.s32.totalorder %s91, %s93
    %p97 = scmp.eq.s32.totalorder %s15, 0
    %p98 = por %p96, %p97
    %p99 = scmp.ne.s32.totalorder %s91, %s93
    %p100 = scmp.eq.s32.totalorder %s20, 1
    %p101 = por %p99, %p100
    %p102 = scmp.ne.s32.totalorder %s93, %s94
    %p103 = scmp.eq.s32.totalorder %s20, 0
    %p104 = por %p102, %p103
    %p105 = scmp.ne.s32.totalorder %s93, %s94
    %p106 = scmp.eq.s32.totalorder %s21, 1
    %p107 = por %p105, %p106
    %p109 = scmp.ne.s32.totalorder %s94, %s108
    %p110 = scmp.eq.s32.totalorder %s21, 0
    %p111 = por %p109, %p110
    %s113 = sadd.s32 %s112, 1
    %p116 = scmp.eq.s32.totalorder %s15, 1
    %p117 = scmp.ne.s32.totalorder %s112, %s114
    %p118 = scmp.eq.s32.totalorder %s15, 0
    %p119 = por %p117, %p118
    %p120 = scmp.ne.s32.totalorder %s112, %s114
    %p121 = scmp.eq.s32.totalorder %s20, 1
    %p122 = por %p120, %p121
    %p123 = scmp.ne.s32.totalorder %s114, %s115
    %p124 = scmp.eq.s32.totalorder %s20, 0
    %p125 = por %p123, %p124
    %p126 = scmp.ne.s32.totalorder %s114, %s115
    %p127 = scmp.eq.s32.totalorder %s21, 1
    %p128 = por %p126, %p127
    %p130 = scmp.ne.s32.totalorder %s115, %s129
    %p131 = scmp.eq.s32.totalorder %s21, 0
    %p132 = por %p130, %p131
    %s134 = sadd.s32 %s133, 1
    %p137 = scmp.eq.s32.totalorder %s15, 1
    %p138 = scmp.ne.s32.totalorder %s133, %s135
    %p139 = scmp.eq.s32.totalorder %s15, 0
    %p140 = por %p138, %p139
    %p141 = scmp.ne.s32.totalorder %s133, %s135
    %p142 = scmp.eq.s32.totalorder %s20, 1
    %p143 = por %p141, %p142
    %p144 = scmp.ne.s32.totalorder %s135, %s136
    %p145 = scmp.eq.s32.totalorder %s20, 0
    %p146 = por %p144, %p145
    %p147 = scmp.ne.s32.totalorder %s135, %s136
    %p148 = scmp.eq.s32.totalorder %s21, 1
    %p149 = por %p147, %p148
    %p151 = scmp.ne.s32.totalorder %s136, %s150
    %p152 = scmp.eq.s32.totalorder %s21, 0
    %p153 = por %p151, %p152
    %s155 = sadd.s32 %s154, 1
    %p158 = scmp.eq.s32.totalorder %s15, 1
    %p159 = scmp.ne.s32.totalorder %s154, %s156
    %p160 = scmp.eq.s32.totalorder %s15, 0
    %p161 = por %p159, %p160
    %p162 = scmp.ne.s32.totalorder %s154, %s156
    %p163 = scmp.eq.s32.totalorder %s20, 1
    %p164 = por %p162, %p163
    %p165 = scmp.ne.s32.totalorder %s156, %s157
    %p166 = scmp.eq.s32.totalorder %s20, 0
    %p167 = por %p165, %p166
    %p168 = scmp.ne.s32.totalorder %s156, %s157
    %p169 = scmp.eq.s32.totalorder %s21, 1
    %p170 = por %p168, %p169
    %p172 = scmp.ne.s32.totalorder %s157, %s171
    %p173 = scmp.eq.s32.totalorder %s21, 0
    %p174 = por %p172, %p173
    %s176 = sadd.s32 %s175, 1
    %p179 = scmp.eq.s32.totalorder %s15, 1
    %p180 = scmp.ne.s32.totalorder %s175, %s177
    %p181 = scmp.eq.s32.totalorder %s15, 0
    %p182 = por %p180, %p181
    %p183 = scmp.ne.s32.totalorder %s175, %s177
    %p184 = scmp.eq.s32.totalorder %s20, 1
    %p185 = por %p183, %p184
    %p186 = scmp.ne.s32.totalorder %s177, %s178
    %p187 = scmp.eq.s32.totalorder %s20, 0
    %p188 = por %p186, %p187
    %p189 = scmp.ne.s32.totalorder %s177, %s178
    %p190 = scmp.eq.s32.totalorder %s21, 1
    %p191 = por %p189, %p190
    %p193 = scmp.ne.s32.totalorder %s178, %s192
    %p194 = scmp.eq.s32.totalorder %s21, 0
    %p195 = por %p193, %p194
    %s197 = sadd.s32 %s196, 1
    %p200 = scmp.eq.s32.totalorder %s15, 1
    %p201 = scmp.ne.s32.totalorder %s196, %s198
    %p202 = scmp.eq.s32.totalorder %s15, 0
    %p203 = por %p201, %p202
    %p204 = scmp.ne.s32.totalorder %s196, %s198
    %p205 = scmp.eq.s32.totalorder %s20, 1
    %p206 = por %p204, %p205
    %p207 = scmp.ne.s32.totalorder %s198, %s199
    %p208 = scmp.eq.s32.totalorder %s20, 0
    %p209 = por %p207, %p208
    %p210 = scmp.ne.s32.totalorder %s198, %s199
    %p211 = scmp.eq.s32.totalorder %s21, 1
    %p212 = por %p210, %p211
    %p214 = scmp.ne.s32.totalorder %s199, %s213
    %p215 = scmp.eq.s32.totalorder %s21, 0
    %p216 = por %p214, %p215
    %s217 = ssub.s32 %s15, %s22
    %p218 = scmp.eq.s32.totalorder %s217, 0
    %s220 = sadd.s32 %s219, 1
    %s221 = scalar_select %p218, %s219, %s220
    %p224 = pneg %p218
    %p225 = scmp.eq.s32.totalorder %s15, 1
    %p226 = por %p224, %p225
    %p227 = scmp.ne.s32.totalorder %s219, %s222
    %p228 = scmp.eq.s32.totalorder %s15, 0
    %p229 = por %p227, %p228
    %p230 = scmp.ne.s32.totalorder %s219, %s222
    %p231 = scmp.eq.s32.totalorder %s20, 1
    %p232 = por %p230, %p231
    %p233 = scmp.ne.s32.totalorder %s222, %s223
    %p234 = scmp.eq.s32.totalorder %s20, 0
    %p235 = por %p233, %p234
    %p236 = scmp.ne.s32.totalorder %s222, %s223
    %p237 = scmp.eq.s32.totalorder %s21, 1
    %p238 = por %p236, %p237
    %p240 = scmp.ne.s32.totalorder %s223, %s239
    %p241 = scmp.eq.s32.totalorder %s21, 0
    %p242 = por %p240, %p241
    %p243 = scmp.le.s32.totalorder 1, %s15
    %p244 = scmp.lt.s32.totalorder %s15, 3
    %p245 = pnand %p243, %p244
    %p246 = pneg %p245
    // Predicated region
    $region9: #{cae_m_forward.1} parent=5 // pred_check
      _
    $region10: #{cae_m_forward.1} parent=5 // pred_check_branch
      %248 = sbr.rel (%p245) target = $region12
    $region11: #{cae_m_forward.1} parent=5 // pred_region
      %s249 = ssub.s32 %s15, 1
      // Predicated region
      $region13: #{cae_m_forward.1} parent=11 // pred_check
        %p250 = pneg %p62
      $region14: #{cae_m_forward.1} parent=11 // pred_check_branch
        %252 = sbr.rel (%p250) target = $region16
      $region15: #{cae_m_forward.1} parent=11 // pred_region
        _
      $region16: #{cae_m_forward.1} parent=11 // pred_fallthru
        _
      // Predicated region
      $region17: #{cae_m_forward.1} parent=11 // pred_check
        %p253 = pneg %p83
      $region18: #{cae_m_forward.1} parent=11 // pred_check_branch
        %255 = sbr.rel (%p253) target = $region20
      $region19: #{cae_m_forward.1} parent=11 // pred_region
        _
      $region20: #{cae_m_forward.1} parent=11 // pred_fallthru
        _
      // Predicated region
      $region21: #{cae_m_forward.1} parent=11 // pred_check
        %p256 = pneg %p104
      $region22: #{cae_m_forward.1} parent=11 // pred_check_branch
        %258 = sbr.rel (%p256) target = $region24
      $region23: #{cae_m_forward.1} parent=11 // pred_region
        _
      $region24: #{cae_m_forward.1} parent=11 // pred_fallthru
        _
      // Predicated region
      $region25: #{cae_m_forward.1} parent=11 // pred_check
        %p259 = pneg %p125
      $region26: #{cae_m_forward.1} parent=11 // pred_check_branch
        %261 = sbr.rel (%p259) target = $region28
      $region27: #{cae_m_forward.1} parent=11 // pred_region
        _
      $region28: #{cae_m_forward.1} parent=11 // pred_fallthru
        _
      // Predicated region
      $region29: #{cae_m_forward.1} parent=11 // pred_check
        %p262 = pneg %p146
      $region30: #{cae_m_forward.1} parent=11 // pred_check_branch
        %264 = sbr.rel (%p262) target = $region32
      $region31: #{cae_m_forward.1} parent=11 // pred_region
        _
      $region32: #{cae_m_forward.1} parent=11 // pred_fallthru
        _
      // Predicated region
      $region33: #{cae_m_forward.1} parent=11 // pred_check
        %p265 = pneg %p167
      $region34: #{cae_m_forward.1} parent=11 // pred_check_branch
        %267 = sbr.rel (%p265) target = $region36
      $region35: #{cae_m_forward.1} parent=11 // pred_region
        _
      $region36: #{cae_m_forward.1} parent=11 // pred_fallthru
        _
      // Predicated region
      $region37: #{cae_m_forward.1} parent=11 // pred_check
        %p268 = pneg %p188
      $region38: #{cae_m_forward.1} parent=11 // pred_check_branch
        %270 = sbr.rel (%p268) target = $region40
      $region39: #{cae_m_forward.1} parent=11 // pred_region
        _
      $region40: #{cae_m_forward.1} parent=11 // pred_fallthru
        _
      // Predicated region
      $region41: #{cae_m_forward.1} parent=11 // pred_check
        %p271 = pneg %p209
      $region42: #{cae_m_forward.1} parent=11 // pred_check_branch
        %273 = sbr.rel (%p271) target = $region44
      $region43: #{cae_m_forward.1} parent=11 // pred_region
        _
      $region44: #{cae_m_forward.1} parent=11 // pred_fallthru
        _
    $region12: #{cae_m_forward.1} parent=5 // pred_fallthru
      _
    %p274 = scmp.lt.s32.totalorder %s15, 2
    // Predicated region
    $region45: #{cae_m_forward.1} parent=5 // pred_check
      %p275 = pneg %p274
    $region46: #{cae_m_forward.1} parent=5 // pred_check_branch
      %277 = sbr.rel (%p275) target = $region48
    $region47: #{cae_m_forward.1} parent=5 // pred_region
      // Predicated region
      $region49: #{cae_m_forward.1} parent=47 // pred_check
        %p278 = pneg %p35
      $region50: #{cae_m_forward.1} parent=47 // pred_check_branch
        %280 = sbr.rel (%p278) target = $region52
      $region51: #{cae_m_forward.1} parent=47 // pred_region
        %p281 = scmp.lt.s32.totalorder %s15, 1
        %s282 = scalar_select %p281, %s15, 1
        %s283 = smul.addr %s282, 7
        %s284 = scalar_lea.vmem %s0, %s283
      $region52: #{cae_m_forward.1} parent=47 // pred_fallthru
        _
    $region48: #{cae_m_forward.1} parent=5 // pred_fallthru
      _
    %p285 = scmp.le.s32.totalorder 1, %s15
    %p286 = scmp.lt.s32.totalorder %s15, 3
    %p287 = pnand %p285, %p286
    %p288 = pneg %p287
    // Predicated region
    $region53: #{cae_m_forward.1} parent=5 // pred_check
      _
    $region54: #{cae_m_forward.1} parent=5 // pred_check_branch
      %290 = sbr.rel (%p287) target = $region56
    $region55: #{cae_m_forward.1} parent=5 // pred_region
      %s291 = ssub.s32 %s15, 1
      %p292 = scmp.lt.s32.totalorder %s20, 1
      %s293 = scalar_select %p292, %s20, 1
      %s294 = smul.addr %s293, 7
      %s295 = scalar_lea.vmem %s0, %s294
      %p296 = pneg %p41
      %p297 = pneg %p38
      %p298 = pneg %p62
      %p299 = pneg %p59
      %p300 = pneg %p83
      %p301 = pneg %p80
      %p302 = pneg %p104
      %p303 = pneg %p101
      %p304 = pneg %p125
      %p305 = pneg %p122
      %p306 = pneg %p146
      %p307 = pneg %p143
      %p308 = pneg %p167
      %p309 = pneg %p164
      %p310 = pneg %p188
      %p311 = pneg %p185
      %p312 = pneg %p209
      %p313 = pneg %p206
      %p314 = pneg %p235
      %p315 = pneg %p232
      %p316 = scmp.lt.s32.totalorder %s20, 1
      %s317 = scalar_select %p316, %s20, 1
      %s318 = smul.addr %s317, 7
      %s319 = scalar_lea.vmem %s9, %s318
      %p320 = scmp.lt.s32.totalorder %s20, 1
      %s321 = scalar_select %p320, %s20, 1
      %s322 = smul.addr %s321, 7
      %s323 = scalar_lea.vmem %s0, %s322
      %p324 = scmp.lt.s32.totalorder %s20, 1
      %s325 = scalar_select %p324, %s20, 1
      %s326 = smul.addr %s325, 7
      %s327 = scalar_lea.vmem %s9, %s326
      %v329 = vld [vmem:[%s1] sm:$0x7f]
      %v330 = vld [vmem:[%s323] sm:$0x7f]
      %v332 = vlaneseq
      %v333 = vshrl.u32 %v332, 7
      %v334 = vsub.s32 6, %v333
      %v335 = vrot.slane %v330, %v334
      %336 = vrot.lane.b32.xlu0 %v335, 51
      %v337 = vpop.permute.xlu0 %336
      %v339 = vlaneseq
      %v340 = vshrl.u32 %v339, 7
      %v341 = vsub.s32 0, %v340
      %v342 = vrot.slane %v330, %v341
      %v343 = vlaneseq
      %v344 = vshrl.u32 %v343, 7
      %v345 = vsub.s32 1, %v344
      %v346 = vrot.slane %v330, %v345
      %v347 = vlaneseq
      %v348 = vshrl.u32 %v347, 7
      %v349 = vsub.s32 2, %v348
      %v350 = vrot.slane %v330, %v349
      %v351 = vlaneseq
      %v352 = vshrl.u32 %v351, 7
      %v353 = vsub.s32 3, %v352
      %v354 = vrot.slane %v330, %v353
      %v355 = vlaneseq
      %v356 = vshrl.u32 %v355, 7
      %v357 = vsub.s32 4, %v356
      %v358 = vrot.slane %v330, %v357
      %v359 = vlaneseq
      %v360 = vshrl.u32 %v359, 7
      %v361 = vsub.s32 5, %v360
      %v362 = vrot.slane %v330, %v361
      %363 = vrot.lane.b32.xlu0 %v342, 19
      %v364 = vpop.permute.xlu0 %363
      %365 = vrot.lane.b32.xlu0 %v346, 19
      %v366 = vpop.permute.xlu0 %365
      %367 = vrot.lane.b32.xlu0 %v350, 19
      %v368 = vpop.permute.xlu0 %367
      %369 = vrot.lane.b32.xlu0 %v354, 19
      %v370 = vpop.permute.xlu0 %369
      %371 = vrot.lane.b32.xlu0 %v358, 19
      %v372 = vpop.permute.xlu0 %371
      %373 = vrot.lane.b32.xlu0 %v362, 19
      %v374 = vpop.permute.xlu0 %373
      %375 = vrot.lane.b32.xlu0 %v335, 19
      %v376 = vpop.permute.xlu0 %375
      %vm377 = vcmask 154624
      %v378 = vsel %vm377, %v364, %v366
      %v379 = vsel %vm377, %v366, %v368
      %v380 = vsel %vm377, %v368, %v370
      %v381 = vsel %vm377, %v370, %v372
      %v382 = vsel %vm377, %v372, %v374
      %v383 = vsel %vm377, %v374, %v376
      %v391 = vsel %vm377, %v337, %v364
      %392 = vrot.lane.b32.xlu0 %v335, 50
      %v393 = vpop.permute.xlu0 %392
      %395 = vrot.lane.b32.xlu0 %v342, 18
      %v396 = vpop.permute.xlu0 %395
      %397 = vrot.lane.b32.xlu0 %v346, 18
      %v398 = vpop.permute.xlu0 %397
      %399 = vrot.lane.b32.xlu0 %v350, 18
      %v400 = vpop.permute.xlu0 %399
      %401 = vrot.lane.b32.xlu0 %v354, 18
      %v402 = vpop.permute.xlu0 %401
      %403 = vrot.lane.b32.xlu0 %v358, 18
      %v404 = vpop.permute.xlu0 %403
      %405 = vrot.lane.b32.xlu0 %v362, 18
      %v406 = vpop.permute.xlu0 %405
      %407 = vrot.lane.b32.xlu0 %v335, 18
      %v408 = vpop.permute.xlu0 %407
      %vm409 = vcmask 146432
      %v410 = vsel %vm409, %v396, %v398
      %v411 = vsel %vm409, %v398, %v400
      %v412 = vsel %vm409, %v400, %v402
      %v413 = vsel %vm409, %v402, %v404
      %v414 = vsel %vm409, %v404, %v406
      %v415 = vsel %vm409, %v406, %v408
      %v417 = vsel %vm409, %v393, %v396
      %418 = vrot.lane.b32.xlu0 %v335, 49
      %v419 = vpop.permute.xlu0 %418
      %421 = vrot.lane.b32.xlu0 %v342, 17
      %v422 = vpop.permute.xlu0 %421
      %423 = vrot.lane.b32.xlu0 %v346, 17
      %v424 = vpop.permute.xlu0 %423
      %425 = vrot.lane.b32.xlu0 %v350, 17
      %v426 = vpop.permute.xlu0 %425
      %427 = vrot.lane.b32.xlu0 %v354, 17
      %v428 = vpop.permute.xlu0 %427
      %429 = vrot.lane.b32.xlu0 %v358, 17
      %v430 = vpop.permute.xlu0 %429
      %431 = vrot.lane.b32.xlu0 %v362, 17
      %v432 = vpop.permute.xlu0 %431
      %433 = vrot.lane.b32.xlu0 %v335, 17
      %v434 = vpop.permute.xlu0 %433
      %vm435 = vcmask 138240
      %v436 = vsel %vm435, %v422, %v424
      %v437 = vsel %vm435, %v424, %v426
      %v438 = vsel %vm435, %v426, %v428
      %v439 = vsel %vm435, %v428, %v430
      %v440 = vsel %vm435, %v430, %v432
      %v441 = vsel %vm435, %v432, %v434
      %v443 = vsel %vm435, %v419, %v422
      %444 = vrot.lane.b32.xlu0 %v335, 33
      %v445 = vpop.permute.xlu0 %444
      %447 = vrot.lane.b32.xlu0 %v342, 1
      %v448 = vpop.permute.xlu0 %447
      %449 = vrot.lane.b32.xlu0 %v346, 1
      %v450 = vpop.permute.xlu0 %449
      %451 = vrot.lane.b32.xlu0 %v350, 1
      %v452 = vpop.permute.xlu0 %451
      %453 = vrot.lane.b32.xlu0 %v354, 1
      %v454 = vpop.permute.xlu0 %453
      %455 = vrot.lane.b32.xlu0 %v358, 1
      %v456 = vpop.permute.xlu0 %455
      %457 = vrot.lane.b32.xlu0 %v362, 1
      %v458 = vpop.permute.xlu0 %457
      %459 = vrot.lane.b32.xlu0 %v335, 1
      %v460 = vpop.permute.xlu0 %459
      %vm461 = vcmask 7168
      %v462 = vsel %vm461, %v448, %v450
      %v463 = vsel %vm461, %v450, %v452
      %v464 = vsel %vm461, %v452, %v454
      %v465 = vsel %vm461, %v454, %v456
      %v466 = vsel %vm461, %v456, %v458
      %v467 = vsel %vm461, %v458, %v460
      %v469 = vsel %vm461, %v445, %v448
      %470 = vrot.lane.b32.xlu0 %v342, 127
      %v471 = vpop.permute.xlu0 %470
      %472 = vrot.lane.b32.xlu0 %v346, 127
      %v473 = vpop.permute.xlu0 %472
      %474 = vrot.lane.b32.xlu0 %v350, 127
      %v475 = vpop.permute.xlu0 %474
      %476 = vrot.lane.b32.xlu0 %v354, 127
      %v477 = vpop.permute.xlu0 %476
      %478 = vrot.lane.b32.xlu0 %v358, 127
      %v479 = vpop.permute.xlu0 %478
      %480 = vrot.lane.b32.xlu0 %v362, 127
      %v481 = vpop.permute.xlu0 %480
      %482 = vrot.lane.b32.xlu0 %v335, 127
      %v483 = vpop.permute.xlu0 %482
      %vm484 = vcmask 1039360
      %v485 = vsel %vm484, %v471, %v473
      %v486 = vsel %vm484, %v473, %v475
      %v487 = vsel %vm484, %v475, %v477
      %v488 = vsel %vm484, %v477, %v479
      %v489 = vsel %vm484, %v479, %v481
      %v490 = vsel %vm484, %v481, %v483
      %492 = vrot.lane.b32.xlu0 %v342, 95
      %v493 = vpop.permute.xlu0 %492
      %vm495 = vcmask 777216
      %v496 = vsel %vm495, %v483, %v493
      %497 = vrot.lane.b32.xlu0 %v342, 111
      %v498 = vpop.permute.xlu0 %497
      %499 = vrot.lane.b32.xlu0 %v346, 111
      %v500 = vpop.permute.xlu0 %499
      %501 = vrot.lane.b32.xlu0 %v350, 111
      %v502 = vpop.permute.xlu0 %501
      %503 = vrot.lane.b32.xlu0 %v354, 111
      %v504 = vpop.permute.xlu0 %503
      %505 = vrot.lane.b32.xlu0 %v358, 111
      %v506 = vpop.permute.xlu0 %505
      %507 = vrot.lane.b32.xlu0 %v362, 111
      %v508 = vpop.permute.xlu0 %507
      %509 = vrot.lane.b32.xlu0 %v335, 111
      %v510 = vpop.permute.xlu0 %509
      %vm511 = vcmask 908288
      %v512 = vsel %vm511, %v498, %v500
      %v513 = vsel %vm511, %v500, %v502
      %v514 = vsel %vm511, %v502, %v504
      %v515 = vsel %vm511, %v504, %v506
      %v516 = vsel %vm511, %v506, %v508
      %v517 = vsel %vm511, %v508, %v510
      %519 = vrot.lane.b32.xlu0 %v342, 79
      %v520 = vpop.permute.xlu0 %519
      %vm522 = vcmask 646144
      %v523 = vsel %vm522, %v510, %v520
      %524 = vrot.lane.b32.xlu0 %v342, 110
      %v525 = vpop.permute.xlu0 %524
      %526 = vrot.lane.b32.xlu0 %v346, 110
      %v527 = vpop.permute.xlu0 %526
      %528 = vrot.lane.b32.xlu0 %v350, 110
      %v529 = vpop.permute.xlu0 %528
      %530 = vrot.lane.b32.xlu0 %v354, 110
      %v531 = vpop.permute.xlu0 %530
      %532 = vrot.lane.b32.xlu0 %v358, 110
      %v533 = vpop.permute.xlu0 %532
      %534 = vrot.lane.b32.xlu0 %v362, 110
      %v535 = vpop.permute.xlu0 %534
      %536 = vrot.lane.b32.xlu0 %v335, 110
      %v537 = vpop.permute.xlu0 %536
      %vm538 = vcmask 900096
      %v539 = vsel %vm538, %v525, %v527
      %v540 = vsel %vm538, %v527, %v529
      %v541 = vsel %vm538, %v529, %v531
      %v542 = vsel %vm538, %v531, %v533
      %v543 = vsel %vm538, %v533, %v535
      %v544 = vsel %vm538, %v535, %v537
      %546 = vrot.lane.b32.xlu0 %v342, 78
      %v547 = vpop.permute.xlu0 %546
      %vm549 = vcmask 637952
      %v550 = vsel %vm549, %v537, %v547
      %551 = vrot.lane.b32.xlu0 %v342, 109
      %v552 = vpop.permute.xlu0 %551
      %553 = vrot.lane.b32.xlu0 %v346, 109
      %v554 = vpop.permute.xlu0 %553
      %555 = vrot.lane.b32.xlu0 %v350, 109
      %v556 = vpop.permute.xlu0 %555
      %557 = vrot.lane.b32.xlu0 %v354, 109
      %v558 = vpop.permute.xlu0 %557
      %559 = vrot.lane.b32.xlu0 %v358, 109
      %v560 = vpop.permute.xlu0 %559
      %561 = vrot.lane.b32.xlu0 %v362, 109
      %v562 = vpop.permute.xlu0 %561
      %563 = vrot.lane.b32.xlu0 %v335, 109
      %v564 = vpop.permute.xlu0 %563
      %vm565 = vcmask 891904
      %v566 = vsel %vm565, %v552, %v554
      %v567 = vsel %vm565, %v554, %v556
      %v568 = vsel %vm565, %v556, %v558
      %v569 = vsel %vm565, %v558, %v560
      %v570 = vsel %vm565, %v560, %v562
      %v571 = vsel %vm565, %v562, %v564
      %579 = vrot.lane.b32.xlu0 %v342, 77
      %v580 = vpop.permute.xlu0 %579
      %vm582 = vcmask 629760
      %v583 = vsel %vm582, %v564, %v580
      %v585 = vrot.slane %v417, 7
      %v586 = vrot.slane %v410, 7
      %v587 = vrot.slane %v411, 7
      %v588 = vrot.slane %v412, 7
      %v589 = vrot.slane %v413, 7
      %v590 = vrot.slane %v414, 7
      %v591 = vrot.slane %v415, 7
      %v600 = vrot.slane %v443, 6
      %v601 = vrot.slane %v436, 6
      %v602 = vrot.slane %v437, 6
      %v603 = vrot.slane %v438, 6
      %v604 = vrot.slane %v439, 6
      %v605 = vrot.slane %v440, 6
      %v606 = vrot.slane %v441, 6
      %v615 = vrot.slane %v469, 5
      %v616 = vrot.slane %v462, 5
      %v617 = vrot.slane %v463, 5
      %v618 = vrot.slane %v464, 5
      %v619 = vrot.slane %v465, 5
      %v620 = vrot.slane %v466, 5
      %v621 = vrot.slane %v467, 5
      %v637 = vrot.slane %v485, 3
      %v638 = vrot.slane %v486, 3
      %v639 = vrot.slane %v487, 3
      %v640 = vrot.slane %v488, 3
      %v641 = vrot.slane %v489, 3
      %v642 = vrot.slane %v490, 3
      %v643 = vrot.slane %v496, 3
      %v652 = vrot.slane %v512, 2
      %v653 = vrot.slane %v513, 2
      %v654 = vrot.slane %v514, 2
      %v655 = vrot.slane %v515, 2
      %v656 = vrot.slane %v516, 2
      %v657 = vrot.slane %v517, 2
      %v658 = vrot.slane %v523, 2
      %v667 = vrot.slane %v539, 1
      %v668 = vrot.slane %v540, 1
      %v669 = vrot.slane %v541, 1
      %v670 = vrot.slane %v542, 1
      %v671 = vrot.slane %v543, 1
      %v672 = vrot.slane %v544, 1
      %v673 = vrot.slane %v550, 1
      %vm681 = vcmask 1040384
      %v682 = vsel %vm681, %v391, %v585
      %v683 = vsel %vm681, %v378, %v586
      %v684 = vsel %vm681, %v379, %v587
      %v685 = vsel %vm681, %v380, %v588
      %v686 = vsel %vm681, %v381, %v589
      %v687 = vsel %vm681, %v382, %v590
      %v688 = vsel %vm681, %v383, %v591
      %vm689 = vcmask 1041408
      %v690 = vsel %vm689, %v682, %v600
      %v691 = vsel %vm689, %v683, %v601
      %v692 = vsel %vm689, %v684, %v602
      %v693 = vsel %vm689, %v685, %v603
      %v694 = vsel %vm689, %v686, %v604
      %v695 = vsel %vm689, %v687, %v605
      %v696 = vsel %vm689, %v688, %v606
      %vm697 = vcmask 1042432
      %v698 = vsel %vm697, %v690, %v615
      %v699 = vsel %vm697, %v691, %v616
      %v700 = vsel %vm697, %v692, %v617
      %v701 = vsel %vm697, %v693, %v618
      %v702 = vsel %vm697, %v694, %v619
      %v703 = vsel %vm697, %v695, %v620
      %v704 = vsel %vm697, %v696, %v621
      %vm705 = vcmask 1043456
      %v706 = vsel %vm705, %v698, %v342
      %v707 = vsel %vm705, %v699, %v346
      %v708 = vsel %vm705, %v700, %v350
      %v709 = vsel %vm705, %v701, %v354
      %v710 = vsel %vm705, %v702, %v358
      %v711 = vsel %vm705, %v703, %v362
      %v712 = vsel %vm705, %v704, %v335
      %vm713 = vcmask 1044480
      %v714 = vsel %vm713, %v706, %v637
      %v715 = vsel %vm713, %v707, %v638
      %v716 = vsel %vm713, %v708, %v639
      %v717 = vsel %vm713, %v709, %v640
      %v718 = vsel %vm713, %v710, %v641
      %v719 = vsel %vm713, %v711, %v642
      %v720 = vsel %vm713, %v712, %v643
      %vm721 = vcmask 1045504
      %v722 = vsel %vm721, %v714, %v652
      %v723 = vsel %vm721, %v715, %v653
      %v724 = vsel %vm721, %v716, %v654
      %v725 = vsel %vm721, %v717, %v655
      %v726 = vsel %vm721, %v718, %v656
      %v727 = vsel %vm721, %v719, %v657
      %v728 = vsel %vm721, %v720, %v658
      %vm729 = vcmask 1046528
      %v730 = vsel %vm729, %v722, %v667
      %v731 = vsel %vm729, %v723, %v668
      %v732 = vsel %vm729, %v724, %v669
      %v733 = vsel %vm729, %v725, %v670
      %v734 = vsel %vm729, %v726, %v671
      %v735 = vsel %vm729, %v727, %v672
      %v736 = vsel %vm729, %v728, %v673
      %v737 = vsel %vm681, %v566, 0.0
      %v738 = vsel %vm681, %v567, 0.0
      %v739 = vsel %vm681, %v568, 0.0
      %v740 = vsel %vm681, %v569, 0.0
      %v741 = vsel %vm681, %v570, 0.0
      %v742 = vsel %vm681, %v571, 0.0
      %v743 = vsel %vm681, %v583, 0.0
      %v744 = vpack.c.bf16 %v737, %v730
      %v745 = vpack.c.bf16 %v738, %v731
      %v746 = vpack.c.bf16 %v739, %v732
      %v747 = vpack.c.bf16 %v740, %v733
      %v748 = vpack.c.bf16 %v741, %v734
      %v749 = vpack.c.bf16 %v742, %v735
      %v750 = vpack.c.bf16 %v743, %v736
      %v751 = vld [vmem:[%s3] sm:$0xf]
      %v752 = vld [vmem:[%s2] sm:$0xff]
      %754 = vset.pattern.permute.xlu0 0
      %755 = vperm.xlu0 %754, %v752
      %v756 = vpop.permute.xlu0 %755
      %vm758 = vcmask 130048
      %v760 = vsel %vm758, %v751, 0
      %762 = vmatprep.subr.bf16.mxu0 0
      %763 = vmatpush1.bf16.msra.mxu0 0
      %764 = vmatprep.subr.bf16.mxu0 0
      %765 = vmatpush1.bf16.msra.mxu0 0
      %766 = vmatprep.subr.bf16.mxu0 0
      %767 = vmatpush1.bf16.msra.mxu0 0
      %768 = vmatprep.subr.bf16.mxu0 0
      %769 = vmatpush1.bf16.msra.mxu0 0
      %770 = vmatprep.subr.bf16.mxu0 0
      %771 = vmatpush1.bf16.msra.mxu0 0
      %772 = vmatprep.subr.bf16.mxu0 0
      %773 = vmatpush1.bf16.msra.mxu0 0
      %774 = vmatprep.subr.bf16.mxu0 0
      %775 = vmatpush1.bf16.msra.mxu0 0
      %776 = vmatprep.subr.bf16.mxu0 %v745
      %777 = vmatpush1.bf16.msra.mxu0 %v744
      %778 = vmatprep.subr.bf16.mxu0 0
      %779 = vmatpush2.bf16.msra.mxu0 0
      %780 = vmatprep.subr.bf16.mxu0 0
      %781 = vmatpush2.bf16.msra.mxu0 0
      %782 = vmatprep.subr.bf16.mxu0 0
      %783 = vmatpush2.bf16.msra.mxu0 0
      %784 = vmatprep.subr.bf16.mxu0 0
      %785 = vmatpush2.bf16.msra.mxu0 0
      %786 = vmatprep.subr.bf16.mxu0 0
      %787 = vmatpush2.bf16.msra.mxu0 0
      %788 = vmatprep.subr.bf16.mxu0 0
      %789 = vmatpush2.bf16.msra.mxu0 0
      %790 = vmatprep.subr.bf16.mxu0 0
      %791 = vmatpush2.bf16.msra.mxu0 0
      %792 = vmatprep.subr.bf16.mxu0 0
      %793 = vmatpush2.bf16.msra.mxu0 0
      %794 = vmatprep.mubr.bf16.mxu0 0
      %795 = vmatmul.mubr.bf16.gmra.mxu0 %v760
      %v796 = vpop.f32.mrf.mxu0
      %v797 = vadd.f32 %v756, %v796
      %v798 = vpop.f32.mrf.mxu0
      %v799 = vadd.f32 %v756, %v798
      %v800 = vpop.f32.mrf.mxu0
      %v801 = vpop.f32.mrf.mxu0
      %802 = vdwg.mxu0
      %803 = vmatprep.subr.bf16.mxu0 0
      %804 = vmatpush1.bf16.msra.mxu0 0
      %805 = vmatprep.subr.bf16.mxu0 0
      %806 = vmatpush1.bf16.msra.mxu0 0
      %807 = vmatprep.subr.bf16.mxu0 0
      %808 = vmatpush1.bf16.msra.mxu0 0
      %809 = vmatprep.subr.bf16.mxu0 0
      %810 = vmatpush1.bf16.msra.mxu0 0
      %811 = vmatprep.subr.bf16.mxu0 0
      %812 = vmatpush1.bf16.msra.mxu0 0
      %813 = vmatprep.subr.bf16.mxu0 0
      %814 = vmatpush1.bf16.msra.mxu0 0
      %815 = vmatprep.subr.bf16.mxu0 0
      %816 = vmatpush1.bf16.msra.mxu0 0
      %817 = vmatprep.subr.bf16.mxu0 %v747
      %818 = vmatpush1.bf16.msra.mxu0 %v746
      %819 = vmatprep.subr.bf16.mxu0 0
      %820 = vmatpush2.bf16.msra.mxu0 0
      %821 = vmatprep.subr.bf16.mxu0 0
      %822 = vmatpush2.bf16.msra.mxu0 0
      %823 = vmatprep.subr.bf16.mxu0 0
      %824 = vmatpush2.bf16.msra.mxu0 0
      %825 = vmatprep.subr.bf16.mxu0 0
      %826 = vmatpush2.bf16.msra.mxu0 0
      %827 = vmatprep.subr.bf16.mxu0 0
      %828 = vmatpush2.bf16.msra.mxu0 0
      %829 = vmatprep.subr.bf16.mxu0 0
      %830 = vmatpush2.bf16.msra.mxu0 0
      %831 = vmatprep.subr.bf16.mxu0 0
      %832 = vmatpush2.bf16.msra.mxu0 0
      %833 = vmatprep.subr.bf16.mxu0 0
      %834 = vmatpush2.bf16.msra.mxu0 0
      %835 = vmatprep.mubr.bf16.mxu0 0
      %836 = vmatmul.mubr.bf16.gmra.mxu0 %v760
      %v837 = vpop.f32.mrf.mxu0
      %v838 = vadd.f32 %v756, %v837
      %v839 = vpop.f32.mrf.mxu0
      %v840 = vadd.f32 %v756, %v839
      %v841 = vpop.f32.mrf.mxu0
      %v842 = vpop.f32.mrf.mxu0
      %843 = vdwg.mxu0
      %844 = vmatprep.subr.bf16.mxu0 0
      %845 = vmatpush1.bf16.msra.mxu0 0
      %846 = vmatprep.subr.bf16.mxu0 0
      %847 = vmatpush1.bf16.msra.mxu0 0
      %848 = vmatprep.subr.bf16.mxu0 0
      %849 = vmatpush1.bf16.msra.mxu0 0
      %850 = vmatprep.subr.bf16.mxu0 0
      %851 = vmatpush1.bf16.msra.mxu0 0
      %852 = vmatprep.subr.bf16.mxu0 0
      %853 = vmatpush1.bf16.msra.mxu0 0
      %854 = vmatprep.subr.bf16.mxu0 0
      %855 = vmatpush1.bf16.msra.mxu0 0
      %856 = vmatprep.subr.bf16.mxu0 0
      %857 = vmatpush1.bf16.msra.mxu0 0
      %858 = vmatprep.subr.bf16.mxu0 %v749
      %859 = vmatpush1.bf16.msra.mxu0 %v748
      %860 = vmatprep.subr.bf16.mxu0 0
      %861 = vmatpush2.bf16.msra.mxu0 0
      %862 = vmatprep.subr.bf16.mxu0 0
      %863 = vmatpush2.bf16.msra.mxu0 0
      %864 = vmatprep.subr.bf16.mxu0 0
      %865 = vmatpush2.bf16.msra.mxu0 0
      %866 = vmatprep.subr.bf16.mxu0 0
      %867 = vmatpush2.bf16.msra.mxu0 0
      %868 = vmatprep.subr.bf16.mxu0 0
      %869 = vmatpush2.bf16.msra.mxu0 0
      %870 = vmatprep.subr.bf16.mxu0 0
      %871 = vmatpush2.bf16.msra.mxu0 0
      %872 = vmatprep.subr.bf16.mxu0 0
      %873 = vmatpush2.bf16.msra.mxu0 0
      %874 = vmatprep.subr.bf16.mxu0 0
      %875 = vmatpush2.bf16.msra.mxu0 0
      %876 = vmatprep.mubr.bf16.mxu0 0
      %877 = vmatmul.mubr.bf16.gmra.mxu0 %v760
      %v878 = vpop.f32.mrf.mxu0
      %v879 = vadd.f32 %v756, %v878
      %v880 = vpop.f32.mrf.mxu0
      %v881 = vadd.f32 %v756, %v880
      %v882 = vpop.f32.mrf.mxu0
      %v883 = vpop.f32.mrf.mxu0
      %884 = vdwg.mxu0
      %885 = vmatprep.subr.bf16.mxu0 0
      %886 = vmatpush1.bf16.msra.mxu0 0
      %887 = vmatprep.subr.bf16.mxu0 0
      %888 = vmatpush1.bf16.msra.mxu0 0
      %889 = vmatprep.subr.bf16.mxu0 0
      %890 = vmatpush1.bf16.msra.mxu0 0
      %891 = vmatprep.subr.bf16.mxu0 0
      %892 = vmatpush1.bf16.msra.mxu0 0
      %893 = vmatprep.subr.bf16.mxu0 0
      %894 = vmatpush1.bf16.msra.mxu0 0
      %895 = vmatprep.subr.bf16.mxu0 0
      %896 = vmatpush1.bf16.msra.mxu0 0
      %897 = vmatprep.subr.bf16.mxu0 0
      %898 = vmatpush1.bf16.msra.mxu0 0
      %899 = vmatprep.subr.bf16.mxu0 0
      %900 = vmatpush1.bf16.msra.mxu0 %v750
      %901 = vmatprep.subr.bf16.mxu0 0
      %902 = vmatpush2.bf16.msra.mxu0 0
      %903 = vmatprep.subr.bf16.mxu0 0
      %904 = vmatpush2.bf16.msra.mxu0 0
      %905 = vmatprep.subr.bf16.mxu0 0
      %906 = vmatpush2.bf16.msra.mxu0 0
      %907 = vmatprep.subr.bf16.mxu0 0
      %908 = vmatpush2.bf16.msra.mxu0 0
      %909 = vmatprep.subr.bf16.mxu0 0
      %910 = vmatpush2.bf16.msra.mxu0 0
      %911 = vmatprep.subr.bf16.mxu0 0
      %912 = vmatpush2.bf16.msra.mxu0 0
      %913 = vmatprep.subr.bf16.mxu0 0
      %914 = vmatpush2.bf16.msra.mxu0 0
      %915 = vmatprep.subr.bf16.mxu0 0
      %916 = vmatpush2.bf16.msra.mxu0 0
      %917 = vmatprep.mubr.bf16.mxu0 0
      %918 = vmatmul.mubr.bf16.gmra.mxu0 %v760
      %v919 = vpop.f32.mrf.mxu0
      %v920 = vadd.f32 %v756, %v919
      %v921 = vpop.f32.mrf.mxu0
      %v922 = vpop.f32.mrf.mxu0
      %v923 = vpop.f32.mrf.mxu0
      %924 = vdwg.mxu0
      %v925 = vand.u32 2147483647, %v797
      %v926 = vand.u32 2147483647, %v799
      %v927 = vand.u32 2147483647, %v838
      %v928 = vand.u32 2147483647, %v840
      %v929 = vand.u32 2147483647, %v879
      %v930 = vand.u32 2147483647, %v881
      %v931 = vand.u32 2147483647, %v920
      %v932 = vsub.f32 0.0, %v925
      %v933 = vsub.f32 0.0, %v926
      %v934 = vsub.f32 0.0, %v927
      %v935 = vsub.f32 0.0, %v928
      %v936 = vsub.f32 0.0, %v929
      %v937 = vsub.f32 0.0, %v930
      %v938 = vsub.f32 0.0, %v931
      %v939 = vmul.f32 %v932, 1.442695
      %v940 = vpow.pop %v939
      %v941 = vmul.f32 %v933, 1.442695
      %v942 = vpow.pop %v941
      %v943 = vmul.f32 %v934, 1.442695
      %v944 = vpow.pop %v943
      %v945 = vmul.f32 %v935, 1.442695
      %v946 = vpow.pop %v945
      %v947 = vmul.f32 %v936, 1.442695
      %v948 = vpow.pop %v947
      %v949 = vmul.f32 %v937, 1.442695
      %v950 = vpow.pop %v949
      %v951 = vmul.f32 %v938, 1.442695
      %v952 = vpow.pop %v951
      %v953 = vadd.f32 %v940, 1.0
      %v954 = vadd.f32 %v942, 1.0
      %v955 = vadd.f32 %v944, 1.0
      %v956 = vadd.f32 %v946, 1.0
      %v957 = vadd.f32 %v948, 1.0
      %v958 = vadd.f32 %v950, 1.0
      %v959 = vadd.f32 %v952, 1.0
      %v960 = vrcp.pop %v953
      %v961 = vmul.f32 1.0, %v960
      %v962 = vrcp.pop %v954
      %v963 = vmul.f32 1.0, %v962
      %v964 = vrcp.pop %v955
      %v965 = vmul.f32 1.0, %v964
      %v966 = vrcp.pop %v956
      %v967 = vmul.f32 1.0, %v966
      %v968 = vrcp.pop %v957
      %v969 = vmul.f32 1.0, %v968
      %v970 = vrcp.pop %v958
      %v971 = vmul.f32 1.0, %v970
      %v972 = vrcp.pop %v959
      %v973 = vmul.f32 1.0, %v972
      %vm974 = vcmp.ge.f32.partialorder %v797, 0.0
      %vm975 = vcmp.ge.f32.partialorder %v799, 0.0
      %vm976 = vcmp.ge.f32.partialorder %v838, 0.0
      %vm977 = vcmp.ge.f32.partialorder %v840, 0.0
      %vm978 = vcmp.ge.f32.partialorder %v879, 0.0
      %vm979 = vcmp.ge.f32.partialorder %v881, 0.0
      %vm980 = vcmp.ge.f32.partialorder %v920, 0.0
      %v981 = vsub.f32 1.0, %v961
      %v982 = vsub.f32 1.0, %v963
      %v983 = vsub.f32 1.0, %v965
      %v984 = vsub.f32 1.0, %v967
      %v985 = vsub.f32 1.0, %v969
      %v986 = vsub.f32 1.0, %v971
      %v987 = vsub.f32 1.0, %v973
      %v988 = vsel %vm974, %v961, %v981
      %v989 = vsel %vm975, %v963, %v982
      %v990 = vsel %vm976, %v965, %v983
      %v991 = vsel %vm977, %v967, %v984
      %v992 = vsel %vm978, %v969, %v985
      %v993 = vsel %vm979, %v971, %v986
      %v994 = vsel %vm980, %v973, %v987
      %v996 = vlaneseq
      %v997 = vshrl.u32 %v996, 7
      %v998 = vsub.s32 0, %v997
      %v999 = vrot.slane %v329, %v998
      %v1000 = vlaneseq
      %v1001 = vshrl.u32 %v1000, 7
      %v1002 = vsub.s32 1, %v1001
      %v1003 = vrot.slane %v329, %v1002
      %v1004 = vlaneseq
      %v1005 = vshrl.u32 %v1004, 7
      %v1006 = vsub.s32 2, %v1005
      %v1007 = vrot.slane %v329, %v1006
      %v1008 = vlaneseq
      %v1009 = vshrl.u32 %v1008, 7
      %v1010 = vsub.s32 3, %v1009
      %v1011 = vrot.slane %v329, %v1010
      %v1012 = vlaneseq
      %v1013 = vshrl.u32 %v1012, 7
      %v1014 = vsub.s32 4, %v1013
      %v1015 = vrot.slane %v329, %v1014
      %v1016 = vlaneseq
      %v1017 = vshrl.u32 %v1016, 7
      %v1018 = vsub.s32 5, %v1017
      %v1019 = vrot.slane %v329, %v1018
      %v1020 = vlaneseq
      %v1021 = vshrl.u32 %v1020, 7
      %v1022 = vsub.s32 6, %v1021
      %v1023 = vrot.slane %v329, %v1022
      %v1031 = vmul.f32 %v988, %v999
      %v1032 = vmul.f32 %v989, %v1003
      %v1033 = vmul.f32 %v990, %v1007
      %v1034 = vmul.f32 %v991, %v1011
      %v1035 = vmul.f32 %v992, %v1015
      %v1036 = vmul.f32 %v993, %v1019
      %v1037 = vmul.f32 %v994, %v1023
      %1039 = vrot.lane.b32.xlu0 %v1037, 51
      %v1040 = vpop.permute.xlu0 %1039
      %1048 = vrot.lane.b32.xlu0 %v1031, 19
      %v1049 = vpop.permute.xlu0 %1048
      %1050 = vrot.lane.b32.xlu0 %v1032, 19
      %v1051 = vpop.permute.xlu0 %1050
      %1052 = vrot.lane.b32.xlu0 %v1033, 19
      %v1053 = vpop.permute.xlu0 %1052
      %1054 = vrot.lane.b32.xlu0 %v1034, 19
      %v1055 = vpop.permute.xlu0 %1054
      %1056 = vrot.lane.b32.xlu0 %v1035, 19
      %v1057 = vpop.permute.xlu0 %1056
      %1058 = vrot.lane.b32.xlu0 %v1036, 19
      %v1059 = vpop.permute.xlu0 %1058
      %1060 = vrot.lane.b32.xlu0 %v1037, 19
      %v1061 = vpop.permute.xlu0 %1060
      %v1062 = vsel %vm377, %v1049, %v1051
      %v1063 = vsel %vm377, %v1051, %v1053
      %v1064 = vsel %vm377, %v1053, %v1055
      %v1065 = vsel %vm377, %v1055, %v1057
      %v1066 = vsel %vm377, %v1057, %v1059
      %v1067 = vsel %vm377, %v1059, %v1061
      %v1075 = vsel %vm377, %v1040, %v1049
      %1076 = vrot.lane.b32.xlu0 %v1037, 50
      %v1077 = vpop.permute.xlu0 %1076
      %1079 = vrot.lane.b32.xlu0 %v1031, 18
      %v1080 = vpop.permute.xlu0 %1079
      %1081 = vrot.lane.b32.xlu0 %v1032, 18
      %v1082 = vpop.permute.xlu0 %1081
      %1083 = vrot.lane.b32.xlu0 %v1033, 18
      %v1084 = vpop.permute.xlu0 %1083
      %1085 = vrot.lane.b32.xlu0 %v1034, 18
      %v1086 = vpop.permute.xlu0 %1085
      %1087 = vrot.lane.b32.xlu0 %v1035, 18
      %v1088 = vpop.permute.xlu0 %1087
      %1089 = vrot.lane.b32.xlu0 %v1036, 18
      %v1090 = vpop.permute.xlu0 %1089
      %1091 = vrot.lane.b32.xlu0 %v1037, 18
      %v1092 = vpop.permute.xlu0 %1091
      %v1093 = vsel %vm409, %v1080, %v1082
      %v1094 = vsel %vm409, %v1082, %v1084
      %v1095 = vsel %vm409, %v1084, %v1086
      %v1096 = vsel %vm409, %v1086, %v1088
      %v1097 = vsel %vm409, %v1088, %v1090
      %v1098 = vsel %vm409, %v1090, %v1092
      %v1106 = vsel %vm409, %v1077, %v1080
      %1107 = vrot.lane.b32.xlu0 %v1037, 49
      %v1108 = vpop.permute.xlu0 %1107
      %1110 = vrot.lane.b32.xlu0 %v1031, 17
      %v1111 = vpop.permute.xlu0 %1110
      %1112 = vrot.lane.b32.xlu0 %v1032, 17
      %v1113 = vpop.permute.xlu0 %1112
      %1114 = vrot.lane.b32.xlu0 %v1033, 17
      %v1115 = vpop.permute.xlu0 %1114
      %1116 = vrot.lane.b32.xlu0 %v1034, 17
      %v1117 = vpop.permute.xlu0 %1116
      %1118 = vrot.lane.b32.xlu0 %v1035, 17
      %v1119 = vpop.permute.xlu0 %1118
      %1120 = vrot.lane.b32.xlu0 %v1036, 17
      %v1121 = vpop.permute.xlu0 %1120
      %1122 = vrot.lane.b32.xlu0 %v1037, 17
      %v1123 = vpop.permute.xlu0 %1122
      %v1124 = vsel %vm435, %v1111, %v1113
      %v1125 = vsel %vm435, %v1113, %v1115
      %v1126 = vsel %vm435, %v1115, %v1117
      %v1127 = vsel %vm435, %v1117, %v1119
      %v1128 = vsel %vm435, %v1119, %v1121
      %v1129 = vsel %vm435, %v1121, %v1123
      %v1137 = vsel %vm435, %v1108, %v1111
      %1138 = vrot.lane.b32.xlu0 %v1037, 33
      %v1139 = vpop.permute.xlu0 %1138
      %1141 = vrot.lane.b32.xlu0 %v1031, 1
      %v1142 = vpop.permute.xlu0 %1141
      %1143 = vrot.lane.b32.xlu0 %v1032, 1
      %v1144 = vpop.permute.xlu0 %1143
      %1145 = vrot.lane.b32.xlu0 %v1033, 1
      %v1146 = vpop.permute.xlu0 %1145
      %1147 = vrot.lane.b32.xlu0 %v1034, 1
      %v1148 = vpop.permute.xlu0 %1147
      %1149 = vrot.lane.b32.xlu0 %v1035, 1
      %v1150 = vpop.permute.xlu0 %1149
      %1151 = vrot.lane.b32.xlu0 %v1036, 1
      %v1152 = vpop.permute.xlu0 %1151
      %1153 = vrot.lane.b32.xlu0 %v1037, 1
      %v1154 = vpop.permute.xlu0 %1153
      %v1155 = vsel %vm461, %v1142, %v1144
      %v1156 = vsel %vm461, %v1144, %v1146
      %v1157 = vsel %vm461, %v1146, %v1148
      %v1158 = vsel %vm461, %v1148, %v1150
      %v1159 = vsel %vm461, %v1150, %v1152
      %v1160 = vsel %vm461, %v1152, %v1154
      %v1168 = vsel %vm461, %v1139, %v1142
      %1169 = vrot.lane.b32.xlu0 %v1031, 127
      %v1170 = vpop.permute.xlu0 %1169
      %1171 = vrot.lane.b32.xlu0 %v1032, 127
      %v1172 = vpop.permute.xlu0 %1171
      %1173 = vrot.lane.b32.xlu0 %v1033, 127
      %v1174 = vpop.permute.xlu0 %1173
      %1175 = vrot.lane.b32.xlu0 %v1034, 127
      %v1176 = vpop.permute.xlu0 %1175
      %1177 = vrot.lane.b32.xlu0 %v1035, 127
      %v1178 = vpop.permute.xlu0 %1177
      %1179 = vrot.lane.b32.xlu0 %v1036, 127
      %v1180 = vpop.permute.xlu0 %1179
      %1181 = vrot.lane.b32.xlu0 %v1037, 127
      %v1182 = vpop.permute.xlu0 %1181
      %v1183 = vsel %vm484, %v1170, %v1172
      %v1184 = vsel %vm484, %v1172, %v1174
      %v1185 = vsel %vm484, %v1174, %v1176
      %v1186 = vsel %vm484, %v1176, %v1178
      %v1187 = vsel %vm484, %v1178, %v1180
      %v1188 = vsel %vm484, %v1180, %v1182
      %1196 = vrot.lane.b32.xlu0 %v1031, 95
      %v1197 = vpop.permute.xlu0 %1196
      %v1199 = vsel %vm495, %v1182, %v1197
      %1200 = vrot.lane.b32.xlu0 %v1031, 111
      %v1201 = vpop.permute.xlu0 %1200
      %1202 = vrot.lane.b32.xlu0 %v1032, 111
      %v1203 = vpop.permute.xlu0 %1202
      %1204 = vrot.lane.b32.xlu0 %v1033, 111
      %v1205 = vpop.permute.xlu0 %1204
      %1206 = vrot.lane.b32.xlu0 %v1034, 111
      %v1207 = vpop.permute.xlu0 %1206
      %1208 = vrot.lane.b32.xlu0 %v1035, 111
      %v1209 = vpop.permute.xlu0 %1208
      %1210 = vrot.lane.b32.xlu0 %v1036, 111
      %v1211 = vpop.permute.xlu0 %1210
      %1212 = vrot.lane.b32.xlu0 %v1037, 111
      %v1213 = vpop.permute.xlu0 %1212
      %v1214 = vsel %vm511, %v1201, %v1203
      %v1215 = vsel %vm511, %v1203, %v1205
      %v1216 = vsel %vm511, %v1205, %v1207
      %v1217 = vsel %vm511, %v1207, %v1209
      %v1218 = vsel %vm511, %v1209, %v1211
      %v1219 = vsel %vm511, %v1211, %v1213
      %1227 = vrot.lane.b32.xlu0 %v1031, 79
      %v1228 = vpop.permute.xlu0 %1227
      %v1230 = vsel %vm522, %v1213, %v1228
      %1231 = vrot.lane.b32.xlu0 %v1031, 110
      %v1232 = vpop.permute.xlu0 %1231
      %1233 = vrot.lane.b32.xlu0 %v1032, 110
      %v1234 = vpop.permute.xlu0 %1233
      %1235 = vrot.lane.b32.xlu0 %v1033, 110
      %v1236 = vpop.permute.xlu0 %1235
      %1237 = vrot.lane.b32.xlu0 %v1034, 110
      %v1238 = vpop.permute.xlu0 %1237
      %1239 = vrot.lane.b32.xlu0 %v1035, 110
      %v1240 = vpop.permute.xlu0 %1239
      %1241 = vrot.lane.b32.xlu0 %v1036, 110
      %v1242 = vpop.permute.xlu0 %1241
      %1243 = vrot.lane.b32.xlu0 %v1037, 110
      %v1244 = vpop.permute.xlu0 %1243
      %v1245 = vsel %vm538, %v1232, %v1234
      %v1246 = vsel %vm538, %v1234, %v1236
      %v1247 = vsel %vm538, %v1236, %v1238
      %v1248 = vsel %vm538, %v1238, %v1240
      %v1249 = vsel %vm538, %v1240, %v1242
      %v1250 = vsel %vm538, %v1242, %v1244
      %1258 = vrot.lane.b32.xlu0 %v1031, 78
      %v1259 = vpop.permute.xlu0 %1258
      %v1261 = vsel %vm549, %v1244, %v1259
      %1262 = vrot.lane.b32.xlu0 %v1031, 109
      %v1263 = vpop.permute.xlu0 %1262
      %1264 = vrot.lane.b32.xlu0 %v1032, 109
      %v1265 = vpop.permute.xlu0 %1264
      %1266 = vrot.lane.b32.xlu0 %v1033, 109
      %v1267 = vpop.permute.xlu0 %1266
      %1268 = vrot.lane.b32.xlu0 %v1034, 109
      %v1269 = vpop.permute.xlu0 %1268
      %1270 = vrot.lane.b32.xlu0 %v1035, 109
      %v1271 = vpop.permute.xlu0 %1270
      %1272 = vrot.lane.b32.xlu0 %v1036, 109
      %v1273 = vpop.permute.xlu0 %1272
      %1274 = vrot.lane.b32.xlu0 %v1037, 109
      %v1275 = vpop.permute.xlu0 %1274
      %v1276 = vsel %vm565, %v1263, %v1265
      %v1277 = vsel %vm565, %v1265, %v1267
      %v1278 = vsel %vm565, %v1267, %v1269
      %v1279 = vsel %vm565, %v1269, %v1271
      %v1280 = vsel %vm565, %v1271, %v1273
      %v1281 = vsel %vm565, %v1273, %v1275
      %1289 = vrot.lane.b32.xlu0 %v1031, 77
      %v1290 = vpop.permute.xlu0 %1289
      %v1292 = vsel %vm582, %v1275, %v1290
      %v1293 = vpack.c.bf16 %v1106, %v1075
      %v1294 = vpack.c.bf16 %v1093, %v1062
      %v1295 = vpack.c.bf16 %v1094, %v1063
      %v1296 = vpack.c.bf16 %v1095, %v1064
      %v1297 = vpack.c.bf16 %v1096, %v1065
      %v1298 = vpack.c.bf16 %v1097, %v1066
      %v1299 = vpack.c.bf16 %v1098, %v1067
      %v1300 = vpack.c.bf16 %v1168, %v1137
      %v1301 = vpack.c.bf16 %v1155, %v1124
      %v1302 = vpack.c.bf16 %v1156, %v1125
      %v1303 = vpack.c.bf16 %v1157, %v1126
      %v1304 = vpack.c.bf16 %v1158, %v1127
      %v1305 = vpack.c.bf16 %v1159, %v1128
      %v1306 = vpack.c.bf16 %v1160, %v1129
      %v1307 = vpack.c.bf16 %v1183, %v1031
      %v1308 = vpack.c.bf16 %v1184, %v1032
      %v1309 = vpack.c.bf16 %v1185, %v1033
      %v1310 = vpack.c.bf16 %v1186, %v1034
      %v1311 = vpack.c.bf16 %v1187, %v1035
      %v1312 = vpack.c.bf16 %v1188, %v1036
      %v1313 = vpack.c.bf16 %v1199, %v1037
      %v1314 = vpack.c.bf16 %v1245, %v1214
      %v1315 = vpack.c.bf16 %v1246, %v1215
      %v1316 = vpack.c.bf16 %v1247, %v1216
      %v1317 = vpack.c.bf16 %v1248, %v1217
      %v1318 = vpack.c.bf16 %v1249, %v1218
      %v1319 = vpack.c.bf16 %v1250, %v1219
      %v1320 = vpack.c.bf16 %v1261, %v1230
      %v1321 = vpack.c.bf16 %v1276, %v1276
      %v1322 = vpack.c.bf16 %v1277, %v1277
      %v1323 = vpack.c.bf16 %v1278, %v1278
      %v1324 = vpack.c.bf16 %v1279, %v1279
      %v1325 = vpack.c.bf16 %v1280, %v1280
      %v1326 = vpack.c.bf16 %v1281, %v1281
      %v1327 = vpack.c.bf16 %v1292, %v1292
      %v1328 = vld [vmem:[%s4] sm:$0xf]
      %v1329 = vld [vmem:[%s4 + $0x4] sm:$0xf]
      %v1330 = vld [vmem:[%s2] sm:$0xff]
      %v1331 = vld [vmem:[%s2 + $0x8] sm:$0xff]
      %1333 = vset.pattern.permute.xlu0 1
      %1334 = vperm.xlu0 %1333, %v1330
      %v1335 = vpop.permute.xlu0 %1334
      %1338 = vset.pattern.permute.xlu0 1
      %1339 = vperm.xlu0 %1338, %v1331
      %v1340 = vpop.permute.xlu0 %1339
      %v1344 = vunpack.c.l.b16 %v1328
      %v1345 = vunpack.c.l.b16 %v1329
      %v1346 = vpack.c.b16 %v1345, %v1344
      %vm1347 = vcmask 588800
      %v1349 = vsel %vm1347, %v1346, 0
      %v1352 = vsel %vm705, %v1321, 0
      %v1355 = vsel %vm705, %v1322, 0
      %v1358 = vsel %vm705, %v1323, 0
      %v1361 = vsel %vm705, %v1324, 0
      %v1364 = vsel %vm705, %v1325, 0
      %v1367 = vsel %vm705, %v1326, 0
      %v1370 = vsel %vm705, %v1327, 0
      %1372 = vmatprep.subr.bf16.mxu0 0
      %1373 = vmatpush1.bf16.msra.mxu0 0
      %1374 = vmatprep.subr.bf16.mxu0 0
      %1375 = vmatpush1.bf16.msra.mxu0 0
      %1376 = vmatprep.subr.bf16.mxu0 0
      %1377 = vmatpush1.bf16.msra.mxu0 0
      %1378 = vmatprep.subr.bf16.mxu0 %v1355
      %1379 = vmatpush1.bf16.msra.mxu0 %v1352
      %1380 = vmatprep.subr.bf16.mxu0 %v1315
      %1381 = vmatpush1.bf16.msra.mxu0 %v1314
      %1382 = vmatprep.subr.bf16.mxu0 %v1308
      %1383 = vmatpush1.bf16.msra.mxu0 %v1307
      %1384 = vmatprep.subr.bf16.mxu0 %v1301
      %1385 = vmatpush1.bf16.msra.mxu0 %v1300
      %1386 = vmatprep.subr.bf16.mxu0 %v1294
      %1387 = vmatpush1.bf16.msra.mxu0 %v1293
      %1388 = vmatprep.subr.bf16.mxu0 0
      %1389 = vmatpush2.bf16.msra.mxu0 0
      %1390 = vmatprep.subr.bf16.mxu0 0
      %1391 = vmatpush2.bf16.msra.mxu0 0
      %1392 = vmatprep.subr.bf16.mxu0 0
      %1393 = vmatpush2.bf16.msra.mxu0 0
      %1394 = vmatprep.subr.bf16.mxu0 0
      %1395 = vmatpush2.bf16.msra.mxu0 0
      %1396 = vmatprep.subr.bf16.mxu0 0
      %1397 = vmatpush2.bf16.msra.mxu0 0
      %1398 = vmatprep.subr.bf16.mxu0 0
      %1399 = vmatpush2.bf16.msra.mxu0 0
      %1400 = vmatprep.subr.bf16.mxu0 0
      %1401 = vmatpush2.bf16.msra.mxu0 0
      %1402 = vmatprep.subr.bf16.mxu0 0
      %1403 = vmatpush2.bf16.msra.mxu0 0
      %1404 = vmatprep.mubr.bf16.mxu0 0
      %1405 = vmatmul.mubr.bf16.gmra.mxu0 %v1349
      %v1406 = vpop.f32.mrf.mxu0
      %v1407 = vadd.f32 %v1335, %v1406
      %v1408 = vpop.f32.mrf.mxu0
      %v1409 = vadd.f32 %v1335, %v1408
      %v1410 = vpop.f32.mrf.mxu0
      %v1411 = vadd.f32 %v1340, %v1410
      %v1412 = vpop.f32.mrf.mxu0
      %v1413 = vadd.f32 %v1340, %v1412
      %1414 = vdwg.mxu0
      %1415 = vmatprep.subr.bf16.mxu0 0
      %1416 = vmatpush1.bf16.msra.mxu0 0
      %1417 = vmatprep.subr.bf16.mxu0 0
      %1418 = vmatpush1.bf16.msra.mxu0 0
      %1419 = vmatprep.subr.bf16.mxu0 0
      %1420 = vmatpush1.bf16.msra.mxu0 0
      %1421 = vmatprep.subr.bf16.mxu0 %v1361
      %1422 = vmatpush1.bf16.msra.mxu0 %v1358
      %1423 = vmatprep.subr.bf16.mxu0 %v1317
      %1424 = vmatpush1.bf16.msra.mxu0 %v1316
      %1425 = vmatprep.subr.bf16.mxu0 %v1310
      %1426 = vmatpush1.bf16.msra.mxu0 %v1309
      %1427 = vmatprep.subr.bf16.mxu0 %v1303
      %1428 = vmatpush1.bf16.msra.mxu0 %v1302
      %1429 = vmatprep.subr.bf16.mxu0 %v1296
      %1430 = vmatpush1.bf16.msra.mxu0 %v1295
      %1431 = vmatprep.subr.bf16.mxu0 0
      %1432 = vmatpush2.bf16.msra.mxu0 0
      %1433 = vmatprep.subr.bf16.mxu0 0
      %1434 = vmatpush2.bf16.msra.mxu0 0
      %1435 = vmatprep.subr.bf16.mxu0 0
      %1436 = vmatpush2.bf16.msra.mxu0 0
      %1437 = vmatprep.subr.bf16.mxu0 0
      %1438 = vmatpush2.bf16.msra.mxu0 0
      %1439 = vmatprep.subr.bf16.mxu0 0
      %1440 = vmatpush2.bf16.msra.mxu0 0
      %1441 = vmatprep.subr.bf16.mxu0 0
      %1442 = vmatpush2.bf16.msra.mxu0 0
      %1443 = vmatprep.subr.bf16.mxu0 0
      %1444 = vmatpush2.bf16.msra.mxu0 0
      %1445 = vmatprep.subr.bf16.mxu0 0
      %1446 = vmatpush2.bf16.msra.mxu0 0
      %1447 = vmatprep.mubr.bf16.mxu0 0
      %1448 = vmatmul.mubr.bf16.gmra.mxu0 %v1349
      %v1449 = vpop.f32.mrf.mxu0
      %v1450 = vadd.f32 %v1335, %v1449
      %v1451 = vpop.f32.mrf.mxu0
      %v1452 = vadd.f32 %v1335, %v1451
      %v1453 = vpop.f32.mrf.mxu0
      %v1454 = vadd.f32 %v1340, %v1453
      %v1455 = vpop.f32.mrf.mxu0
      %v1456 = vadd.f32 %v1340, %v1455
      %1457 = vdwg.mxu0
      %1458 = vmatprep.subr.bf16.mxu0 0
      %1459 = vmatpush1.bf16.msra.mxu0 0
      %1460 = vmatprep.subr.bf16.mxu0 0
      %1461 = vmatpush1.bf16.msra.mxu0 0
      %1462 = vmatprep.subr.bf16.mxu0 0
      %1463 = vmatpush1.bf16.msra.mxu0 0
      %1464 = vmatprep.subr.bf16.mxu0 %v1367
      %1465 = vmatpush1.bf16.msra.mxu0 %v1364
      %1466 = vmatprep.subr.bf16.mxu0 %v1319
      %1467 = vmatpush1.bf16.msra.mxu0 %v1318
      %1468 = vmatprep.subr.bf16.mxu0 %v1312
      %1469 = vmatpush1.bf16.msra.mxu0 %v1311
      %1470 = vmatprep.subr.bf16.mxu0 %v1305
      %1471 = vmatpush1.bf16.msra.mxu0 %v1304
      %1472 = vmatprep.subr.bf16.mxu0 %v1298
      %1473 = vmatpush1.bf16.msra.mxu0 %v1297
      %1474 = vmatprep.subr.bf16.mxu0 0
      %1475 = vmatpush2.bf16.msra.mxu0 0
      %1476 = vmatprep.subr.bf16.mxu0 0
      %1477 = vmatpush2.bf16.msra.mxu0 0
      %1478 = vmatprep.subr.bf16.mxu0 0
      %1479 = vmatpush2.bf16.msra.mxu0 0
      %1480 = vmatprep.subr.bf16.mxu0 0
      %1481 = vmatpush2.bf16.msra.mxu0 0
      %1482 = vmatprep.subr.bf16.mxu0 0
      %1483 = vmatpush2.bf16.msra.mxu0 0
      %1484 = vmatprep.subr.bf16.mxu0 0
      %1485 = vmatpush2.bf16.msra.mxu0 0
      %1486 = vmatprep.subr.bf16.mxu0 0
      %1487 = vmatpush2.bf16.msra.mxu0 0
      %1488 = vmatprep.subr.bf16.mxu0 0
      %1489 = vmatpush2.bf16.msra.mxu0 0
      %1490 = vmatprep.mubr.bf16.mxu0 0
      %1491 = vmatmul.mubr.bf16.gmra.mxu0 %v1349
      %v1492 = vpop.f32.mrf.mxu0
      %v1493 = vadd.f32 %v1335, %v1492
      %v1494 = vpop.f32.mrf.mxu0
      %v1495 = vadd.f32 %v1335, %v1494
      %v1496 = vpop.f32.mrf.mxu0
      %v1497 = vadd.f32 %v1340, %v1496
      %v1498 = vpop.f32.mrf.mxu0
      %v1499 = vadd.f32 %v1340, %v1498
      %1500 = vdwg.mxu0
      %1501 = vmatprep.subr.bf16.mxu0 0
      %1502 = vmatpush1.bf16.msra.mxu0 0
      %1503 = vmatprep.subr.bf16.mxu0 0
      %1504 = vmatpush1.bf16.msra.mxu0 0
      %1505 = vmatprep.subr.bf16.mxu0 0
      %1506 = vmatpush1.bf16.msra.mxu0 0
      %1507 = vmatprep.subr.bf16.mxu0 0
      %1508 = vmatpush1.bf16.msra.mxu0 %v1370
      %1509 = vmatprep.subr.bf16.mxu0 0
      %1510 = vmatpush1.bf16.msra.mxu0 %v1320
      %1511 = vmatprep.subr.bf16.mxu0 0
      %1512 = vmatpush1.bf16.msra.mxu0 %v1313
      %1513 = vmatprep.subr.bf16.mxu0 0
      %1514 = vmatpush1.bf16.msra.mxu0 %v1306
      %1515 = vmatprep.subr.bf16.mxu0 0
      %1516 = vmatpush1.bf16.msra.mxu0 %v1299
      %1517 = vmatprep.subr.bf16.mxu0 0
      %1518 = vmatpush2.bf16.msra.mxu0 0
      %1519 = vmatprep.subr.bf16.mxu0 0
      %1520 = vmatpush2.bf16.msra.mxu0 0
      %1521 = vmatprep.subr.bf16.mxu0 0
      %1522 = vmatpush2.bf16.msra.mxu0 0
      %1523 = vmatprep.subr.bf16.mxu0 0
      %1524 = vmatpush2.bf16.msra.mxu0 0
      %1525 = vmatprep.subr.bf16.mxu0 0
      %1526 = vmatpush2.bf16.msra.mxu0 0
      %1527 = vmatprep.subr.bf16.mxu0 0
      %1528 = vmatpush2.bf16.msra.mxu0 0
      %1529 = vmatprep.subr.bf16.mxu0 0
      %1530 = vmatpush2.bf16.msra.mxu0 0
      %1531 = vmatprep.subr.bf16.mxu0 0
      %1532 = vmatpush2.bf16.msra.mxu0 0
      %1533 = vmatprep.mubr.bf16.mxu0 0
      %1534 = vmatmul.mubr.bf16.gmra.mxu0 %v1349
      %v1535 = vpop.f32.mrf.mxu0
      %v1536 = vadd.f32 %v1335, %v1535
      %v1537 = vpop.f32.mrf.mxu0
      %v1538 = vpop.f32.mrf.mxu0
      %v1539 = vadd.f32 %v1340, %v1538
      %v1540 = vpop.f32.mrf.mxu0
      %1541 = vdwg.mxu0
      %v1542 = vand.u32 2147483647, %v1407
      %v1543 = vand.u32 2147483647, %v1409
      %v1544 = vand.u32 2147483647, %v1450
      %v1545 = vand.u32 2147483647, %v1452
      %v1546 = vand.u32 2147483647, %v1493
      %v1547 = vand.u32 2147483647, %v1495
      %v1548 = vand.u32 2147483647, %v1536
      %v1549 = vand.u32 2147483647, %v1411
      %v1550 = vand.u32 2147483647, %v1413
      %v1551 = vand.u32 2147483647, %v1454
      %v1552 = vand.u32 2147483647, %v1456
      %v1553 = vand.u32 2147483647, %v1497
      %v1554 = vand.u32 2147483647, %v1499
      %v1555 = vand.u32 2147483647, %v1539
      %v1556 = vsub.f32 0.0, %v1542
      %v1557 = vsub.f32 0.0, %v1543
      %v1558 = vsub.f32 0.0, %v1544
      %v1559 = vsub.f32 0.0, %v1545
      %v1560 = vsub.f32 0.0, %v1546
      %v1561 = vsub.f32 0.0, %v1547
      %v1562 = vsub.f32 0.0, %v1548
      %v1563 = vsub.f32 0.0, %v1549
      %v1564 = vsub.f32 0.0, %v1550
      %v1565 = vsub.f32 0.0, %v1551
      %v1566 = vsub.f32 0.0, %v1552
      %v1567 = vsub.f32 0.0, %v1553
      %v1568 = vsub.f32 0.0, %v1554
      %v1569 = vsub.f32 0.0, %v1555
      %v1570 = vmul.f32 %v1556, 1.442695
      %v1571 = vpow.pop %v1570
      %v1572 = vmul.f32 %v1557, 1.442695
      %v1573 = vpow.pop %v1572
      %v1574 = vmul.f32 %v1558, 1.442695
      %v1575 = vpow.pop %v1574
      %v1576 = vmul.f32 %v1559, 1.442695
      %v1577 = vpow.pop %v1576
      %v1578 = vmul.f32 %v1560, 1.442695
      %v1579 = vpow.pop %v1578
      %v1580 = vmul.f32 %v1561, 1.442695
      %v1581 = vpow.pop %v1580
      %v1582 = vmul.f32 %v1562, 1.442695
      %v1583 = vpow.pop %v1582
      %v1584 = vmul.f32 %v1563, 1.442695
      %v1585 = vpow.pop %v1584
      %v1586 = vmul.f32 %v1564, 1.442695
      %v1587 = vpow.pop %v1586
      %v1588 = vmul.f32 %v1565, 1.442695
      %v1589 = vpow.pop %v1588
      %v1590 = vmul.f32 %v1566, 1.442695
      %v1591 = vpow.pop %v1590
      %v1592 = vmul.f32 %v1567, 1.442695
      %v1593 = vpow.pop %v1592
      %v1594 = vmul.f32 %v1568, 1.442695
      %v1595 = vpow.pop %v1594
      %v1596 = vmul.f32 %v1569, 1.442695
      %v1597 = vpow.pop %v1596
      %v1598 = vadd.f32 %v1571, 1.0
      %v1599 = vadd.f32 %v1573, 1.0
      %v1600 = vadd.f32 %v1575, 1.0
      %v1601 = vadd.f32 %v1577, 1.0
      %v1602 = vadd.f32 %v1579, 1.0
      %v1603 = vadd.f32 %v1581, 1.0
      %v1604 = vadd.f32 %v1583, 1.0
      %v1605 = vadd.f32 %v1585, 1.0
      %v1606 = vadd.f32 %v1587, 1.0
      %v1607 = vadd.f32 %v1589, 1.0
      %v1608 = vadd.f32 %v1591, 1.0
      %v1609 = vadd.f32 %v1593, 1.0
      %v1610 = vadd.f32 %v1595, 1.0
      %v1611 = vadd.f32 %v1597, 1.0
      %v1612 = vrcp.pop %v1598
      %v1613 = vmul.f32 1.0, %v1612
      %v1614 = vrcp.pop %v1599
      %v1615 = vmul.f32 1.0, %v1614
      %v1616 = vrcp.pop %v1600
      %v1617 = vmul.f32 1.0, %v1616
      %v1618 = vrcp.pop %v1601
      %v1619 = vmul.f32 1.0, %v1618
      %v1620 = vrcp.pop %v1602
      %v1621 = vmul.f32 1.0, %v1620
      %v1622 = vrcp.pop %v1603
      %v1623 = vmul.f32 1.0, %v1622
      %v1624 = vrcp.pop %v1604
      %v1625 = vmul.f32 1.0, %v1624
      %v1626 = vrcp.pop %v1605
      %v1627 = vmul.f32 1.0, %v1626
      %v1628 = vrcp.pop %v1606
      %v1629 = vmul.f32 1.0, %v1628
      %v1630 = vrcp.pop %v1607
      %v1631 = vmul.f32 1.0, %v1630
      %v1632 = vrcp.pop %v1608
      %v1633 = vmul.f32 1.0, %v1632
      %v1634 = vrcp.pop %v1609
      %v1635 = vmul.f32 1.0, %v1634
      %v1636 = vrcp.pop %v1610
      %v1637 = vmul.f32 1.0, %v1636
      %v1638 = vrcp.pop %v1611
      %v1639 = vmul.f32 1.0, %v1638
      %vm1640 = vcmp.ge.f32.partialorder %v1407, 0.0
      %vm1641 = vcmp.ge.f32.partialorder %v1409, 0.0
      %vm1642 = vcmp.ge.f32.partialorder %v1450, 0.0
      %vm1643 = vcmp.ge.f32.partialorder %v1452, 0.0
      %vm1644 = vcmp.ge.f32.partialorder %v1493, 0.0
      %vm1645 = vcmp.ge.f32.partialorder %v1495, 0.0
      %vm1646 = vcmp.ge.f32.partialorder %v1536, 0.0
      %vm1647 = vcmp.ge.f32.partialorder %v1411, 0.0
      %vm1648 = vcmp.ge.f32.partialorder %v1413, 0.0
      %vm1649 = vcmp.ge.f32.partialorder %v1454, 0.0
      %vm1650 = vcmp.ge.f32.partialorder %v1456, 0.0
      %vm1651 = vcmp.ge.f32.partialorder %v1497, 0.0
      %vm1652 = vcmp.ge.f32.partialorder %v1499, 0.0
      %vm1653 = vcmp.ge.f32.partialorder %v1539, 0.0
      %v1654 = vsub.f32 1.0, %v1613
      %v1655 = vsub.f32 1.0, %v1615
      %v1656 = vsub.f32 1.0, %v1617
      %v1657 = vsub.f32 1.0, %v1619
      %v1658 = vsub.f32 1.0, %v1621
      %v1659 = vsub.f32 1.0, %v1623
      %v1660 = vsub.f32 1.0, %v1625
      %v1661 = vsub.f32 1.0, %v1627
      %v1662 = vsub.f32 1.0, %v1629
      %v1663 = vsub.f32 1.0, %v1631
      %v1664 = vsub.f32 1.0, %v1633
      %v1665 = vsub.f32 1.0, %v1635
      %v1666 = vsub.f32 1.0, %v1637
      %v1667 = vsub.f32 1.0, %v1639
      %v1668 = vsel %vm1640, %v1613, %v1654
      %v1669 = vsel %vm1641, %v1615, %v1655
      %v1670 = vsel %vm1642, %v1617, %v1656
      %v1671 = vsel %vm1643, %v1619, %v1657
      %v1672 = vsel %vm1644, %v1621, %v1658
      %v1673 = vsel %vm1645, %v1623, %v1659
      %v1674 = vsel %vm1646, %v1625, %v1660
      %v1675 = vsel %vm1647, %v1627, %v1661
      %v1676 = vsel %vm1648, %v1629, %v1662
      %v1677 = vsel %vm1649, %v1631, %v1663
      %v1678 = vsel %vm1650, %v1633, %v1664
      %v1679 = vsel %vm1651, %v1635, %v1665
      %v1680 = vsel %vm1652, %v1637, %v1666
      %v1681 = vsel %vm1653, %v1639, %v1667
      %v1682 = vmul.f32 %v1668, %v999
      %v1683 = vmul.f32 %v1669, %v1003
      %v1684 = vmul.f32 %v1670, %v1007
      %v1685 = vmul.f32 %v1671, %v1011
      %v1686 = vmul.f32 %v1672, %v1015
      %v1687 = vmul.f32 %v1673, %v1019
      %v1688 = vmul.f32 %v1674, %v1023
      %v1689 = vmul.f32 %v1675, %v999
      %v1690 = vmul.f32 %v1676, %v1003
      %v1691 = vmul.f32 %v1677, %v1007
      %v1692 = vmul.f32 %v1678, %v1011
      %v1693 = vmul.f32 %v1679, %v1015
      %v1694 = vmul.f32 %v1680, %v1019
      %v1695 = vmul.f32 %v1681, %v1023
      %1698 = vrot.lane.b32.xlu0 %v1688, 51
      %v1699 = vpop.permute.xlu0 %1698
      %1700 = vrot.lane.b32.xlu0 %v1695, 51
      %v1701 = vpop.permute.xlu0 %1700
      %1716 = vrot.lane.b32.xlu0 %v1682, 19
      %v1717 = vpop.permute.xlu0 %1716
      %1718 = vrot.lane.b32.xlu0 %v1683, 19
      %v1719 = vpop.permute.xlu0 %1718
      %1720 = vrot.lane.b32.xlu0 %v1684, 19
      %v1721 = vpop.permute.xlu0 %1720
      %1722 = vrot.lane.b32.xlu0 %v1685, 19
      %v1723 = vpop.permute.xlu0 %1722
      %1724 = vrot.lane.b32.xlu0 %v1686, 19
      %v1725 = vpop.permute.xlu0 %1724
      %1726 = vrot.lane.b32.xlu0 %v1687, 19
      %v1727 = vpop.permute.xlu0 %1726
      %1728 = vrot.lane.b32.xlu0 %v1688, 19
      %v1729 = vpop.permute.xlu0 %1728
      %1730 = vrot.lane.b32.xlu0 %v1689, 19
      %v1731 = vpop.permute.xlu0 %1730
      %1732 = vrot.lane.b32.xlu0 %v1690, 19
      %v1733 = vpop.permute.xlu0 %1732
      %1734 = vrot.lane.b32.xlu0 %v1691, 19
      %v1735 = vpop.permute.xlu0 %1734
      %1736 = vrot.lane.b32.xlu0 %v1692, 19
      %v1737 = vpop.permute.xlu0 %1736
      %1738 = vrot.lane.b32.xlu0 %v1693, 19
      %v1739 = vpop.permute.xlu0 %1738
      %1740 = vrot.lane.b32.xlu0 %v1694, 19
      %v1741 = vpop.permute.xlu0 %1740
      %1742 = vrot.lane.b32.xlu0 %v1695, 19
      %v1743 = vpop.permute.xlu0 %1742
      %v1744 = vsel %vm377, %v1717, %v1719
      %v1745 = vsel %vm377, %v1719, %v1721
      %v1746 = vsel %vm377, %v1721, %v1723
      %v1747 = vsel %vm377, %v1723, %v1725
      %v1748 = vsel %vm377, %v1725, %v1727
      %v1749 = vsel %vm377, %v1727, %v1729
      %v1750 = vsel %vm377, %v1731, %v1733
      %v1751 = vsel %vm377, %v1733, %v1735
      %v1752 = vsel %vm377, %v1735, %v1737
      %v1753 = vsel %vm377, %v1737, %v1739
      %v1754 = vsel %vm377, %v1739, %v1741
      %v1755 = vsel %vm377, %v1741, %v1743
      %v1770 = vsel %vm377, %v1699, %v1717
      %v1771 = vsel %vm377, %v1701, %v1731
      %1772 = vrot.lane.b32.xlu0 %v1688, 50
      %v1773 = vpop.permute.xlu0 %1772
      %1774 = vrot.lane.b32.xlu0 %v1695, 50
      %v1775 = vpop.permute.xlu0 %1774
      %1778 = vrot.lane.b32.xlu0 %v1682, 18
      %v1779 = vpop.permute.xlu0 %1778
      %1780 = vrot.lane.b32.xlu0 %v1683, 18
      %v1781 = vpop.permute.xlu0 %1780
      %1782 = vrot.lane.b32.xlu0 %v1684, 18
      %v1783 = vpop.permute.xlu0 %1782
      %1784 = vrot.lane.b32.xlu0 %v1685, 18
      %v1785 = vpop.permute.xlu0 %1784
      %1786 = vrot.lane.b32.xlu0 %v1686, 18
      %v1787 = vpop.permute.xlu0 %1786
      %1788 = vrot.lane.b32.xlu0 %v1687, 18
      %v1789 = vpop.permute.xlu0 %1788
      %1790 = vrot.lane.b32.xlu0 %v1688, 18
      %v1791 = vpop.permute.xlu0 %1790
      %1792 = vrot.lane.b32.xlu0 %v1689, 18
      %v1793 = vpop.permute.xlu0 %1792
      %1794 = vrot.lane.b32.xlu0 %v1690, 18
      %v1795 = vpop.permute.xlu0 %1794
      %1796 = vrot.lane.b32.xlu0 %v1691, 18
      %v1797 = vpop.permute.xlu0 %1796
      %1798 = vrot.lane.b32.xlu0 %v1692, 18
      %v1799 = vpop.permute.xlu0 %1798
      %1800 = vrot.lane.b32.xlu0 %v1693, 18
      %v1801 = vpop.permute.xlu0 %1800
      %1802 = vrot.lane.b32.xlu0 %v1694, 18
      %v1803 = vpop.permute.xlu0 %1802
      %1804 = vrot.lane.b32.xlu0 %v1695, 18
      %v1805 = vpop.permute.xlu0 %1804
      %v1806 = vsel %vm409, %v1779, %v1781
      %v1807 = vsel %vm409, %v1781, %v1783
      %v1808 = vsel %vm409, %v1783, %v1785
      %v1809 = vsel %vm409, %v1785, %v1787
      %v1810 = vsel %vm409, %v1787, %v1789
      %v1811 = vsel %vm409, %v1789, %v1791
      %v1812 = vsel %vm409, %v1793, %v1795
      %v1813 = vsel %vm409, %v1795, %v1797
      %v1814 = vsel %vm409, %v1797, %v1799
      %v1815 = vsel %vm409, %v1799, %v1801
      %v1816 = vsel %vm409, %v1801, %v1803
      %v1817 = vsel %vm409, %v1803, %v1805
      %v1832 = vsel %vm409, %v1773, %v1779
      %v1833 = vsel %vm409, %v1775, %v1793
      %1834 = vrot.lane.b32.xlu0 %v1688, 49
      %v1835 = vpop.permute.xlu0 %1834
      %1836 = vrot.lane.b32.xlu0 %v1695, 49
      %v1837 = vpop.permute.xlu0 %1836
      %1840 = vrot.lane.b32.xlu0 %v1682, 17
      %v1841 = vpop.permute.xlu0 %1840
      %1842 = vrot.lane.b32.xlu0 %v1683, 17
      %v1843 = vpop.permute.xlu0 %1842
      %1844 = vrot.lane.b32.xlu0 %v1684, 17
      %v1845 = vpop.permute.xlu0 %1844
      %1846 = vrot.lane.b32.xlu0 %v1685, 17
      %v1847 = vpop.permute.xlu0 %1846
      %1848 = vrot.lane.b32.xlu0 %v1686, 17
      %v1849 = vpop.permute.xlu0 %1848
      %1850 = vrot.lane.b32.xlu0 %v1687, 17
      %v1851 = vpop.permute.xlu0 %1850
      %1852 = vrot.lane.b32.xlu0 %v1688, 17
      %v1853 = vpop.permute.xlu0 %1852
      %1854 = vrot.lane.b32.xlu0 %v1689, 17
      %v1855 = vpop.permute.xlu0 %1854
      %1856 = vrot.lane.b32.xlu0 %v1690, 17
      %v1857 = vpop.permute.xlu0 %1856
      %1858 = vrot.lane.b32.xlu0 %v1691, 17
      %v1859 = vpop.permute.xlu0 %1858
      %1860 = vrot.lane.b32.xlu0 %v1692, 17
      %v1861 = vpop.permute.xlu0 %1860
      %1862 = vrot.lane.b32.xlu0 %v1693, 17
      %v1863 = vpop.permute.xlu0 %1862
      %1864 = vrot.lane.b32.xlu0 %v1694, 17
      %v1865 = vpop.permute.xlu0 %1864
      %1866 = vrot.lane.b32.xlu0 %v1695, 17
      %v1867 = vpop.permute.xlu0 %1866
      %v1868 = vsel %vm435, %v1841, %v1843
      %v1869 = vsel %vm435, %v1843, %v1845
      %v1870 = vsel %vm435, %v1845, %v1847
      %v1871 = vsel %vm435, %v1847, %v1849
      %v1872 = vsel %vm435, %v1849, %v1851
      %v1873 = vsel %vm435, %v1851, %v1853
      %v1874 = vsel %vm435, %v1855, %v1857
      %v1875 = vsel %vm435, %v1857, %v1859
      %v1876 = vsel %vm435, %v1859, %v1861
      %v1877 = vsel %vm435, %v1861, %v1863
      %v1878 = vsel %vm435, %v1863, %v1865
      %v1879 = vsel %vm435, %v1865, %v1867
      %v1894 = vsel %vm435, %v1835, %v1841
      %v1895 = vsel %vm435, %v1837, %v1855
      %1896 = vrot.lane.b32.xlu0 %v1688, 33
      %v1897 = vpop.permute.xlu0 %1896
      %1898 = vrot.lane.b32.xlu0 %v1695, 33
      %v1899 = vpop.permute.xlu0 %1898
      %1902 = vrot.lane.b32.xlu0 %v1682, 1
      %v1903 = vpop.permute.xlu0 %1902
      %1904 = vrot.lane.b32.xlu0 %v1683, 1
      %v1905 = vpop.permute.xlu0 %1904
      %1906 = vrot.lane.b32.xlu0 %v1684, 1
      %v1907 = vpop.permute.xlu0 %1906
      %1908 = vrot.lane.b32.xlu0 %v1685, 1
      %v1909 = vpop.permute.xlu0 %1908
      %1910 = vrot.lane.b32.xlu0 %v1686, 1
      %v1911 = vpop.permute.xlu0 %1910
      %1912 = vrot.lane.b32.xlu0 %v1687, 1
      %v1913 = vpop.permute.xlu0 %1912
      %1914 = vrot.lane.b32.xlu0 %v1688, 1
      %v1915 = vpop.permute.xlu0 %1914
      %1916 = vrot.lane.b32.xlu0 %v1689, 1
      %v1917 = vpop.permute.xlu0 %1916
      %1918 = vrot.lane.b32.xlu0 %v1690, 1
      %v1919 = vpop.permute.xlu0 %1918
      %1920 = vrot.lane.b32.xlu0 %v1691, 1
      %v1921 = vpop.permute.xlu0 %1920
      %1922 = vrot.lane.b32.xlu0 %v1692, 1
      %v1923 = vpop.permute.xlu0 %1922
      %1924 = vrot.lane.b32.xlu0 %v1693, 1
      %v1925 = vpop.permute.xlu0 %1924
      %1926 = vrot.lane.b32.xlu0 %v1694, 1
      %v1927 = vpop.permute.xlu0 %1926
      %1928 = vrot.lane.b32.xlu0 %v1695, 1
      %v1929 = vpop.permute.xlu0 %1928
      %v1930 = vsel %vm461, %v1903, %v1905
      %v1931 = vsel %vm461, %v1905, %v1907
      %v1932 = vsel %vm461, %v1907, %v1909
      %v1933 = vsel %vm461, %v1909, %v1911
      %v1934 = vsel %vm461, %v1911, %v1913
      %v1935 = vsel %vm461, %v1913, %v1915
      %v1936 = vsel %vm461, %v1917, %v1919
      %v1937 = vsel %vm461, %v1919, %v1921
      %v1938 = vsel %vm461, %v1921, %v1923
      %v1939 = vsel %vm461, %v1923, %v1925
      %v1940 = vsel %vm461, %v1925, %v1927
      %v1941 = vsel %vm461, %v1927, %v1929
      %v1956 = vsel %vm461, %v1897, %v1903
      %v1957 = vsel %vm461, %v1899, %v1917
      %1958 = vrot.lane.b32.xlu0 %v1682, 127
      %v1959 = vpop.permute.xlu0 %1958
      %1960 = vrot.lane.b32.xlu0 %v1683, 127
      %v1961 = vpop.permute.xlu0 %1960
      %1962 = vrot.lane.b32.xlu0 %v1684, 127
      %v1963 = vpop.permute.xlu0 %1962
      %1964 = vrot.lane.b32.xlu0 %v1685, 127
      %v1965 = vpop.permute.xlu0 %1964
      %1966 = vrot.lane.b32.xlu0 %v1686, 127
      %v1967 = vpop.permute.xlu0 %1966
      %1968 = vrot.lane.b32.xlu0 %v1687, 127
      %v1969 = vpop.permute.xlu0 %1968
      %1970 = vrot.lane.b32.xlu0 %v1688, 127
      %v1971 = vpop.permute.xlu0 %1970
      %1972 = vrot.lane.b32.xlu0 %v1689, 127
      %v1973 = vpop.permute.xlu0 %1972
      %1974 = vrot.lane.b32.xlu0 %v1690, 127
      %v1975 = vpop.permute.xlu0 %1974
      %1976 = vrot.lane.b32.xlu0 %v1691, 127
      %v1977 = vpop.permute.xlu0 %1976
      %1978 = vrot.lane.b32.xlu0 %v1692, 127
      %v1979 = vpop.permute.xlu0 %1978
      %1980 = vrot.lane.b32.xlu0 %v1693, 127
      %v1981 = vpop.permute.xlu0 %1980
      %1982 = vrot.lane.b32.xlu0 %v1694, 127
      %v1983 = vpop.permute.xlu0 %1982
      %1984 = vrot.lane.b32.xlu0 %v1695, 127
      %v1985 = vpop.permute.xlu0 %1984
      %v1986 = vsel %vm484, %v1959, %v1961
      %v1987 = vsel %vm484, %v1961, %v1963
      %v1988 = vsel %vm484, %v1963, %v1965
      %v1989 = vsel %vm484, %v1965, %v1967
      %v1990 = vsel %vm484, %v1967, %v1969
      %v1991 = vsel %vm484, %v1969, %v1971
      %v1992 = vsel %vm484, %v1973, %v1975
      %v1993 = vsel %vm484, %v1975, %v1977
      %v1994 = vsel %vm484, %v1977, %v1979
      %v1995 = vsel %vm484, %v1979, %v1981
      %v1996 = vsel %vm484, %v1981, %v1983
      %v1997 = vsel %vm484, %v1983, %v1985
      %2012 = vrot.lane.b32.xlu0 %v1682, 95
      %v2013 = vpop.permute.xlu0 %2012
      %2014 = vrot.lane.b32.xlu0 %v1689, 95
      %v2015 = vpop.permute.xlu0 %2014
      %v2018 = vsel %vm495, %v1971, %v2013
      %v2019 = vsel %vm495, %v1985, %v2015
      %2020 = vrot.lane.b32.xlu0 %v1682, 111
      %v2021 = vpop.permute.xlu0 %2020
      %2022 = vrot.lane.b32.xlu0 %v1683, 111
      %v2023 = vpop.permute.xlu0 %2022
      %2024 = vrot.lane.b32.xlu0 %v1684, 111
      %v2025 = vpop.permute.xlu0 %2024
      %2026 = vrot.lane.b32.xlu0 %v1685, 111
      %v2027 = vpop.permute.xlu0 %2026
      %2028 = vrot.lane.b32.xlu0 %v1686, 111
      %v2029 = vpop.permute.xlu0 %2028
      %2030 = vrot.lane.b32.xlu0 %v1687, 111
      %v2031 = vpop.permute.xlu0 %2030
      %2032 = vrot.lane.b32.xlu0 %v1688, 111
      %v2033 = vpop.permute.xlu0 %2032
      %2034 = vrot.lane.b32.xlu0 %v1689, 111
      %v2035 = vpop.permute.xlu0 %2034
      %2036 = vrot.lane.b32.xlu0 %v1690, 111
      %v2037 = vpop.permute.xlu0 %2036
      %2038 = vrot.lane.b32.xlu0 %v1691, 111
      %v2039 = vpop.permute.xlu0 %2038
      %2040 = vrot.lane.b32.xlu0 %v1692, 111
      %v2041 = vpop.permute.xlu0 %2040
      %2042 = vrot.lane.b32.xlu0 %v1693, 111
      %v2043 = vpop.permute.xlu0 %2042
      %2044 = vrot.lane.b32.xlu0 %v1694, 111
      %v2045 = vpop.permute.xlu0 %2044
      %2046 = vrot.lane.b32.xlu0 %v1695, 111
      %v2047 = vpop.permute.xlu0 %2046
      %v2048 = vsel %vm511, %v2021, %v2023
      %v2049 = vsel %vm511, %v2023, %v2025
      %v2050 = vsel %vm511, %v2025, %v2027
      %v2051 = vsel %vm511, %v2027, %v2029
      %v2052 = vsel %vm511, %v2029, %v2031
      %v2053 = vsel %vm511, %v2031, %v2033
      %v2054 = vsel %vm511, %v2035, %v2037
      %v2055 = vsel %vm511, %v2037, %v2039
      %v2056 = vsel %vm511, %v2039, %v2041
      %v2057 = vsel %vm511, %v2041, %v2043
      %v2058 = vsel %vm511, %v2043, %v2045
      %v2059 = vsel %vm511, %v2045, %v2047
      %2074 = vrot.lane.b32.xlu0 %v1682, 79
      %v2075 = vpop.permute.xlu0 %2074
      %2076 = vrot.lane.b32.xlu0 %v1689, 79
      %v2077 = vpop.permute.xlu0 %2076
      %v2080 = vsel %vm522, %v2033, %v2075
      %v2081 = vsel %vm522, %v2047, %v2077
      %2082 = vrot.lane.b32.xlu0 %v1682, 110
      %v2083 = vpop.permute.xlu0 %2082
      %2084 = vrot.lane.b32.xlu0 %v1683, 110
      %v2085 = vpop.permute.xlu0 %2084
      %2086 = vrot.lane.b32.xlu0 %v1684, 110
      %v2087 = vpop.permute.xlu0 %2086
      %2088 = vrot.lane.b32.xlu0 %v1685, 110
      %v2089 = vpop.permute.xlu0 %2088
      %2090 = vrot.lane.b32.xlu0 %v1686, 110
      %v2091 = vpop.permute.xlu0 %2090
      %2092 = vrot.lane.b32.xlu0 %v1687, 110
      %v2093 = vpop.permute.xlu0 %2092
      %2094 = vrot.lane.b32.xlu0 %v1688, 110
      %v2095 = vpop.permute.xlu0 %2094
      %2096 = vrot.lane.b32.xlu0 %v1689, 110
      %v2097 = vpop.permute.xlu0 %2096
      %2098 = vrot.lane.b32.xlu0 %v1690, 110
      %v2099 = vpop.permute.xlu0 %2098
      %2100 = vrot.lane.b32.xlu0 %v1691, 110
      %v2101 = vpop.permute.xlu0 %2100
      %2102 = vrot.lane.b32.xlu0 %v1692, 110
      %v2103 = vpop.permute.xlu0 %2102
      %2104 = vrot.lane.b32.xlu0 %v1693, 110
      %v2105 = vpop.permute.xlu0 %2104
      %2106 = vrot.lane.b32.xlu0 %v1694, 110
      %v2107 = vpop.permute.xlu0 %2106
      %2108 = vrot.lane.b32.xlu0 %v1695, 110
      %v2109 = vpop.permute.xlu0 %2108
      %v2110 = vsel %vm538, %v2083, %v2085
      %v2111 = vsel %vm538, %v2085, %v2087
      %v2112 = vsel %vm538, %v2087, %v2089
      %v2113 = vsel %vm538, %v2089, %v2091
      %v2114 = vsel %vm538, %v2091, %v2093
      %v2115 = vsel %vm538, %v2093, %v2095
      %v2116 = vsel %vm538, %v2097, %v2099
      %v2117 = vsel %vm538, %v2099, %v2101
      %v2118 = vsel %vm538, %v2101, %v2103
      %v2119 = vsel %vm538, %v2103, %v2105
      %v2120 = vsel %vm538, %v2105, %v2107
      %v2121 = vsel %vm538, %v2107, %v2109
      %2136 = vrot.lane.b32.xlu0 %v1682, 78
      %v2137 = vpop.permute.xlu0 %2136
      %2138 = vrot.lane.b32.xlu0 %v1689, 78
      %v2139 = vpop.permute.xlu0 %2138
      %v2142 = vsel %vm549, %v2095, %v2137
      %v2143 = vsel %vm549, %v2109, %v2139
      %2144 = vrot.lane.b32.xlu0 %v1682, 109
      %v2145 = vpop.permute.xlu0 %2144
      %2146 = vrot.lane.b32.xlu0 %v1683, 109
      %v2147 = vpop.permute.xlu0 %2146
      %2148 = vrot.lane.b32.xlu0 %v1684, 109
      %v2149 = vpop.permute.xlu0 %2148
      %2150 = vrot.lane.b32.xlu0 %v1685, 109
      %v2151 = vpop.permute.xlu0 %2150
      %2152 = vrot.lane.b32.xlu0 %v1686, 109
      %v2153 = vpop.permute.xlu0 %2152
      %2154 = vrot.lane.b32.xlu0 %v1687, 109
      %v2155 = vpop.permute.xlu0 %2154
      %2156 = vrot.lane.b32.xlu0 %v1688, 109
      %v2157 = vpop.permute.xlu0 %2156
      %2158 = vrot.lane.b32.xlu0 %v1689, 109
      %v2159 = vpop.permute.xlu0 %2158
      %2160 = vrot.lane.b32.xlu0 %v1690, 109
      %v2161 = vpop.permute.xlu0 %2160
      %2162 = vrot.lane.b32.xlu0 %v1691, 109
      %v2163 = vpop.permute.xlu0 %2162
      %2164 = vrot.lane.b32.xlu0 %v1692, 109
      %v2165 = vpop.permute.xlu0 %2164
      %2166 = vrot.lane.b32.xlu0 %v1693, 109
      %v2167 = vpop.permute.xlu0 %2166
      %2168 = vrot.lane.b32.xlu0 %v1694, 109
      %v2169 = vpop.permute.xlu0 %2168
      %2170 = vrot.lane.b32.xlu0 %v1695, 109
      %v2171 = vpop.permute.xlu0 %2170
      %v2172 = vsel %vm565, %v2145, %v2147
      %v2173 = vsel %vm565, %v2147, %v2149
      %v2174 = vsel %vm565, %v2149, %v2151
      %v2175 = vsel %vm565, %v2151, %v2153
      %v2176 = vsel %vm565, %v2153, %v2155
      %v2177 = vsel %vm565, %v2155, %v2157
      %v2178 = vsel %vm565, %v2159, %v2161
      %v2179 = vsel %vm565, %v2161, %v2163
      %v2180 = vsel %vm565, %v2163, %v2165
      %v2181 = vsel %vm565, %v2165, %v2167
      %v2182 = vsel %vm565, %v2167, %v2169
      %v2183 = vsel %vm565, %v2169, %v2171
      %2198 = vrot.lane.b32.xlu0 %v1682, 77
      %v2199 = vpop.permute.xlu0 %2198
      %2200 = vrot.lane.b32.xlu0 %v1689, 77
      %v2201 = vpop.permute.xlu0 %2200
      %v2204 = vsel %vm582, %v2157, %v2199
      %v2205 = vsel %vm582, %v2171, %v2201
      %v2206 = vpack.c.bf16 %v1771, %v1770
      %v2207 = vpack.c.bf16 %v1750, %v1744
      %v2208 = vpack.c.bf16 %v1751, %v1745
      %v2209 = vpack.c.bf16 %v1752, %v1746
      %v2210 = vpack.c.bf16 %v1753, %v1747
      %v2211 = vpack.c.bf16 %v1754, %v1748
      %v2212 = vpack.c.bf16 %v1755, %v1749
      %v2213 = vpack.c.bf16 %v1833, %v1832
      %v2214 = vpack.c.bf16 %v1812, %v1806
      %v2215 = vpack.c.bf16 %v1813, %v1807
      %v2216 = vpack.c.bf16 %v1814, %v1808
      %v2217 = vpack.c.bf16 %v1815, %v1809
      %v2218 = vpack.c.bf16 %v1816, %v1810
      %v2219 = vpack.c.bf16 %v1817, %v1811
      %v2220 = vpack.c.bf16 %v1895, %v1894
      %v2221 = vpack.c.bf16 %v1874, %v1868
      %v2222 = vpack.c.bf16 %v1875, %v1869
      %v2223 = vpack.c.bf16 %v1876, %v1870
      %v2224 = vpack.c.bf16 %v1877, %v1871
      %v2225 = vpack.c.bf16 %v1878, %v1872
      %v2226 = vpack.c.bf16 %v1879, %v1873
      %v2227 = vpack.c.bf16 %v1957, %v1956
      %v2228 = vpack.c.bf16 %v1936, %v1930
      %v2229 = vpack.c.bf16 %v1937, %v1931
      %v2230 = vpack.c.bf16 %v1938, %v1932
      %v2231 = vpack.c.bf16 %v1939, %v1933
      %v2232 = vpack.c.bf16 %v1940, %v1934
      %v2233 = vpack.c.bf16 %v1941, %v1935
      %v2234 = vpack.c.bf16 %v1689, %v1682
      %v2235 = vpack.c.bf16 %v1690, %v1683
      %v2236 = vpack.c.bf16 %v1691, %v1684
      %v2237 = vpack.c.bf16 %v1692, %v1685
      %v2238 = vpack.c.bf16 %v1693, %v1686
      %v2239 = vpack.c.bf16 %v1694, %v1687
      %v2240 = vpack.c.bf16 %v1695, %v1688
      %v2241 = vpack.c.bf16 %v1992, %v1986
      %v2242 = vpack.c.bf16 %v1993, %v1987
      %v2243 = vpack.c.bf16 %v1994, %v1988
      %v2244 = vpack.c.bf16 %v1995, %v1989
      %v2245 = vpack.c.bf16 %v1996, %v1990
      %v2246 = vpack.c.bf16 %v1997, %v1991
      %v2247 = vpack.c.bf16 %v2019, %v2018
      %v2248 = vpack.c.bf16 %v2054, %v2048
      %v2249 = vpack.c.bf16 %v2055, %v2049
      %v2250 = vpack.c.bf16 %v2056, %v2050
      %v2251 = vpack.c.bf16 %v2057, %v2051
      %v2252 = vpack.c.bf16 %v2058, %v2052
      %v2253 = vpack.c.bf16 %v2059, %v2053
      %v2254 = vpack.c.bf16 %v2081, %v2080
      %v2255 = vpack.c.bf16 %v2116, %v2110
      %v2256 = vpack.c.bf16 %v2117, %v2111
      %v2257 = vpack.c.bf16 %v2118, %v2112
      %v2258 = vpack.c.bf16 %v2119, %v2113
      %v2259 = vpack.c.bf16 %v2120, %v2114
      %v2260 = vpack.c.bf16 %v2121, %v2115
      %v2261 = vpack.c.bf16 %v2143, %v2142
      %v2262 = vpack.c.bf16 %v2178, %v2172
      %v2263 = vpack.c.bf16 %v2179, %v2173
      %v2264 = vpack.c.bf16 %v2180, %v2174
      %v2265 = vpack.c.bf16 %v2181, %v2175
      %v2266 = vpack.c.bf16 %v2182, %v2176
      %v2267 = vpack.c.bf16 %v2183, %v2177
      %v2268 = vpack.c.bf16 %v2205, %v2204
      %v2269 = vld [vmem:[%s5] sm:$0xff]
      %v2270 = vld [vmem:[%s5 + $0x8] sm:$0xff]
      %v2271 = vld [vmem:[%s5 + $0x10] sm:$0xff]
      %v2272 = vld [vmem:[%s5 + $0x18] sm:$0xff]
      %v2273 = vld [vmem:[%s2] sm:$0xff]
      %v2274 = vld [vmem:[%s2 + $0x8] sm:$0xff]
      %v2275 = vld [vmem:[%s2 + $0x10] sm:$0xff]
      %v2276 = vld [vmem:[%s2 + $0x18] sm:$0xff]
      %2278 = vset.pattern.permute.xlu0 2
      %2279 = vperm.xlu0 %2278, %v2273
      %v2280 = vpop.permute.xlu0 %2279
      %2283 = vset.pattern.permute.xlu0 2
      %2284 = vperm.xlu0 %2283, %v2274
      %v2285 = vpop.permute.xlu0 %2284
      %2288 = vset.pattern.permute.xlu0 2
      %2289 = vperm.xlu0 %2288, %v2275
      %v2290 = vpop.permute.xlu0 %2289
      %2293 = vset.pattern.permute.xlu0 2
      %2294 = vperm.xlu0 %2293, %v2276
      %v2295 = vpop.permute.xlu0 %2294
      %v2301 = vunpack.c.l.b16 %v2269
      %v2302 = vunpack.c.h.b16 %v2269
      %v2303 = vunpack.c.l.b16 %v2270
      %v2304 = vunpack.c.h.b16 %v2270
      %v2305 = vunpack.c.l.b16 %v2271
      %v2306 = vunpack.c.h.b16 %v2271
      %v2307 = vunpack.c.l.b16 %v2272
      %v2308 = vunpack.c.h.b16 %v2272
      %v2309 = vpack.c.b16 %v2303, %v2301
      %v2310 = vpack.c.b16 %v2304, %v2302
      %v2311 = vpack.c.b16 %v2307, %v2305
      %v2312 = vpack.c.b16 %v2308, %v2306
      %v2316 = vsel %vm758, %v2310, 0
      %v2319 = vsel %vm758, %v2312, 0
      %2321 = vmatprep.subr.bf16.mxu0 %v2256
      %2322 = vmatpush1.bf16.msra.mxu0 %v2255
      %2323 = vmatprep.subr.bf16.mxu0 %v2249
      %2324 = vmatpush1.bf16.msra.mxu0 %v2248
      %2325 = vmatprep.subr.bf16.mxu0 %v2242
      %2326 = vmatpush1.bf16.msra.mxu0 %v2241
      %2327 = vmatprep.subr.bf16.mxu0 %v2235
      %2328 = vmatpush1.bf16.msra.mxu0 %v2234
      %2329 = vmatprep.subr.bf16.mxu0 %v2228
      %2330 = vmatpush1.bf16.msra.mxu0 %v2227
      %2331 = vmatprep.subr.bf16.mxu0 %v2221
      %2332 = vmatpush1.bf16.msra.mxu0 %v2220
      %2333 = vmatprep.subr.bf16.mxu0 %v2214
      %2334 = vmatpush1.bf16.msra.mxu0 %v2213
      %2335 = vmatprep.subr.bf16.mxu0 %v2207
      %2336 = vmatpush1.bf16.msra.mxu0 %v2206
      %2337 = vmatprep.subr.bf16.mxu0 0
      %2338 = vmatpush2.bf16.msra.mxu0 0
      %2339 = vmatprep.subr.bf16.mxu0 0
      %2340 = vmatpush2.bf16.msra.mxu0 0
      %2341 = vmatprep.subr.bf16.mxu0 0
      %2342 = vmatpush2.bf16.msra.mxu0 0
      %2343 = vmatprep.subr.bf16.mxu0 0
      %2344 = vmatpush2.bf16.msra.mxu0 0
      %2345 = vmatprep.subr.bf16.mxu0 0
      %2346 = vmatpush2.bf16.msra.mxu0 0
      %2347 = vmatprep.subr.bf16.mxu0 0
      %2348 = vmatpush2.bf16.msra.mxu0 0
      %2349 = vmatprep.subr.bf16.mxu0 0
      %2350 = vmatpush2.bf16.msra.mxu0 0
      %2351 = vmatprep.subr.bf16.mxu0 %v2263
      %2352 = vmatpush2.bf16.msra.mxu0 %v2262
      %2353 = vmatprep.mubr.bf16.mxu0 %v2316
      %2354 = vmatmul.mubr.bf16.gmra.mxu0 %v2309
      %v2355 = vpop.f32.mrf.mxu0
      %v2356 = vadd.f32 %v2280, %v2355
      %v2357 = vpop.f32.mrf.mxu0
      %v2358 = vadd.f32 %v2280, %v2357
      %v2359 = vpop.f32.mrf.mxu0
      %v2360 = vadd.f32 %v2285, %v2359
      %v2361 = vpop.f32.mrf.mxu0
      %v2362 = vadd.f32 %v2285, %v2361
      %2363 = vmatprep.mubr.bf16.mxu0 %v2319
      %2364 = vmatmul.mubr.bf16.gmra.mxu0 %v2311
      %v2365 = vpop.f32.mrf.mxu0
      %v2366 = vadd.f32 %v2290, %v2365
      %v2367 = vpop.f32.mrf.mxu0
      %v2368 = vadd.f32 %v2290, %v2367
      %v2369 = vpop.f32.mrf.mxu0
      %v2370 = vadd.f32 %v2295, %v2369
      %v2371 = vpop.f32.mrf.mxu0
      %v2372 = vadd.f32 %v2295, %v2371
      %2373 = vdwg.mxu0
      %2374 = vmatprep.subr.bf16.mxu0 %v2258
      %2375 = vmatpush1.bf16.msra.mxu0 %v2257
      %2376 = vmatprep.subr.bf16.mxu0 %v2251
      %2377 = vmatpush1.bf16.msra.mxu0 %v2250
      %2378 = vmatprep.subr.bf16.mxu0 %v2244
      %2379 = vmatpush1.bf16.msra.mxu0 %v2243
      %2380 = vmatprep.subr.bf16.mxu0 %v2237
      %2381 = vmatpush1.bf16.msra.mxu0 %v2236
      %2382 = vmatprep.subr.bf16.mxu0 %v2230
      %2383 = vmatpush1.bf16.msra.mxu0 %v2229
      %2384 = vmatprep.subr.bf16.mxu0 %v2223
      %2385 = vmatpush1.bf16.msra.mxu0 %v2222
      %2386 = vmatprep.subr.bf16.mxu0 %v2216
      %2387 = vmatpush1.bf16.msra.mxu0 %v2215
      %2388 = vmatprep.subr.bf16.mxu0 %v2209
      %2389 = vmatpush1.bf16.msra.mxu0 %v2208
      %2390 = vmatprep.subr.bf16.mxu0 0
      %2391 = vmatpush2.bf16.msra.mxu0 0
      %2392 = vmatprep.subr.bf16.mxu0 0
      %2393 = vmatpush2.bf16.msra.mxu0 0
      %2394 = vmatprep.subr.bf16.mxu0 0
      %2395 = vmatpush2.bf16.msra.mxu0 0
      %2396 = vmatprep.subr.bf16.mxu0 0
      %2397 = vmatpush2.bf16.msra.mxu0 0
      %2398 = vmatprep.subr.bf16.mxu0 0
      %2399 = vmatpush2.bf16.msra.mxu0 0
      %2400 = vmatprep.subr.bf16.mxu0 0
      %2401 = vmatpush2.bf16.msra.mxu0 0
      %2402 = vmatprep.subr.bf16.mxu0 0
      %2403 = vmatpush2.bf16.msra.mxu0 0
      %2404 = vmatprep.subr.bf16.mxu0 %v2265
      %2405 = vmatpush2.bf16.msra.mxu0 %v2264
      %2406 = vmatprep.mubr.bf16.mxu0 %v2316
      %2407 = vmatmul.mubr.bf16.gmra.mxu0 %v2309
      %v2408 = vpop.f32.mrf.mxu0
      %v2409 = vadd.f32 %v2280, %v2408
      %v2410 = vpop.f32.mrf.mxu0
      %v2411 = vadd.f32 %v2280, %v2410
      %v2412 = vpop.f32.mrf.mxu0
      %v2413 = vadd.f32 %v2285, %v2412
      %v2414 = vpop.f32.mrf.mxu0
      %v2415 = vadd.f32 %v2285, %v2414
      %2416 = vmatprep.mubr.bf16.mxu0 %v2319
      %2417 = vmatmul.mubr.bf16.gmra.mxu0 %v2311
      %v2418 = vpop.f32.mrf.mxu0
      %v2419 = vadd.f32 %v2290, %v2418
      %v2420 = vpop.f32.mrf.mxu0
      %v2421 = vadd.f32 %v2290, %v2420
      %v2422 = vpop.f32.mrf.mxu0
      %v2423 = vadd.f32 %v2295, %v2422
      %v2424 = vpop.f32.mrf.mxu0
      %v2425 = vadd.f32 %v2295, %v2424
      %2426 = vdwg.mxu0
      %2427 = vmatprep.subr.bf16.mxu0 %v2260
      %2428 = vmatpush1.bf16.msra.mxu0 %v2259
      %2429 = vmatprep.subr.bf16.mxu0 %v2253
      %2430 = vmatpush1.bf16.msra.mxu0 %v2252
      %2431 = vmatprep.subr.bf16.mxu0 %v2246
      %2432 = vmatpush1.bf16.msra.mxu0 %v2245
      %2433 = vmatprep.subr.bf16.mxu0 %v2239
      %2434 = vmatpush1.bf16.msra.mxu0 %v2238
      %2435 = vmatprep.subr.bf16.mxu0 %v2232
      %2436 = vmatpush1.bf16.msra.mxu0 %v2231
      %2437 = vmatprep.subr.bf16.mxu0 %v2225
      %2438 = vmatpush1.bf16.msra.mxu0 %v2224
      %2439 = vmatprep.subr.bf16.mxu0 %v2218
      %2440 = vmatpush1.bf16.msra.mxu0 %v2217
      %2441 = vmatprep.subr.bf16.mxu0 %v2211
      %2442 = vmatpush1.bf16.msra.mxu0 %v2210
      %2443 = vmatprep.subr.bf16.mxu0 0
      %2444 = vmatpush2.bf16.msra.mxu0 0
      %2445 = vmatprep.subr.bf16.mxu0 0
      %2446 = vmatpush2.bf16.msra.mxu0 0
      %2447 = vmatprep.subr.bf16.mxu0 0
      %2448 = vmatpush2.bf16.msra.mxu0 0
      %2449 = vmatprep.subr.bf16.mxu0 0
      %2450 = vmatpush2.bf16.msra.mxu0 0
      %2451 = vmatprep.subr.bf16.mxu0 0
      %2452 = vmatpush2.bf16.msra.mxu0 0
      %2453 = vmatprep.subr.bf16.mxu0 0
      %2454 = vmatpush2.bf16.msra.mxu0 0
      %2455 = vmatprep.subr.bf16.mxu0 0
      %2456 = vmatpush2.bf16.msra.mxu0 0
      %2457 = vmatprep.subr.bf16.mxu0 %v2267
      %2458 = vmatpush2.bf16.msra.mxu0 %v2266
      %2459 = vmatprep.mubr.bf16.mxu0 %v2316
      %2460 = vmatmul.mubr.bf16.gmra.mxu0 %v2309
      %v2461 = vpop.f32.mrf.mxu0
      %v2462 = vadd.f32 %v2280, %v2461
      %v2463 = vpop.f32.mrf.mxu0
      %v2464 = vadd.f32 %v2280, %v2463
      %v2465 = vpop.f32.mrf.mxu0
      %v2466 = vadd.f32 %v2285, %v2465
      %v2467 = vpop.f32.mrf.mxu0
      %v2468 = vadd.f32 %v2285, %v2467
      %2469 = vmatprep.mubr.bf16.mxu0 %v2319
      %2470 = vmatmul.mubr.bf16.gmra.mxu0 %v2311
      %v2471 = vpop.f32.mrf.mxu0
      %v2472 = vadd.f32 %v2290, %v2471
      %v2473 = vpop.f32.mrf.mxu0
      %v2474 = vadd.f32 %v2290, %v2473
      %v2475 = vpop.f32.mrf.mxu0
      %v2476 = vadd.f32 %v2295, %v2475
      %v2477 = vpop.f32.mrf.mxu0
      %v2478 = vadd.f32 %v2295, %v2477
      %2479 = vdwg.mxu0
      %2480 = vmatprep.subr.bf16.mxu0 0
      %2481 = vmatpush1.bf16.msra.mxu0 %v2261
      %2482 = vmatprep.subr.bf16.mxu0 0
      %2483 = vmatpush1.bf16.msra.mxu0 %v2254
      %2484 = vmatprep.subr.bf16.mxu0 0
      %2485 = vmatpush1.bf16.msra.mxu0 %v2247
      %2486 = vmatprep.subr.bf16.mxu0 0
      %2487 = vmatpush1.bf16.msra.mxu0 %v2240
      %2488 = vmatprep.subr.bf16.mxu0 0
      %2489 = vmatpush1.bf16.msra.mxu0 %v2233
      %2490 = vmatprep.subr.bf16.mxu0 0
      %2491 = vmatpush1.bf16.msra.mxu0 %v2226
      %2492 = vmatprep.subr.bf16.mxu0 0
      %2493 = vmatpush1.bf16.msra.mxu0 %v2219
      %2494 = vmatprep.subr.bf16.mxu0 0
      %2495 = vmatpush1.bf16.msra.mxu0 %v2212
      %2496 = vmatprep.subr.bf16.mxu0 0
      %2497 = vmatpush2.bf16.msra.mxu0 0
      %2498 = vmatprep.subr.bf16.mxu0 0
      %2499 = vmatpush2.bf16.msra.mxu0 0
      %2500 = vmatprep.subr.bf16.mxu0 0
      %2501 = vmatpush2.bf16.msra.mxu0 0
      %2502 = vmatprep.subr.bf16.mxu0 0
      %2503 = vmatpush2.bf16.msra.mxu0 0
      %2504 = vmatprep.subr.bf16.mxu0 0
      %2505 = vmatpush2.bf16.msra.mxu0 0
      %2506 = vmatprep.subr.bf16.mxu0 0
      %2507 = vmatpush2.bf16.msra.mxu0 0
      %2508 = vmatprep.subr.bf16.mxu0 0
      %2509 = vmatpush2.bf16.msra.mxu0 0
      %2510 = vmatprep.subr.bf16.mxu0 0
      %2511 = vmatpush2.bf16.msra.mxu0 %v2268
      %2512 = vmatprep.mubr.bf16.mxu0 %v2316
      %2513 = vmatmul.mubr.bf16.gmra.mxu0 %v2309
      %v2514 = vpop.f32.mrf.mxu0
      %v2515 = vadd.f32 %v2280, %v2514
      %v2516 = vpop.f32.mrf.mxu0
      %v2517 = vpop.f32.mrf.mxu0
      %v2518 = vadd.f32 %v2285, %v2517
      %v2519 = vpop.f32.mrf.mxu0
      %2520 = vmatprep.mubr.bf16.mxu0 %v2319
      %2521 = vmatmul.mubr.bf16.gmra.mxu0 %v2311
      %v2522 = vpop.f32.mrf.mxu0
      %v2523 = vadd.f32 %v2290, %v2522
      %v2524 = vpop.f32.mrf.mxu0
      %v2525 = vpop.f32.mrf.mxu0
      %v2526 = vadd.f32 %v2295, %v2525
      %v2527 = vpop.f32.mrf.mxu0
      %2528 = vdwg.mxu0
      %v2529 = vand.u32 2147483647, %v2356
      %v2530 = vand.u32 2147483647, %v2358
      %v2531 = vand.u32 2147483647, %v2409
      %v2532 = vand.u32 2147483647, %v2411
      %v2533 = vand.u32 2147483647, %v2462
      %v2534 = vand.u32 2147483647, %v2464
      %v2535 = vand.u32 2147483647, %v2515
      %v2536 = vand.u32 2147483647, %v2360
      %v2537 = vand.u32 2147483647, %v2362
      %v2538 = vand.u32 2147483647, %v2413
      %v2539 = vand.u32 2147483647, %v2415
      %v2540 = vand.u32 2147483647, %v2466
      %v2541 = vand.u32 2147483647, %v2468
      %v2542 = vand.u32 2147483647, %v2518
      %v2543 = vand.u32 2147483647, %v2366
      %v2544 = vand.u32 2147483647, %v2368
      %v2545 = vand.u32 2147483647, %v2419
      %v2546 = vand.u32 2147483647, %v2421
      %v2547 = vand.u32 2147483647, %v2472
      %v2548 = vand.u32 2147483647, %v2474
      %v2549 = vand.u32 2147483647, %v2523
      %v2550 = vand.u32 2147483647, %v2370
      %v2551 = vand.u32 2147483647, %v2372
      %v2552 = vand.u32 2147483647, %v2423
      %v2553 = vand.u32 2147483647, %v2425
      %v2554 = vand.u32 2147483647, %v2476
      %v2555 = vand.u32 2147483647, %v2478
      %v2556 = vand.u32 2147483647, %v2526
      %v2557 = vsub.f32 0.0, %v2529
      %v2558 = vsub.f32 0.0, %v2530
      %v2559 = vsub.f32 0.0, %v2531
      %v2560 = vsub.f32 0.0, %v2532
      %v2561 = vsub.f32 0.0, %v2533
      %v2562 = vsub.f32 0.0, %v2534
      %v2563 = vsub.f32 0.0, %v2535
      %v2564 = vsub.f32 0.0, %v2536
      %v2565 = vsub.f32 0.0, %v2537
      %v2566 = vsub.f32 0.0, %v2538
      %v2567 = vsub.f32 0.0, %v2539
      %v2568 = vsub.f32 0.0, %v2540
      %v2569 = vsub.f32 0.0, %v2541
      %v2570 = vsub.f32 0.0, %v2542
      %v2571 = vsub.f32 0.0, %v2543
      %v2572 = vsub.f32 0.0, %v2544
      %v2573 = vsub.f32 0.0, %v2545
      %v2574 = vsub.f32 0.0, %v2546
      %v2575 = vsub.f32 0.0, %v2547
      %v2576 = vsub.f32 0.0, %v2548
      %v2577 = vsub.f32 0.0, %v2549
      %v2578 = vsub.f32 0.0, %v2550
      %v2579 = vsub.f32 0.0, %v2551
      %v2580 = vsub.f32 0.0, %v2552
      %v2581 = vsub.f32 0.0, %v2553
      %v2582 = vsub.f32 0.0, %v2554
      %v2583 = vsub.f32 0.0, %v2555
      %v2584 = vsub.f32 0.0, %v2556
      %v2585 = vmul.f32 %v2557, 1.442695
      %v2586 = vpow.pop %v2585
      %v2587 = vmul.f32 %v2558, 1.442695
      %v2588 = vpow.pop %v2587
      %v2589 = vmul.f32 %v2559, 1.442695
      %v2590 = vpow.pop %v2589
      %v2591 = vmul.f32 %v2560, 1.442695
      %v2592 = vpow.pop %v2591
      %v2593 = vmul.f32 %v2561, 1.442695
      %v2594 = vpow.pop %v2593
      %v2595 = vmul.f32 %v2562, 1.442695
      %v2596 = vpow.pop %v2595
      %v2597 = vmul.f32 %v2563, 1.442695
      %v2598 = vpow.pop %v2597
      %v2599 = vmul.f32 %v2564, 1.442695
      %v2600 = vpow.pop %v2599
      %v2601 = vmul.f32 %v2565, 1.442695
      %v2602 = vpow.pop %v2601
      %v2603 = vmul.f32 %v2566, 1.442695
      %v2604 = vpow.pop %v2603
      %v2605 = vmul.f32 %v2567, 1.442695
      %v2606 = vpow.pop %v2605
      %v2607 = vmul.f32 %v2568, 1.442695
      %v2608 = vpow.pop %v2607
      %v2609 = vmul.f32 %v2569, 1.442695
      %v2610 = vpow.pop %v2609
      %v2611 = vmul.f32 %v2570, 1.442695
      %v2612 = vpow.pop %v2611
      %v2613 = vmul.f32 %v2571, 1.442695
      %v2614 = vpow.pop %v2613
      %v2615 = vmul.f32 %v2572, 1.442695
      %v2616 = vpow.pop %v2615
      %v2617 = vmul.f32 %v2573, 1.442695
      %v2618 = vpow.pop %v2617
      %v2619 = vmul.f32 %v2574, 1.442695
      %v2620 = vpow.pop %v2619
      %v2621 = vmul.f32 %v2575, 1.442695
      %v2622 = vpow.pop %v2621
      %v2623 = vmul.f32 %v2576, 1.442695
      %v2624 = vpow.pop %v2623
      %v2625 = vmul.f32 %v2577, 1.442695
      %v2626 = vpow.pop %v2625
      %v2627 = vmul.f32 %v2578, 1.442695
      %v2628 = vpow.pop %v2627
      %v2629 = vmul.f32 %v2579, 1.442695
      %v2630 = vpow.pop %v2629
      %v2631 = vmul.f32 %v2580, 1.442695
      %v2632 = vpow.pop %v2631
      %v2633 = vmul.f32 %v2581, 1.442695
      %v2634 = vpow.pop %v2633
      %v2635 = vmul.f32 %v2582, 1.442695
      %v2636 = vpow.pop %v2635
      %v2637 = vmul.f32 %v2583, 1.442695
      %v2638 = vpow.pop %v2637
      %v2639 = vmul.f32 %v2584, 1.442695
      %v2640 = vpow.pop %v2639
      %v2641 = vadd.f32 %v2586, 1.0
      %v2642 = vadd.f32 %v2588, 1.0
      %v2643 = vadd.f32 %v2590, 1.0
      %v2644 = vadd.f32 %v2592, 1.0
      %v2645 = vadd.f32 %v2594, 1.0
      %v2646 = vadd.f32 %v2596, 1.0
      %v2647 = vadd.f32 %v2598, 1.0
      %v2648 = vadd.f32 %v2600, 1.0
      %v2649 = vadd.f32 %v2602, 1.0
      %v2650 = vadd.f32 %v2604, 1.0
      %v2651 = vadd.f32 %v2606, 1.0
      %v2652 = vadd.f32 %v2608, 1.0
      %v2653 = vadd.f32 %v2610, 1.0
      %v2654 = vadd.f32 %v2612, 1.0
      %v2655 = vadd.f32 %v2614, 1.0
      %v2656 = vadd.f32 %v2616, 1.0
      %v2657 = vadd.f32 %v2618, 1.0
      %v2658 = vadd.f32 %v2620, 1.0
      %v2659 = vadd.f32 %v2622, 1.0
      %v2660 = vadd.f32 %v2624, 1.0
      %v2661 = vadd.f32 %v2626, 1.0
      %v2662 = vadd.f32 %v2628, 1.0
      %v2663 = vadd.f32 %v2630, 1.0
      %v2664 = vadd.f32 %v2632, 1.0
      %v2665 = vadd.f32 %v2634, 1.0
      %v2666 = vadd.f32 %v2636, 1.0
      %v2667 = vadd.f32 %v2638, 1.0
      %v2668 = vadd.f32 %v2640, 1.0
      %v2669 = vrcp.pop %v2641
      %v2670 = vmul.f32 1.0, %v2669
      %v2671 = vrcp.pop %v2642
      %v2672 = vmul.f32 1.0, %v2671
      %v2673 = vrcp.pop %v2643
      %v2674 = vmul.f32 1.0, %v2673
      %v2675 = vrcp.pop %v2644
      %v2676 = vmul.f32 1.0, %v2675
      %v2677 = vrcp.pop %v2645
      %v2678 = vmul.f32 1.0, %v2677
      %v2679 = vrcp.pop %v2646
      %v2680 = vmul.f32 1.0, %v2679
      %v2681 = vrcp.pop %v2647
      %v2682 = vmul.f32 1.0, %v2681
      %v2683 = vrcp.pop %v2648
      %v2684 = vmul.f32 1.0, %v2683
      %v2685 = vrcp.pop %v2649
      %v2686 = vmul.f32 1.0, %v2685
      %v2687 = vrcp.pop %v2650
      %v2688 = vmul.f32 1.0, %v2687
      %v2689 = vrcp.pop %v2651
      %v2690 = vmul.f32 1.0, %v2689
      %v2691 = vrcp.pop %v2652
      %v2692 = vmul.f32 1.0, %v2691
      %v2693 = vrcp.pop %v2653
      %v2694 = vmul.f32 1.0, %v2693
      %v2695 = vrcp.pop %v2654
      %v2696 = vmul.f32 1.0, %v2695
      %v2697 = vrcp.pop %v2655
      %v2698 = vmul.f32 1.0, %v2697
      %v2699 = vrcp.pop %v2656
      %v2700 = vmul.f32 1.0, %v2699
      %v2701 = vrcp.pop %v2657
      %v2702 = vmul.f32 1.0, %v2701
      %v2703 = vrcp.pop %v2658
      %v2704 = vmul.f32 1.0, %v2703
      %v2705 = vrcp.pop %v2659
      %v2706 = vmul.f32 1.0, %v2705
      %v2707 = vrcp.pop %v2660
      %v2708 = vmul.f32 1.0, %v2707
      %v2709 = vrcp.pop %v2661
      %v2710 = vmul.f32 1.0, %v2709
      %v2711 = vrcp.pop %v2662
      %v2712 = vmul.f32 1.0, %v2711
      %v2713 = vrcp.pop %v2663
      %v2714 = vmul.f32 1.0, %v2713
      %v2715 = vrcp.pop %v2664
      %v2716 = vmul.f32 1.0, %v2715
      %v2717 = vrcp.pop %v2665
      %v2718 = vmul.f32 1.0, %v2717
      %v2719 = vrcp.pop %v2666
      %v2720 = vmul.f32 1.0, %v2719
      %v2721 = vrcp.pop %v2667
      %v2722 = vmul.f32 1.0, %v2721
      %v2723 = vrcp.pop %v2668
      %v2724 = vmul.f32 1.0, %v2723
      %vm2725 = vcmp.ge.f32.partialorder %v2356, 0.0
      %vm2726 = vcmp.ge.f32.partialorder %v2358, 0.0
      %vm2727 = vcmp.ge.f32.partialorder %v2409, 0.0
      %vm2728 = vcmp.ge.f32.partialorder %v2411, 0.0
      %vm2729 = vcmp.ge.f32.partialorder %v2462, 0.0
      %vm2730 = vcmp.ge.f32.partialorder %v2464, 0.0
      %vm2731 = vcmp.ge.f32.partialorder %v2515, 0.0
      %vm2732 = vcmp.ge.f32.partialorder %v2360, 0.0
      %vm2733 = vcmp.ge.f32.partialorder %v2362, 0.0
      %vm2734 = vcmp.ge.f32.partialorder %v2413, 0.0
      %vm2735 = vcmp.ge.f32.partialorder %v2415, 0.0
      %vm2736 = vcmp.ge.f32.partialorder %v2466, 0.0
      %vm2737 = vcmp.ge.f32.partialorder %v2468, 0.0
      %vm2738 = vcmp.ge.f32.partialorder %v2518, 0.0
      %vm2739 = vcmp.ge.f32.partialorder %v2366, 0.0
      %vm2740 = vcmp.ge.f32.partialorder %v2368, 0.0
      %vm2741 = vcmp.ge.f32.partialorder %v2419, 0.0
      %vm2742 = vcmp.ge.f32.partialorder %v2421, 0.0
      %vm2743 = vcmp.ge.f32.partialorder %v2472, 0.0
      %vm2744 = vcmp.ge.f32.partialorder %v2474, 0.0
      %vm2745 = vcmp.ge.f32.partialorder %v2523, 0.0
      %vm2746 = vcmp.ge.f32.partialorder %v2370, 0.0
      %vm2747 = vcmp.ge.f32.partialorder %v2372, 0.0
      %vm2748 = vcmp.ge.f32.partialorder %v2423, 0.0
      %vm2749 = vcmp.ge.f32.partialorder %v2425, 0.0
      %vm2750 = vcmp.ge.f32.partialorder %v2476, 0.0
      %vm2751 = vcmp.ge.f32.partialorder %v2478, 0.0
      %vm2752 = vcmp.ge.f32.partialorder %v2526, 0.0
      %v2753 = vsub.f32 1.0, %v2670
      %v2754 = vsub.f32 1.0, %v2672
      %v2755 = vsub.f32 1.0, %v2674
      %v2756 = vsub.f32 1.0, %v2676
      %v2757 = vsub.f32 1.0, %v2678
      %v2758 = vsub.f32 1.0, %v2680
      %v2759 = vsub.f32 1.0, %v2682
      %v2760 = vsub.f32 1.0, %v2684
      %v2761 = vsub.f32 1.0, %v2686
      %v2762 = vsub.f32 1.0, %v2688
      %v2763 = vsub.f32 1.0, %v2690
      %v2764 = vsub.f32 1.0, %v2692
      %v2765 = vsub.f32 1.0, %v2694
      %v2766 = vsub.f32 1.0, %v2696
      %v2767 = vsub.f32 1.0, %v2698
      %v2768 = vsub.f32 1.0, %v2700
      %v2769 = vsub.f32 1.0, %v2702
      %v2770 = vsub.f32 1.0, %v2704
      %v2771 = vsub.f32 1.0, %v2706
      %v2772 = vsub.f32 1.0, %v2708
      %v2773 = vsub.f32 1.0, %v2710
      %v2774 = vsub.f32 1.0, %v2712
      %v2775 = vsub.f32 1.0, %v2714
      %v2776 = vsub.f32 1.0, %v2716
      %v2777 = vsub.f32 1.0, %v2718
      %v2778 = vsub.f32 1.0, %v2720
      %v2779 = vsub.f32 1.0, %v2722
      %v2780 = vsub.f32 1.0, %v2724
      %v2781 = vsel %vm2725, %v2670, %v2753
      %v2782 = vsel %vm2726, %v2672, %v2754
      %v2783 = vsel %vm2727, %v2674, %v2755
      %v2784 = vsel %vm2728, %v2676, %v2756
      %v2785 = vsel %vm2729, %v2678, %v2757
      %v2786 = vsel %vm2730, %v2680, %v2758
      %v2787 = vsel %vm2731, %v2682, %v2759
      %v2788 = vsel %vm2732, %v2684, %v2760
      %v2789 = vsel %vm2733, %v2686, %v2761
      %v2790 = vsel %vm2734, %v2688, %v2762
      %v2791 = vsel %vm2735, %v2690, %v2763
      %v2792 = vsel %vm2736, %v2692, %v2764
      %v2793 = vsel %vm2737, %v2694, %v2765
      %v2794 = vsel %vm2738, %v2696, %v2766
      %v2795 = vsel %vm2739, %v2698, %v2767
      %v2796 = vsel %vm2740, %v2700, %v2768
      %v2797 = vsel %vm2741, %v2702, %v2769
      %v2798 = vsel %vm2742, %v2704, %v2770
      %v2799 = vsel %vm2743, %v2706, %v2771
      %v2800 = vsel %vm2744, %v2708, %v2772
      %v2801 = vsel %vm2745, %v2710, %v2773
      %v2802 = vsel %vm2746, %v2712, %v2774
      %v2803 = vsel %vm2747, %v2714, %v2775
      %v2804 = vsel %vm2748, %v2716, %v2776
      %v2805 = vsel %vm2749, %v2718, %v2777
      %v2806 = vsel %vm2750, %v2720, %v2778
      %v2807 = vsel %vm2751, %v2722, %v2779
      %v2808 = vsel %vm2752, %v2724, %v2780
      %v2809 = vmul.f32 %v2781, %v999
      %v2810 = vmul.f32 %v2782, %v1003
      %v2811 = vmul.f32 %v2783, %v1007
      %v2812 = vmul.f32 %v2784, %v1011
      %v2813 = vmul.f32 %v2785, %v1015
      %v2814 = vmul.f32 %v2786, %v1019
      %v2815 = vmul.f32 %v2787, %v1023
      %v2816 = vmul.f32 %v2788, %v999
      %v2817 = vmul.f32 %v2789, %v1003
      %v2818 = vmul.f32 %v2790, %v1007
      %v2819 = vmul.f32 %v2791, %v1011
      %v2820 = vmul.f32 %v2792, %v1015
      %v2821 = vmul.f32 %v2793, %v1019
      %v2822 = vmul.f32 %v2794, %v1023
      %v2823 = vmul.f32 %v2795, %v999
      %v2824 = vmul.f32 %v2796, %v1003
      %v2825 = vmul.f32 %v2797, %v1007
      %v2826 = vmul.f32 %v2798, %v1011
      %v2827 = vmul.f32 %v2799, %v1015
      %v2828 = vmul.f32 %v2800, %v1019
      %v2829 = vmul.f32 %v2801, %v1023
      %v2830 = vmul.f32 %v2802, %v999
      %v2831 = vmul.f32 %v2803, %v1003
      %v2832 = vmul.f32 %v2804, %v1007
      %v2833 = vmul.f32 %v2805, %v1011
      %v2834 = vmul.f32 %v2806, %v1015
      %v2835 = vmul.f32 %v2807, %v1019
      %v2836 = vmul.f32 %v2808, %v1023
      %2841 = vrot.lane.b32.xlu0 %v2815, 51
      %v2842 = vpop.permute.xlu0 %2841
      %2843 = vrot.lane.b32.xlu0 %v2822, 51
      %v2844 = vpop.permute.xlu0 %2843
      %2845 = vrot.lane.b32.xlu0 %v2829, 51
      %v2846 = vpop.permute.xlu0 %2845
      %2847 = vrot.lane.b32.xlu0 %v2836, 51
      %v2848 = vpop.permute.xlu0 %2847
      %2877 = vrot.lane.b32.xlu0 %v2809, 19
      %v2878 = vpop.permute.xlu0 %2877
      %2879 = vrot.lane.b32.xlu0 %v2810, 19
      %v2880 = vpop.permute.xlu0 %2879
      %2881 = vrot.lane.b32.xlu0 %v2811, 19
      %v2882 = vpop.permute.xlu0 %2881
      %2883 = vrot.lane.b32.xlu0 %v2812, 19
      %v2884 = vpop.permute.xlu0 %2883
      %2885 = vrot.lane.b32.xlu0 %v2813, 19
      %v2886 = vpop.permute.xlu0 %2885
      %2887 = vrot.lane.b32.xlu0 %v2814, 19
      %v2888 = vpop.permute.xlu0 %2887
      %2889 = vrot.lane.b32.xlu0 %v2815, 19
      %v2890 = vpop.permute.xlu0 %2889
      %2891 = vrot.lane.b32.xlu0 %v2816, 19
      %v2892 = vpop.permute.xlu0 %2891
      %2893 = vrot.lane.b32.xlu0 %v2817, 19
      %v2894 = vpop.permute.xlu0 %2893
      %2895 = vrot.lane.b32.xlu0 %v2818, 19
      %v2896 = vpop.permute.xlu0 %2895
      %2897 = vrot.lane.b32.xlu0 %v2819, 19
      %v2898 = vpop.permute.xlu0 %2897
      %2899 = vrot.lane.b32.xlu0 %v2820, 19
      %v2900 = vpop.permute.xlu0 %2899
      %2901 = vrot.lane.b32.xlu0 %v2821, 19
      %v2902 = vpop.permute.xlu0 %2901
      %2903 = vrot.lane.b32.xlu0 %v2822, 19
      %v2904 = vpop.permute.xlu0 %2903
      %2905 = vrot.lane.b32.xlu0 %v2823, 19
      %v2906 = vpop.permute.xlu0 %2905
      %2907 = vrot.lane.b32.xlu0 %v2824, 19
      %v2908 = vpop.permute.xlu0 %2907
      %2909 = vrot.lane.b32.xlu0 %v2825, 19
      %v2910 = vpop.permute.xlu0 %2909
      %2911 = vrot.lane.b32.xlu0 %v2826, 19
      %v2912 = vpop.permute.xlu0 %2911
      %2913 = vrot.lane.b32.xlu0 %v2827, 19
      %v2914 = vpop.permute.xlu0 %2913
      %2915 = vrot.lane.b32.xlu0 %v2828, 19
      %v2916 = vpop.permute.xlu0 %2915
      %2917 = vrot.lane.b32.xlu0 %v2829, 19
      %v2918 = vpop.permute.xlu0 %2917
      %2919 = vrot.lane.b32.xlu0 %v2830, 19
      %v2920 = vpop.permute.xlu0 %2919
      %2921 = vrot.lane.b32.xlu0 %v2831, 19
      %v2922 = vpop.permute.xlu0 %2921
      %2923 = vrot.lane.b32.xlu0 %v2832, 19
      %v2924 = vpop.permute.xlu0 %2923
      %2925 = vrot.lane.b32.xlu0 %v2833, 19
      %v2926 = vpop.permute.xlu0 %2925
      %2927 = vrot.lane.b32.xlu0 %v2834, 19
      %v2928 = vpop.permute.xlu0 %2927
      %2929 = vrot.lane.b32.xlu0 %v2835, 19
      %v2930 = vpop.permute.xlu0 %2929
      %2931 = vrot.lane.b32.xlu0 %v2836, 19
      %v2932 = vpop.permute.xlu0 %2931
      %v2933 = vsel %vm377, %v2878, %v2880
      %v2934 = vsel %vm377, %v2880, %v2882
      %v2935 = vsel %vm377, %v2882, %v2884
      %v2936 = vsel %vm377, %v2884, %v2886
      %v2937 = vsel %vm377, %v2886, %v2888
      %v2938 = vsel %vm377, %v2888, %v2890
      %v2939 = vsel %vm377, %v2892, %v2894
      %v2940 = vsel %vm377, %v2894, %v2896
      %v2941 = vsel %vm377, %v2896, %v2898
      %v2942 = vsel %vm377, %v2898, %v2900
      %v2943 = vsel %vm377, %v2900, %v2902
      %v2944 = vsel %vm377, %v2902, %v2904
      %v2945 = vsel %vm377, %v2906, %v2908
      %v2946 = vsel %vm377, %v2908, %v2910
      %v2947 = vsel %vm377, %v2910, %v2912
      %v2948 = vsel %vm377, %v2912, %v2914
      %v2949 = vsel %vm377, %v2914, %v2916
      %v2950 = vsel %vm377, %v2916, %v2918
      %v2951 = vsel %vm377, %v2920, %v2922
      %v2952 = vsel %vm377, %v2922, %v2924
      %v2953 = vsel %vm377, %v2924, %v2926
      %v2954 = vsel %vm377, %v2926, %v2928
      %v2955 = vsel %vm377, %v2928, %v2930
      %v2956 = vsel %vm377, %v2930, %v2932
      %v2985 = vsel %vm377, %v2842, %v2878
      %v2986 = vsel %vm377, %v2844, %v2892
      %v2987 = vsel %vm377, %v2846, %v2906
      %v2988 = vsel %vm377, %v2848, %v2920
      %2989 = vrot.lane.b32.xlu0 %v2815, 50
      %v2990 = vpop.permute.xlu0 %2989
      %2991 = vrot.lane.b32.xlu0 %v2822, 50
      %v2992 = vpop.permute.xlu0 %2991
      %2993 = vrot.lane.b32.xlu0 %v2829, 50
      %v2994 = vpop.permute.xlu0 %2993
      %2995 = vrot.lane.b32.xlu0 %v2836, 50
      %v2996 = vpop.permute.xlu0 %2995
      %3001 = vrot.lane.b32.xlu0 %v2809, 18
      %v3002 = vpop.permute.xlu0 %3001
      %3003 = vrot.lane.b32.xlu0 %v2810, 18
      %v3004 = vpop.permute.xlu0 %3003
      %3005 = vrot.lane.b32.xlu0 %v2811, 18
      %v3006 = vpop.permute.xlu0 %3005
      %3007 = vrot.lane.b32.xlu0 %v2812, 18
      %v3008 = vpop.permute.xlu0 %3007
      %3009 = vrot.lane.b32.xlu0 %v2813, 18
      %v3010 = vpop.permute.xlu0 %3009
      %3011 = vrot.lane.b32.xlu0 %v2814, 18
      %v3012 = vpop.permute.xlu0 %3011
      %3013 = vrot.lane.b32.xlu0 %v2815, 18
      %v3014 = vpop.permute.xlu0 %3013
      %3015 = vrot.lane.b32.xlu0 %v2816, 18
      %v3016 = vpop.permute.xlu0 %3015
      %3017 = vrot.lane.b32.xlu0 %v2817, 18
      %v3018 = vpop.permute.xlu0 %3017
      %3019 = vrot.lane.b32.xlu0 %v2818, 18
      %v3020 = vpop.permute.xlu0 %3019
      %3021 = vrot.lane.b32.xlu0 %v2819, 18
      %v3022 = vpop.permute.xlu0 %3021
      %3023 = vrot.lane.b32.xlu0 %v2820, 18
      %v3024 = vpop.permute.xlu0 %3023
      %3025 = vrot.lane.b32.xlu0 %v2821, 18
      %v3026 = vpop.permute.xlu0 %3025
      %3027 = vrot.lane.b32.xlu0 %v2822, 18
      %v3028 = vpop.permute.xlu0 %3027
      %3029 = vrot.lane.b32.xlu0 %v2823, 18
      %v3030 = vpop.permute.xlu0 %3029
      %3031 = vrot.lane.b32.xlu0 %v2824, 18
      %v3032 = vpop.permute.xlu0 %3031
      %3033 = vrot.lane.b32.xlu0 %v2825, 18
      %v3034 = vpop.permute.xlu0 %3033
      %3035 = vrot.lane.b32.xlu0 %v2826, 18
      %v3036 = vpop.permute.xlu0 %3035
      %3037 = vrot.lane.b32.xlu0 %v2827, 18
      %v3038 = vpop.permute.xlu0 %3037
      %3039 = vrot.lane.b32.xlu0 %v2828, 18
      %v3040 = vpop.permute.xlu0 %3039
      %3041 = vrot.lane.b32.xlu0 %v2829, 18
      %v3042 = vpop.permute.xlu0 %3041
      %3043 = vrot.lane.b32.xlu0 %v2830, 18
      %v3044 = vpop.permute.xlu0 %3043
      %3045 = vrot.lane.b32.xlu0 %v2831, 18
      %v3046 = vpop.permute.xlu0 %3045
      %3047 = vrot.lane.b32.xlu0 %v2832, 18
      %v3048 = vpop.permute.xlu0 %3047
      %3049 = vrot.lane.b32.xlu0 %v2833, 18
      %v3050 = vpop.permute.xlu0 %3049
      %3051 = vrot.lane.b32.xlu0 %v2834, 18
      %v3052 = vpop.permute.xlu0 %3051
      %3053 = vrot.lane.b32.xlu0 %v2835, 18
      %v3054 = vpop.permute.xlu0 %3053
      %3055 = vrot.lane.b32.xlu0 %v2836, 18
      %v3056 = vpop.permute.xlu0 %3055
      %v3057 = vsel %vm409, %v3002, %v3004
      %v3058 = vsel %vm409, %v3004, %v3006
      %v3059 = vsel %vm409, %v3006, %v3008
      %v3060 = vsel %vm409, %v3008, %v3010
      %v3061 = vsel %vm409, %v3010, %v3012
      %v3062 = vsel %vm409, %v3012, %v3014
      %v3063 = vsel %vm409, %v3016, %v3018
      %v3064 = vsel %vm409, %v3018, %v3020
      %v3065 = vsel %vm409, %v3020, %v3022
      %v3066 = vsel %vm409, %v3022, %v3024
      %v3067 = vsel %vm409, %v3024, %v3026
      %v3068 = vsel %vm409, %v3026, %v3028
      %v3069 = vsel %vm409, %v3030, %v3032
      %v3070 = vsel %vm409, %v3032, %v3034
      %v3071 = vsel %vm409, %v3034, %v3036
      %v3072 = vsel %vm409, %v3036, %v3038
      %v3073 = vsel %vm409, %v3038, %v3040
      %v3074 = vsel %vm409, %v3040, %v3042
      %v3075 = vsel %vm409, %v3044, %v3046
      %v3076 = vsel %vm409, %v3046, %v3048
      %v3077 = vsel %vm409, %v3048, %v3050
      %v3078 = vsel %vm409, %v3050, %v3052
      %v3079 = vsel %vm409, %v3052, %v3054
      %v3080 = vsel %vm409, %v3054, %v3056
      %v3109 = vsel %vm409, %v2990, %v3002
      %v3110 = vsel %vm409, %v2992, %v3016
      %v3111 = vsel %vm409, %v2994, %v3030
      %v3112 = vsel %vm409, %v2996, %v3044
      %3113 = vrot.lane.b32.xlu0 %v2815, 49
      %v3114 = vpop.permute.xlu0 %3113
      %3115 = vrot.lane.b32.xlu0 %v2822, 49
      %v3116 = vpop.permute.xlu0 %3115
      %3117 = vrot.lane.b32.xlu0 %v2829, 49
      %v3118 = vpop.permute.xlu0 %3117
      %3119 = vrot.lane.b32.xlu0 %v2836, 49
      %v3120 = vpop.permute.xlu0 %3119
      %3125 = vrot.lane.b32.xlu0 %v2809, 17
      %v3126 = vpop.permute.xlu0 %3125
      %3127 = vrot.lane.b32.xlu0 %v2810, 17
      %v3128 = vpop.permute.xlu0 %3127
      %3129 = vrot.lane.b32.xlu0 %v2811, 17
      %v3130 = vpop.permute.xlu0 %3129
      %3131 = vrot.lane.b32.xlu0 %v2812, 17
      %v3132 = vpop.permute.xlu0 %3131
      %3133 = vrot.lane.b32.xlu0 %v2813, 17
      %v3134 = vpop.permute.xlu0 %3133
      %3135 = vrot.lane.b32.xlu0 %v2814, 17
      %v3136 = vpop.permute.xlu0 %3135
      %3137 = vrot.lane.b32.xlu0 %v2815, 17
      %v3138 = vpop.permute.xlu0 %3137
      %3139 = vrot.lane.b32.xlu0 %v2816, 17
      %v3140 = vpop.permute.xlu0 %3139
      %3141 = vrot.lane.b32.xlu0 %v2817, 17
      %v3142 = vpop.permute.xlu0 %3141
      %3143 = vrot.lane.b32.xlu0 %v2818, 17
      %v3144 = vpop.permute.xlu0 %3143
      %3145 = vrot.lane.b32.xlu0 %v2819, 17
      %v3146 = vpop.permute.xlu0 %3145
      %3147 = vrot.lane.b32.xlu0 %v2820, 17
      %v3148 = vpop.permute.xlu0 %3147
      %3149 = vrot.lane.b32.xlu0 %v2821, 17
      %v3150 = vpop.permute.xlu0 %3149
      %3151 = vrot.lane.b32.xlu0 %v2822, 17
      %v3152 = vpop.permute.xlu0 %3151
      %3153 = vrot.lane.b32.xlu0 %v2823, 17
      %v3154 = vpop.permute.xlu0 %3153
      %3155 = vrot.lane.b32.xlu0 %v2824, 17
      %v3156 = vpop.permute.xlu0 %3155
      %3157 = vrot.lane.b32.xlu0 %v2825, 17
      %v3158 = vpop.permute.xlu0 %3157
      %3159 = vrot.lane.b32.xlu0 %v2826, 17
      %v3160 = vpop.permute.xlu0 %3159
      %3161 = vrot.lane.b32.xlu0 %v2827, 17
      %v3162 = vpop.permute.xlu0 %3161
      %3163 = vrot.lane.b32.xlu0 %v2828, 17
      %v3164 = vpop.permute.xlu0 %3163
      %3165 = vrot.lane.b32.xlu0 %v2829, 17
      %v3166 = vpop.permute.xlu0 %3165
      %3167 = vrot.lane.b32.xlu0 %v2830, 17
      %v3168 = vpop.permute.xlu0 %3167
      %3169 = vrot.lane.b32.xlu0 %v2831, 17
      %v3170 = vpop.permute.xlu0 %3169
      %3171 = vrot.lane.b32.xlu0 %v2832, 17
      %v3172 = vpop.permute.xlu0 %3171
      %3173 = vrot.lane.b32.xlu0 %v2833, 17
      %v3174 = vpop.permute.xlu0 %3173
      %3175 = vrot.lane.b32.xlu0 %v2834, 17
      %v3176 = vpop.permute.xlu0 %3175
      %3177 = vrot.lane.b32.xlu0 %v2835, 17
      %v3178 = vpop.permute.xlu0 %3177
      %3179 = vrot.lane.b32.xlu0 %v2836, 17
      %v3180 = vpop.permute.xlu0 %3179
      %v3181 = vsel %vm435, %v3126, %v3128
      %v3182 = vsel %vm435, %v3128, %v3130
      %v3183 = vsel %vm435, %v3130, %v3132
      %v3184 = vsel %vm435, %v3132, %v3134
      %v3185 = vsel %vm435, %v3134, %v3136
      %v3186 = vsel %vm435, %v3136, %v3138
      %v3187 = vsel %vm435, %v3140, %v3142
      %v3188 = vsel %vm435, %v3142, %v3144
      %v3189 = vsel %vm435, %v3144, %v3146
      %v3190 = vsel %vm435, %v3146, %v3148
      %v3191 = vsel %vm435, %v3148, %v3150
      %v3192 = vsel %vm435, %v3150, %v3152
      %v3193 = vsel %vm435, %v3154, %v3156
      %v3194 = vsel %vm435, %v3156, %v3158
      %v3195 = vsel %vm435, %v3158, %v3160
      %v3196 = vsel %vm435, %v3160, %v3162
      %v3197 = vsel %vm435, %v3162, %v3164
      %v3198 = vsel %vm435, %v3164, %v3166
      %v3199 = vsel %vm435, %v3168, %v3170
      %v3200 = vsel %vm435, %v3170, %v3172
      %v3201 = vsel %vm435, %v3172, %v3174
      %v3202 = vsel %vm435, %v3174, %v3176
      %v3203 = vsel %vm435, %v3176, %v3178
      %v3204 = vsel %vm435, %v3178, %v3180
      %v3233 = vsel %vm435, %v3114, %v3126
      %v3234 = vsel %vm435, %v3116, %v3140
      %v3235 = vsel %vm435, %v3118, %v3154
      %v3236 = vsel %vm435, %v3120, %v3168
      %3237 = vrot.lane.b32.xlu0 %v2815, 33
      %v3238 = vpop.permute.xlu0 %3237
      %3239 = vrot.lane.b32.xlu0 %v2822, 33
      %v3240 = vpop.permute.xlu0 %3239
      %3241 = vrot.lane.b32.xlu0 %v2829, 33
      %v3242 = vpop.permute.xlu0 %3241
      %3243 = vrot.lane.b32.xlu0 %v2836, 33
      %v3244 = vpop.permute.xlu0 %3243
      %3249 = vrot.lane.b32.xlu0 %v2809, 1
      %v3250 = vpop.permute.xlu0 %3249
      %3251 = vrot.lane.b32.xlu0 %v2810, 1
      %v3252 = vpop.permute.xlu0 %3251
      %3253 = vrot.lane.b32.xlu0 %v2811, 1
      %v3254 = vpop.permute.xlu0 %3253
      %3255 = vrot.lane.b32.xlu0 %v2812, 1
      %v3256 = vpop.permute.xlu0 %3255
      %3257 = vrot.lane.b32.xlu0 %v2813, 1
      %v3258 = vpop.permute.xlu0 %3257
      %3259 = vrot.lane.b32.xlu0 %v2814, 1
      %v3260 = vpop.permute.xlu0 %3259
      %3261 = vrot.lane.b32.xlu0 %v2815, 1
      %v3262 = vpop.permute.xlu0 %3261
      %3263 = vrot.lane.b32.xlu0 %v2816, 1
      %v3264 = vpop.permute.xlu0 %3263
      %3265 = vrot.lane.b32.xlu0 %v2817, 1
      %v3266 = vpop.permute.xlu0 %3265
      %3267 = vrot.lane.b32.xlu0 %v2818, 1
      %v3268 = vpop.permute.xlu0 %3267
      %3269 = vrot.lane.b32.xlu0 %v2819, 1
      %v3270 = vpop.permute.xlu0 %3269
      %3271 = vrot.lane.b32.xlu0 %v2820, 1
      %v3272 = vpop.permute.xlu0 %3271
      %3273 = vrot.lane.b32.xlu0 %v2821, 1
      %v3274 = vpop.permute.xlu0 %3273
      %3275 = vrot.lane.b32.xlu0 %v2822, 1
      %v3276 = vpop.permute.xlu0 %3275
      %3277 = vrot.lane.b32.xlu0 %v2823, 1
      %v3278 = vpop.permute.xlu0 %3277
      %3279 = vrot.lane.b32.xlu0 %v2824, 1
      %v3280 = vpop.permute.xlu0 %3279
      %3281 = vrot.lane.b32.xlu0 %v2825, 1
      %v3282 = vpop.permute.xlu0 %3281
      %3283 = vrot.lane.b32.xlu0 %v2826, 1
      %v3284 = vpop.permute.xlu0 %3283
      %3285 = vrot.lane.b32.xlu0 %v2827, 1
      %v3286 = vpop.permute.xlu0 %3285
      %3287 = vrot.lane.b32.xlu0 %v2828, 1
      %v3288 = vpop.permute.xlu0 %3287
      %3289 = vrot.lane.b32.xlu0 %v2829, 1
      %v3290 = vpop.permute.xlu0 %3289
      %3291 = vrot.lane.b32.xlu0 %v2830, 1
      %v3292 = vpop.permute.xlu0 %3291
      %3293 = vrot.lane.b32.xlu0 %v2831, 1
      %v3294 = vpop.permute.xlu0 %3293
      %3295 = vrot.lane.b32.xlu0 %v2832, 1
      %v3296 = vpop.permute.xlu0 %3295
      %3297 = vrot.lane.b32.xlu0 %v2833, 1
      %v3298 = vpop.permute.xlu0 %3297
      %3299 = vrot.lane.b32.xlu0 %v2834, 1
      %v3300 = vpop.permute.xlu0 %3299
      %3301 = vrot.lane.b32.xlu0 %v2835, 1
      %v3302 = vpop.permute.xlu0 %3301
      %3303 = vrot.lane.b32.xlu0 %v2836, 1
      %v3304 = vpop.permute.xlu0 %3303
      %v3305 = vsel %vm461, %v3250, %v3252
      %v3306 = vsel %vm461, %v3252, %v3254
      %v3307 = vsel %vm461, %v3254, %v3256
      %v3308 = vsel %vm461, %v3256, %v3258
      %v3309 = vsel %vm461, %v3258, %v3260
      %v3310 = vsel %vm461, %v3260, %v3262
      %v3311 = vsel %vm461, %v3264, %v3266
      %v3312 = vsel %vm461, %v3266, %v3268
      %v3313 = vsel %vm461, %v3268, %v3270
      %v3314 = vsel %vm461, %v3270, %v3272
      %v3315 = vsel %vm461, %v3272, %v3274
      %v3316 = vsel %vm461, %v3274, %v3276
      %v3317 = vsel %vm461, %v3278, %v3280
      %v3318 = vsel %vm461, %v3280, %v3282
      %v3319 = vsel %vm461, %v3282, %v3284
      %v3320 = vsel %vm461, %v3284, %v3286
      %v3321 = vsel %vm461, %v3286, %v3288
      %v3322 = vsel %vm461, %v3288, %v3290
      %v3323 = vsel %vm461, %v3292, %v3294
      %v3324 = vsel %vm461, %v3294, %v3296
      %v3325 = vsel %vm461, %v3296, %v3298
      %v3326 = vsel %vm461, %v3298, %v3300
      %v3327 = vsel %vm461, %v3300, %v3302
      %v3328 = vsel %vm461, %v3302, %v3304
      %v3357 = vsel %vm461, %v3238, %v3250
      %v3358 = vsel %vm461, %v3240, %v3264
      %v3359 = vsel %vm461, %v3242, %v3278
      %v3360 = vsel %vm461, %v3244, %v3292
      %3361 = vrot.lane.b32.xlu0 %v2809, 127
      %v3362 = vpop.permute.xlu0 %3361
      %3363 = vrot.lane.b32.xlu0 %v2810, 127
      %v3364 = vpop.permute.xlu0 %3363
      %3365 = vrot.lane.b32.xlu0 %v2811, 127
      %v3366 = vpop.permute.xlu0 %3365
      %3367 = vrot.lane.b32.xlu0 %v2812, 127
      %v3368 = vpop.permute.xlu0 %3367
      %3369 = vrot.lane.b32.xlu0 %v2813, 127
      %v3370 = vpop.permute.xlu0 %3369
      %3371 = vrot.lane.b32.xlu0 %v2814, 127
      %v3372 = vpop.permute.xlu0 %3371
      %3373 = vrot.lane.b32.xlu0 %v2815, 127
      %v3374 = vpop.permute.xlu0 %3373
      %3375 = vrot.lane.b32.xlu0 %v2816, 127
      %v3376 = vpop.permute.xlu0 %3375
      %3377 = vrot.lane.b32.xlu0 %v2817, 127
      %v3378 = vpop.permute.xlu0 %3377
      %3379 = vrot.lane.b32.xlu0 %v2818, 127
      %v3380 = vpop.permute.xlu0 %3379
      %3381 = vrot.lane.b32.xlu0 %v2819, 127
      %v3382 = vpop.permute.xlu0 %3381
      %3383 = vrot.lane.b32.xlu0 %v2820, 127
      %v3384 = vpop.permute.xlu0 %3383
      %3385 = vrot.lane.b32.xlu0 %v2821, 127
      %v3386 = vpop.permute.xlu0 %3385
      %3387 = vrot.lane.b32.xlu0 %v2822, 127
      %v3388 = vpop.permute.xlu0 %3387
      %3389 = vrot.lane.b32.xlu0 %v2823, 127
      %v3390 = vpop.permute.xlu0 %3389
      %3391 = vrot.lane.b32.xlu0 %v2824, 127
      %v3392 = vpop.permute.xlu0 %3391
      %3393 = vrot.lane.b32.xlu0 %v2825, 127
      %v3394 = vpop.permute.xlu0 %3393
      %3395 = vrot.lane.b32.xlu0 %v2826, 127
      %v3396 = vpop.permute.xlu0 %3395
      %3397 = vrot.lane.b32.xlu0 %v2827, 127
      %v3398 = vpop.permute.xlu0 %3397
      %3399 = vrot.lane.b32.xlu0 %v2828, 127
      %v3400 = vpop.permute.xlu0 %3399
      %3401 = vrot.lane.b32.xlu0 %v2829, 127
      %v3402 = vpop.permute.xlu0 %3401
      %3403 = vrot.lane.b32.xlu0 %v2830, 127
      %v3404 = vpop.permute.xlu0 %3403
      %3405 = vrot.lane.b32.xlu0 %v2831, 127
      %v3406 = vpop.permute.xlu0 %3405
      %3407 = vrot.lane.b32.xlu0 %v2832, 127
      %v3408 = vpop.permute.xlu0 %3407
      %3409 = vrot.lane.b32.xlu0 %v2833, 127
      %v3410 = vpop.permute.xlu0 %3409
      %3411 = vrot.lane.b32.xlu0 %v2834, 127
      %v3412 = vpop.permute.xlu0 %3411
      %3413 = vrot.lane.b32.xlu0 %v2835, 127
      %v3414 = vpop.permute.xlu0 %3413
      %3415 = vrot.lane.b32.xlu0 %v2836, 127
      %v3416 = vpop.permute.xlu0 %3415
      %v3417 = vsel %vm484, %v3362, %v3364
      %v3418 = vsel %vm484, %v3364, %v3366
      %v3419 = vsel %vm484, %v3366, %v3368
      %v3420 = vsel %vm484, %v3368, %v3370
      %v3421 = vsel %vm484, %v3370, %v3372
      %v3422 = vsel %vm484, %v3372, %v3374
      %v3423 = vsel %vm484, %v3376, %v3378
      %v3424 = vsel %vm484, %v3378, %v3380
      %v3425 = vsel %vm484, %v3380, %v3382
      %v3426 = vsel %vm484, %v3382, %v3384
      %v3427 = vsel %vm484, %v3384, %v3386
      %v3428 = vsel %vm484, %v3386, %v3388
      %v3429 = vsel %vm484, %v3390, %v3392
      %v3430 = vsel %vm484, %v3392, %v3394
      %v3431 = vsel %vm484, %v3394, %v3396
      %v3432 = vsel %vm484, %v3396, %v3398
      %v3433 = vsel %vm484, %v3398, %v3400
      %v3434 = vsel %vm484, %v3400, %v3402
      %v3435 = vsel %vm484, %v3404, %v3406
      %v3436 = vsel %vm484, %v3406, %v3408
      %v3437 = vsel %vm484, %v3408, %v3410
      %v3438 = vsel %vm484, %v3410, %v3412
      %v3439 = vsel %vm484, %v3412, %v3414
      %v3440 = vsel %vm484, %v3414, %v3416
      %3469 = vrot.lane.b32.xlu0 %v2809, 95
      %v3470 = vpop.permute.xlu0 %3469
      %3471 = vrot.lane.b32.xlu0 %v2816, 95
      %v3472 = vpop.permute.xlu0 %3471
      %3473 = vrot.lane.b32.xlu0 %v2823, 95
      %v3474 = vpop.permute.xlu0 %3473
      %3475 = vrot.lane.b32.xlu0 %v2830, 95
      %v3476 = vpop.permute.xlu0 %3475
      %v3481 = vsel %vm495, %v3374, %v3470
      %v3482 = vsel %vm495, %v3388, %v3472
      %v3483 = vsel %vm495, %v3402, %v3474
      %v3484 = vsel %vm495, %v3416, %v3476
      %3485 = vrot.lane.b32.xlu0 %v2809, 111
      %v3486 = vpop.permute.xlu0 %3485
      %3487 = vrot.lane.b32.xlu0 %v2810, 111
      %v3488 = vpop.permute.xlu0 %3487
      %3489 = vrot.lane.b32.xlu0 %v2811, 111
      %v3490 = vpop.permute.xlu0 %3489
      %3491 = vrot.lane.b32.xlu0 %v2812, 111
      %v3492 = vpop.permute.xlu0 %3491
      %3493 = vrot.lane.b32.xlu0 %v2813, 111
      %v3494 = vpop.permute.xlu0 %3493
      %3495 = vrot.lane.b32.xlu0 %v2814, 111
      %v3496 = vpop.permute.xlu0 %3495
      %3497 = vrot.lane.b32.xlu0 %v2815, 111
      %v3498 = vpop.permute.xlu0 %3497
      %3499 = vrot.lane.b32.xlu0 %v2816, 111
      %v3500 = vpop.permute.xlu0 %3499
      %3501 = vrot.lane.b32.xlu0 %v2817, 111
      %v3502 = vpop.permute.xlu0 %3501
      %3503 = vrot.lane.b32.xlu0 %v2818, 111
      %v3504 = vpop.permute.xlu0 %3503
      %3505 = vrot.lane.b32.xlu0 %v2819, 111
      %v3506 = vpop.permute.xlu0 %3505
      %3507 = vrot.lane.b32.xlu0 %v2820, 111
      %v3508 = vpop.permute.xlu0 %3507
      %3509 = vrot.lane.b32.xlu0 %v2821, 111
      %v3510 = vpop.permute.xlu0 %3509
      %3511 = vrot.lane.b32.xlu0 %v2822, 111
      %v3512 = vpop.permute.xlu0 %3511
      %3513 = vrot.lane.b32.xlu0 %v2823, 111
      %v3514 = vpop.permute.xlu0 %3513
      %3515 = vrot.lane.b32.xlu0 %v2824, 111
      %v3516 = vpop.permute.xlu0 %3515
      %3517 = vrot.lane.b32.xlu0 %v2825, 111
      %v3518 = vpop.permute.xlu0 %3517
      %3519 = vrot.lane.b32.xlu0 %v2826, 111
      %v3520 = vpop.permute.xlu0 %3519
      %3521 = vrot.lane.b32.xlu0 %v2827, 111
      %v3522 = vpop.permute.xlu0 %3521
      %3523 = vrot.lane.b32.xlu0 %v2828, 111
      %v3524 = vpop.permute.xlu0 %3523
      %3525 = vrot.lane.b32.xlu0 %v2829, 111
      %v3526 = vpop.permute.xlu0 %3525
      %3527 = vrot.lane.b32.xlu0 %v2830, 111
      %v3528 = vpop.permute.xlu0 %3527
      %3529 = vrot.lane.b32.xlu0 %v2831, 111
      %v3530 = vpop.permute.xlu0 %3529
      %3531 = vrot.lane.b32.xlu0 %v2832, 111
      %v3532 = vpop.permute.xlu0 %3531
      %3533 = vrot.lane.b32.xlu0 %v2833, 111
      %v3534 = vpop.permute.xlu0 %3533
      %3535 = vrot.lane.b32.xlu0 %v2834, 111
      %v3536 = vpop.permute.xlu0 %3535
      %3537 = vrot.lane.b32.xlu0 %v2835, 111
      %v3538 = vpop.permute.xlu0 %3537
      %3539 = vrot.lane.b32.xlu0 %v2836, 111
      %v3540 = vpop.permute.xlu0 %3539
      %v3541 = vsel %vm511, %v3486, %v3488
      %v3542 = vsel %vm511, %v3488, %v3490
      %v3543 = vsel %vm511, %v3490, %v3492
      %v3544 = vsel %vm511, %v3492, %v3494
      %v3545 = vsel %vm511, %v3494, %v3496
      %v3546 = vsel %vm511, %v3496, %v3498
      %v3547 = vsel %vm511, %v3500, %v3502
      %v3548 = vsel %vm511, %v3502, %v3504
      %v3549 = vsel %vm511, %v3504, %v3506
      %v3550 = vsel %vm511, %v3506, %v3508
      %v3551 = vsel %vm511, %v3508, %v3510
      %v3552 = vsel %vm511, %v3510, %v3512
      %v3553 = vsel %vm511, %v3514, %v3516
      %v3554 = vsel %vm511, %v3516, %v3518
      %v3555 = vsel %vm511, %v3518, %v3520
      %v3556 = vsel %vm511, %v3520, %v3522
      %v3557 = vsel %vm511, %v3522, %v3524
      %v3558 = vsel %vm511, %v3524, %v3526
      %v3559 = vsel %vm511, %v3528, %v3530
      %v3560 = vsel %vm511, %v3530, %v3532
      %v3561 = vsel %vm511, %v3532, %v3534
      %v3562 = vsel %vm511, %v3534, %v3536
      %v3563 = vsel %vm511, %v3536, %v3538
      %v3564 = vsel %vm511, %v3538, %v3540
      %3593 = vrot.lane.b32.xlu0 %v2809, 79
      %v3594 = vpop.permute.xlu0 %3593
      %3595 = vrot.lane.b32.xlu0 %v2816, 79
      %v3596 = vpop.permute.xlu0 %3595
      %3597 = vrot.lane.b32.xlu0 %v2823, 79
      %v3598 = vpop.permute.xlu0 %3597
      %3599 = vrot.lane.b32.xlu0 %v2830, 79
      %v3600 = vpop.permute.xlu0 %3599
      %v3605 = vsel %vm522, %v3498, %v3594
      %v3606 = vsel %vm522, %v3512, %v3596
      %v3607 = vsel %vm522, %v3526, %v3598
      %v3608 = vsel %vm522, %v3540, %v3600
      %3609 = vrot.lane.b32.xlu0 %v2809, 110
      %v3610 = vpop.permute.xlu0 %3609
      %3611 = vrot.lane.b32.xlu0 %v2810, 110
      %v3612 = vpop.permute.xlu0 %3611
      %3613 = vrot.lane.b32.xlu0 %v2811, 110
      %v3614 = vpop.permute.xlu0 %3613
      %3615 = vrot.lane.b32.xlu0 %v2812, 110
      %v3616 = vpop.permute.xlu0 %3615
      %3617 = vrot.lane.b32.xlu0 %v2813, 110
      %v3618 = vpop.permute.xlu0 %3617
      %3619 = vrot.lane.b32.xlu0 %v2814, 110
      %v3620 = vpop.permute.xlu0 %3619
      %3621 = vrot.lane.b32.xlu0 %v2815, 110
      %v3622 = vpop.permute.xlu0 %3621
      %3623 = vrot.lane.b32.xlu0 %v2816, 110
      %v3624 = vpop.permute.xlu0 %3623
      %3625 = vrot.lane.b32.xlu0 %v2817, 110
      %v3626 = vpop.permute.xlu0 %3625
      %3627 = vrot.lane.b32.xlu0 %v2818, 110
      %v3628 = vpop.permute.xlu0 %3627
      %3629 = vrot.lane.b32.xlu0 %v2819, 110
      %v3630 = vpop.permute.xlu0 %3629
      %3631 = vrot.lane.b32.xlu0 %v2820, 110
      %v3632 = vpop.permute.xlu0 %3631
      %3633 = vrot.lane.b32.xlu0 %v2821, 110
      %v3634 = vpop.permute.xlu0 %3633
      %3635 = vrot.lane.b32.xlu0 %v2822, 110
      %v3636 = vpop.permute.xlu0 %3635
      %3637 = vrot.lane.b32.xlu0 %v2823, 110
      %v3638 = vpop.permute.xlu0 %3637
      %3639 = vrot.lane.b32.xlu0 %v2824, 110
      %v3640 = vpop.permute.xlu0 %3639
      %3641 = vrot.lane.b32.xlu0 %v2825, 110
      %v3642 = vpop.permute.xlu0 %3641
      %3643 = vrot.lane.b32.xlu0 %v2826, 110
      %v3644 = vpop.permute.xlu0 %3643
      %3645 = vrot.lane.b32.xlu0 %v2827, 110
      %v3646 = vpop.permute.xlu0 %3645
      %3647 = vrot.lane.b32.xlu0 %v2828, 110
      %v3648 = vpop.permute.xlu0 %3647
      %3649 = vrot.lane.b32.xlu0 %v2829, 110
      %v3650 = vpop.permute.xlu0 %3649
      %3651 = vrot.lane.b32.xlu0 %v2830, 110
      %v3652 = vpop.permute.xlu0 %3651
      %3653 = vrot.lane.b32.xlu0 %v2831, 110
      %v3654 = vpop.permute.xlu0 %3653
      %3655 = vrot.lane.b32.xlu0 %v2832, 110
      %v3656 = vpop.permute.xlu0 %3655
      %3657 = vrot.lane.b32.xlu0 %v2833, 110
      %v3658 = vpop.permute.xlu0 %3657
      %3659 = vrot.lane.b32.xlu0 %v2834, 110
      %v3660 = vpop.permute.xlu0 %3659
      %3661 = vrot.lane.b32.xlu0 %v2835, 110
      %v3662 = vpop.permute.xlu0 %3661
      %3663 = vrot.lane.b32.xlu0 %v2836, 110
      %v3664 = vpop.permute.xlu0 %3663
      %v3665 = vsel %vm538, %v3610, %v3612
      %v3666 = vsel %vm538, %v3612, %v3614
      %v3667 = vsel %vm538, %v3614, %v3616
      %v3668 = vsel %vm538, %v3616, %v3618
      %v3669 = vsel %vm538, %v3618, %v3620
      %v3670 = vsel %vm538, %v3620, %v3622
      %v3671 = vsel %vm538, %v3624, %v3626
      %v3672 = vsel %vm538, %v3626, %v3628
      %v3673 = vsel %vm538, %v3628, %v3630
      %v3674 = vsel %vm538, %v3630, %v3632
      %v3675 = vsel %vm538, %v3632, %v3634
      %v3676 = vsel %vm538, %v3634, %v3636
      %v3677 = vsel %vm538, %v3638, %v3640
      %v3678 = vsel %vm538, %v3640, %v3642
      %v3679 = vsel %vm538, %v3642, %v3644
      %v3680 = vsel %vm538, %v3644, %v3646
      %v3681 = vsel %vm538, %v3646, %v3648
      %v3682 = vsel %vm538, %v3648, %v3650
      %v3683 = vsel %vm538, %v3652, %v3654
      %v3684 = vsel %vm538, %v3654, %v3656
      %v3685 = vsel %vm538, %v3656, %v3658
      %v3686 = vsel %vm538, %v3658, %v3660
      %v3687 = vsel %vm538, %v3660, %v3662
      %v3688 = vsel %vm538, %v3662, %v3664
      %3717 = vrot.lane.b32.xlu0 %v2809, 78
      %v3718 = vpop.permute.xlu0 %3717
      %3719 = vrot.lane.b32.xlu0 %v2816, 78
      %v3720 = vpop.permute.xlu0 %3719
      %3721 = vrot.lane.b32.xlu0 %v2823, 78
      %v3722 = vpop.permute.xlu0 %3721
      %3723 = vrot.lane.b32.xlu0 %v2830, 78
      %v3724 = vpop.permute.xlu0 %3723
      %v3729 = vsel %vm549, %v3622, %v3718
      %v3730 = vsel %vm549, %v3636, %v3720
      %v3731 = vsel %vm549, %v3650, %v3722
      %v3732 = vsel %vm549, %v3664, %v3724
      %3733 = vrot.lane.b32.xlu0 %v2809, 109
      %v3734 = vpop.permute.xlu0 %3733
      %3735 = vrot.lane.b32.xlu0 %v2810, 109
      %v3736 = vpop.permute.xlu0 %3735
      %3737 = vrot.lane.b32.xlu0 %v2811, 109
      %v3738 = vpop.permute.xlu0 %3737
      %3739 = vrot.lane.b32.xlu0 %v2812, 109
      %v3740 = vpop.permute.xlu0 %3739
      %3741 = vrot.lane.b32.xlu0 %v2813, 109
      %v3742 = vpop.permute.xlu0 %3741
      %3743 = vrot.lane.b32.xlu0 %v2814, 109
      %v3744 = vpop.permute.xlu0 %3743
      %3745 = vrot.lane.b32.xlu0 %v2815, 109
      %v3746 = vpop.permute.xlu0 %3745
      %3747 = vrot.lane.b32.xlu0 %v2816, 109
      %v3748 = vpop.permute.xlu0 %3747
      %3749 = vrot.lane.b32.xlu0 %v2817, 109
      %v3750 = vpop.permute.xlu0 %3749
      %3751 = vrot.lane.b32.xlu0 %v2818, 109
      %v3752 = vpop.permute.xlu0 %3751
      %3753 = vrot.lane.b32.xlu0 %v2819, 109
      %v3754 = vpop.permute.xlu0 %3753
      %3755 = vrot.lane.b32.xlu0 %v2820, 109
      %v3756 = vpop.permute.xlu0 %3755
      %3757 = vrot.lane.b32.xlu0 %v2821, 109
      %v3758 = vpop.permute.xlu0 %3757
      %3759 = vrot.lane.b32.xlu0 %v2822, 109
      %v3760 = vpop.permute.xlu0 %3759
      %3761 = vrot.lane.b32.xlu0 %v2823, 109
      %v3762 = vpop.permute.xlu0 %3761
      %3763 = vrot.lane.b32.xlu0 %v2824, 109
      %v3764 = vpop.permute.xlu0 %3763
      %3765 = vrot.lane.b32.xlu0 %v2825, 109
      %v3766 = vpop.permute.xlu0 %3765
      %3767 = vrot.lane.b32.xlu0 %v2826, 109
      %v3768 = vpop.permute.xlu0 %3767
      %3769 = vrot.lane.b32.xlu0 %v2827, 109
      %v3770 = vpop.permute.xlu0 %3769
      %3771 = vrot.lane.b32.xlu0 %v2828, 109
      %v3772 = vpop.permute.xlu0 %3771
      %3773 = vrot.lane.b32.xlu0 %v2829, 109
      %v3774 = vpop.permute.xlu0 %3773
      %3775 = vrot.lane.b32.xlu0 %v2830, 109
      %v3776 = vpop.permute.xlu0 %3775
      %3777 = vrot.lane.b32.xlu0 %v2831, 109
      %v3778 = vpop.permute.xlu0 %3777
      %3779 = vrot.lane.b32.xlu0 %v2832, 109
      %v3780 = vpop.permute.xlu0 %3779
      %3781 = vrot.lane.b32.xlu0 %v2833, 109
      %v3782 = vpop.permute.xlu0 %3781
      %3783 = vrot.lane.b32.xlu0 %v2834, 109
      %v3784 = vpop.permute.xlu0 %3783
      %3785 = vrot.lane.b32.xlu0 %v2835, 109
      %v3786 = vpop.permute.xlu0 %3785
      %3787 = vrot.lane.b32.xlu0 %v2836, 109
      %v3788 = vpop.permute.xlu0 %3787
      %v3789 = vsel %vm565, %v3734, %v3736
      %v3790 = vsel %vm565, %v3736, %v3738
      %v3791 = vsel %vm565, %v3738, %v3740
      %v3792 = vsel %vm565, %v3740, %v3742
      %v3793 = vsel %vm565, %v3742, %v3744
      %v3794 = vsel %vm565, %v3744, %v3746
      %v3795 = vsel %vm565, %v3748, %v3750
      %v3796 = vsel %vm565, %v3750, %v3752
      %v3797 = vsel %vm565, %v3752, %v3754
      %v3798 = vsel %vm565, %v3754, %v3756
      %v3799 = vsel %vm565, %v3756, %v3758
      %v3800 = vsel %vm565, %v3758, %v3760
      %v3801 = vsel %vm565, %v3762, %v3764
      %v3802 = vsel %vm565, %v3764, %v3766
      %v3803 = vsel %vm565, %v3766, %v3768
      %v3804 = vsel %vm565, %v3768, %v3770
      %v3805 = vsel %vm565, %v3770, %v3772
      %v3806 = vsel %vm565, %v3772, %v3774
      %v3807 = vsel %vm565, %v3776, %v3778
      %v3808 = vsel %vm565, %v3778, %v3780
      %v3809 = vsel %vm565, %v3780, %v3782
      %v3810 = vsel %vm565, %v3782, %v3784
      %v3811 = vsel %vm565, %v3784, %v3786
      %v3812 = vsel %vm565, %v3786, %v3788
      %3841 = vrot.lane.b32.xlu0 %v2809, 77
      %v3842 = vpop.permute.xlu0 %3841
      %3843 = vrot.lane.b32.xlu0 %v2816, 77
      %v3844 = vpop.permute.xlu0 %3843
      %3845 = vrot.lane.b32.xlu0 %v2823, 77
      %v3846 = vpop.permute.xlu0 %3845
      %3847 = vrot.lane.b32.xlu0 %v2830, 77
      %v3848 = vpop.permute.xlu0 %3847
      %v3853 = vsel %vm582, %v3746, %v3842
      %v3854 = vsel %vm582, %v3760, %v3844
      %v3855 = vsel %vm582, %v3774, %v3846
      %v3856 = vsel %vm582, %v3788, %v3848
      %v3857 = vpack.c.bf16 %v2986, %v2985
      %v3858 = vpack.c.bf16 %v2939, %v2933
      %v3859 = vpack.c.bf16 %v2940, %v2934
      %v3860 = vpack.c.bf16 %v2941, %v2935
      %v3861 = vpack.c.bf16 %v2942, %v2936
      %v3862 = vpack.c.bf16 %v2943, %v2937
      %v3863 = vpack.c.bf16 %v2944, %v2938
      %v3864 = vpack.c.bf16 %v2988, %v2987
      %v3865 = vpack.c.bf16 %v2951, %v2945
      %v3866 = vpack.c.bf16 %v2952, %v2946
      %v3867 = vpack.c.bf16 %v2953, %v2947
      %v3868 = vpack.c.bf16 %v2954, %v2948
      %v3869 = vpack.c.bf16 %v2955, %v2949
      %v3870 = vpack.c.bf16 %v2956, %v2950
      %v3871 = vpack.c.bf16 %v3110, %v3109
      %v3872 = vpack.c.bf16 %v3063, %v3057
      %v3873 = vpack.c.bf16 %v3064, %v3058
      %v3874 = vpack.c.bf16 %v3065, %v3059
      %v3875 = vpack.c.bf16 %v3066, %v3060
      %v3876 = vpack.c.bf16 %v3067, %v3061
      %v3877 = vpack.c.bf16 %v3068, %v3062
      %v3878 = vpack.c.bf16 %v3112, %v3111
      %v3879 = vpack.c.bf16 %v3075, %v3069
      %v3880 = vpack.c.bf16 %v3076, %v3070
      %v3881 = vpack.c.bf16 %v3077, %v3071
      %v3882 = vpack.c.bf16 %v3078, %v3072
      %v3883 = vpack.c.bf16 %v3079, %v3073
      %v3884 = vpack.c.bf16 %v3080, %v3074
      %v3885 = vpack.c.bf16 %v3234, %v3233
      %v3886 = vpack.c.bf16 %v3187, %v3181
      %v3887 = vpack.c.bf16 %v3188, %v3182
      %v3888 = vpack.c.bf16 %v3189, %v3183
      %v3889 = vpack.c.bf16 %v3190, %v3184
      %v3890 = vpack.c.bf16 %v3191, %v3185
      %v3891 = vpack.c.bf16 %v3192, %v3186
      %v3892 = vpack.c.bf16 %v3236, %v3235
      %v3893 = vpack.c.bf16 %v3199, %v3193
      %v3894 = vpack.c.bf16 %v3200, %v3194
      %v3895 = vpack.c.bf16 %v3201, %v3195
      %v3896 = vpack.c.bf16 %v3202, %v3196
      %v3897 = vpack.c.bf16 %v3203, %v3197
      %v3898 = vpack.c.bf16 %v3204, %v3198
      %v3899 = vpack.c.bf16 %v3358, %v3357
      %v3900 = vpack.c.bf16 %v3311, %v3305
      %v3901 = vpack.c.bf16 %v3312, %v3306
      %v3902 = vpack.c.bf16 %v3313, %v3307
      %v3903 = vpack.c.bf16 %v3314, %v3308
      %v3904 = vpack.c.bf16 %v3315, %v3309
      %v3905 = vpack.c.bf16 %v3316, %v3310
      %v3906 = vpack.c.bf16 %v3360, %v3359
      %v3907 = vpack.c.bf16 %v3323, %v3317
      %v3908 = vpack.c.bf16 %v3324, %v3318
      %v3909 = vpack.c.bf16 %v3325, %v3319
      %v3910 = vpack.c.bf16 %v3326, %v3320
      %v3911 = vpack.c.bf16 %v3327, %v3321
      %v3912 = vpack.c.bf16 %v3328, %v3322
      %v3913 = vpack.c.bf16 %v2816, %v2809
      %v3914 = vpack.c.bf16 %v2817, %v2810
      %v3915 = vpack.c.bf16 %v2818, %v2811
      %v3916 = vpack.c.bf16 %v2819, %v2812
      %v3917 = vpack.c.bf16 %v2820, %v2813
      %v3918 = vpack.c.bf16 %v2821, %v2814
      %v3919 = vpack.c.bf16 %v2822, %v2815
      %v3920 = vpack.c.bf16 %v2830, %v2823
      %v3921 = vpack.c.bf16 %v2831, %v2824
      %v3922 = vpack.c.bf16 %v2832, %v2825
      %v3923 = vpack.c.bf16 %v2833, %v2826
      %v3924 = vpack.c.bf16 %v2834, %v2827
      %v3925 = vpack.c.bf16 %v2835, %v2828
      %v3926 = vpack.c.bf16 %v2836, %v2829
      %v3927 = vpack.c.bf16 %v3423, %v3417
      %v3928 = vpack.c.bf16 %v3424, %v3418
      %v3929 = vpack.c.bf16 %v3425, %v3419
      %v3930 = vpack.c.bf16 %v3426, %v3420
      %v3931 = vpack.c.bf16 %v3427, %v3421
      %v3932 = vpack.c.bf16 %v3428, %v3422
      %v3933 = vpack.c.bf16 %v3482, %v3481
      %v3934 = vpack.c.bf16 %v3435, %v3429
      %v3935 = vpack.c.bf16 %v3436, %v3430
      %v3936 = vpack.c.bf16 %v3437, %v3431
      %v3937 = vpack.c.bf16 %v3438, %v3432
      %v3938 = vpack.c.bf16 %v3439, %v3433
      %v3939 = vpack.c.bf16 %v3440, %v3434
      %v3940 = vpack.c.bf16 %v3484, %v3483
      %v3941 = vpack.c.bf16 %v3547, %v3541
      %v3942 = vpack.c.bf16 %v3548, %v3542
      %v3943 = vpack.c.bf16 %v3549, %v3543
      %v3944 = vpack.c.bf16 %v3550, %v3544
      %v3945 = vpack.c.bf16 %v3551, %v3545
      %v3946 = vpack.c.bf16 %v3552, %v3546
      %v3947 = vpack.c.bf16 %v3606, %v3605
      %v3948 = vpack.c.bf16 %v3559, %v3553
      %v3949 = vpack.c.bf16 %v3560, %v3554
      %v3950 = vpack.c.bf16 %v3561, %v3555
      %v3951 = vpack.c.bf16 %v3562, %v3556
      %v3952 = vpack.c.bf16 %v3563, %v3557
      %v3953 = vpack.c.bf16 %v3564, %v3558
      %v3954 = vpack.c.bf16 %v3608, %v3607
      %v3955 = vpack.c.bf16 %v3671, %v3665
      %v3956 = vpack.c.bf16 %v3672, %v3666
      %v3957 = vpack.c.bf16 %v3673, %v3667
      %v3958 = vpack.c.bf16 %v3674, %v3668
      %v3959 = vpack.c.bf16 %v3675, %v3669
      %v3960 = vpack.c.bf16 %v3676, %v3670
      %v3961 = vpack.c.bf16 %v3730, %v3729
      %v3962 = vpack.c.bf16 %v3683, %v3677
      %v3963 = vpack.c.bf16 %v3684, %v3678
      %v3964 = vpack.c.bf16 %v3685, %v3679
      %v3965 = vpack.c.bf16 %v3686, %v3680
      %v3966 = vpack.c.bf16 %v3687, %v3681
      %v3967 = vpack.c.bf16 %v3688, %v3682
      %v3968 = vpack.c.bf16 %v3732, %v3731
      %v3969 = vpack.c.bf16 %v3795, %v3789
      %v3970 = vpack.c.bf16 %v3796, %v3790
      %v3971 = vpack.c.bf16 %v3797, %v3791
      %v3972 = vpack.c.bf16 %v3798, %v3792
      %v3973 = vpack.c.bf16 %v3799, %v3793
      %v3974 = vpack.c.bf16 %v3800, %v3794
      %v3975 = vpack.c.bf16 %v3854, %v3853
      %v3976 = vpack.c.bf16 %v3807, %v3801
      %v3977 = vpack.c.bf16 %v3808, %v3802
      %v3978 = vpack.c.bf16 %v3809, %v3803
      %v3979 = vpack.c.bf16 %v3810, %v3804
      %v3980 = vpack.c.bf16 %v3811, %v3805
      %v3981 = vpack.c.bf16 %v3812, %v3806
      %v3982 = vpack.c.bf16 %v3856, %v3855
      %v3983 = vld [vmem:[%s6] sm:$0xff]
      %v3984 = vld [vmem:[%s6 + $0x8] sm:$0xf]
      %3985 = vset.pattern.permute.xlu0 3
      %3986 = vperm.xlu0 %3985, %v752
      %v3987 = vpop.permute.xlu0 %3986
      %v3991 = vunpack.c.l.b16 %v3983
      %v3992 = vunpack.c.h.b16 %v3983
      %v3993 = vunpack.c.l.b16 %v3984
      %v3994 = vpack.c.b16 %v3991, %v3991
      %v3995 = vpack.c.b16 %v3992, %v3992
      %v3996 = vpack.c.b16 %v3993, %v3993
      %vm3999 = vcmask 261120
      %v4001 = vsel %vm3999, %v3996, 0
      %4003 = vmatprep.subr.bf16.mxu0 %v3907
      %4004 = vmatpush1.bf16.msra.mxu0 %v3906
      %4005 = vmatprep.subr.bf16.mxu0 %v3900
      %4006 = vmatpush1.bf16.msra.mxu0 %v3899
      %4007 = vmatprep.subr.bf16.mxu0 %v3893
      %4008 = vmatpush1.bf16.msra.mxu0 %v3892
      %4009 = vmatprep.subr.bf16.mxu0 %v3886
      %4010 = vmatpush1.bf16.msra.mxu0 %v3885
      %4011 = vmatprep.subr.bf16.mxu0 %v3879
      %4012 = vmatpush1.bf16.msra.mxu0 %v3878
      %4013 = vmatprep.subr.bf16.mxu0 %v3872
      %4014 = vmatpush1.bf16.msra.mxu0 %v3871
      %4015 = vmatprep.subr.bf16.mxu0 %v3865
      %4016 = vmatpush1.bf16.msra.mxu0 %v3864
      %4017 = vmatprep.subr.bf16.mxu0 %v3858
      %4018 = vmatpush1.bf16.msra.mxu0 %v3857
      %4019 = vmatprep.subr.bf16.mxu0 %v3963
      %4020 = vmatpush2.bf16.msra.mxu0 %v3962
      %4021 = vmatprep.subr.bf16.mxu0 %v3956
      %4022 = vmatpush2.bf16.msra.mxu0 %v3955
      %4023 = vmatprep.subr.bf16.mxu0 %v3949
      %4024 = vmatpush2.bf16.msra.mxu0 %v3948
      %4025 = vmatprep.subr.bf16.mxu0 %v3942
      %4026 = vmatpush2.bf16.msra.mxu0 %v3941
      %4027 = vmatprep.subr.bf16.mxu0 %v3935
      %4028 = vmatpush2.bf16.msra.mxu0 %v3934
      %4029 = vmatprep.subr.bf16.mxu0 %v3928
      %4030 = vmatpush2.bf16.msra.mxu0 %v3927
      %4031 = vmatprep.subr.bf16.mxu0 %v3921
      %4032 = vmatpush2.bf16.msra.mxu0 %v3920
      %4033 = vmatprep.subr.bf16.mxu0 %v3914
      %4034 = vmatpush2.bf16.msra.mxu0 %v3913
      %4035 = vmatprep.mubr.bf16.mxu0 %v3995
      %4036 = vmatmul.mubr.bf16.gmra.mxu0 %v3994
      %v4037 = vpop.f32.mrf.mxu0
      %v4038 = vadd.f32 %v3987, %v4037
      %v4039 = vpop.f32.mrf.mxu0
      %v4040 = vadd.f32 %v3987, %v4039
      %v4041 = vpop.f32.mrf.mxu0
      %v4042 = vpop.f32.mrf.mxu0
      %4043 = vdwg.mxu0
      %4044 = vmatprep.subr.bf16.mxu0 0
      %4045 = vmatpush1.bf16.msra.mxu0 0
      %4046 = vmatprep.subr.bf16.mxu0 0
      %4047 = vmatpush1.bf16.msra.mxu0 0
      %4048 = vmatprep.subr.bf16.mxu0 0
      %4049 = vmatpush1.bf16.msra.mxu0 0
      %4050 = vmatprep.subr.bf16.mxu0 0
      %4051 = vmatpush1.bf16.msra.mxu0 0
      %4052 = vmatprep.subr.bf16.mxu0 0
      %4053 = vmatpush1.bf16.msra.mxu0 0
      %4054 = vmatprep.subr.bf16.mxu0 0
      %4055 = vmatpush1.bf16.msra.mxu0 0
      %4056 = vmatprep.subr.bf16.mxu0 %v3977
      %4057 = vmatpush1.bf16.msra.mxu0 %v3976
      %4058 = vmatprep.subr.bf16.mxu0 %v3970
      %4059 = vmatpush1.bf16.msra.mxu0 %v3969
      %4060 = vmatprep.subr.bf16.mxu0 0
      %4061 = vmatpush2.bf16.msra.mxu0 0
      %4062 = vmatprep.subr.bf16.mxu0 0
      %4063 = vmatpush2.bf16.msra.mxu0 0
      %4064 = vmatprep.subr.bf16.mxu0 0
      %4065 = vmatpush2.bf16.msra.mxu0 0
      %4066 = vmatprep.subr.bf16.mxu0 0
      %4067 = vmatpush2.bf16.msra.mxu0 0
      %4068 = vmatprep.subr.bf16.mxu0 0
      %4069 = vmatpush2.bf16.msra.mxu0 0
      %4070 = vmatprep.subr.bf16.mxu0 0
      %4071 = vmatpush2.bf16.msra.mxu0 0
      %4072 = vmatprep.subr.bf16.mxu0 0
      %4073 = vmatpush2.bf16.msra.mxu0 0
      %4074 = vmatprep.subr.bf16.mxu0 0
      %4075 = vmatpush2.bf16.msra.mxu0 0
      %4076 = vmatprep.mubr.bf16.mxu0 0
      %4077 = vmatmul.mubr.bf16.gmra.mxu0 %v4001
      %v4078 = vpop.f32.mrf.mxu0
      %v4079 = vadd.f32 %v4038, %v4078
      %v4080 = vpop.f32.mrf.mxu0
      %v4081 = vadd.f32 %v4040, %v4080
      %v4082 = vpop.f32.mrf.mxu0
      %v4083 = vpop.f32.mrf.mxu0
      %4084 = vdwg.mxu0
      %4085 = vmatprep.subr.bf16.mxu0 %v3909
      %4086 = vmatpush1.bf16.msra.mxu0 %v3908
      %4087 = vmatprep.subr.bf16.mxu0 %v3902
      %4088 = vmatpush1.bf16.msra.mxu0 %v3901
      %4089 = vmatprep.subr.bf16.mxu0 %v3895
      %4090 = vmatpush1.bf16.msra.mxu0 %v3894
      %4091 = vmatprep.subr.bf16.mxu0 %v3888
      %4092 = vmatpush1.bf16.msra.mxu0 %v3887
      %4093 = vmatprep.subr.bf16.mxu0 %v3881
      %4094 = vmatpush1.bf16.msra.mxu0 %v3880
      %4095 = vmatprep.subr.bf16.mxu0 %v3874
      %4096 = vmatpush1.bf16.msra.mxu0 %v3873
      %4097 = vmatprep.subr.bf16.mxu0 %v3867
      %4098 = vmatpush1.bf16.msra.mxu0 %v3866
      %4099 = vmatprep.subr.bf16.mxu0 %v3860
      %4100 = vmatpush1.bf16.msra.mxu0 %v3859
      %4101 = vmatprep.subr.bf16.mxu0 %v3965
      %4102 = vmatpush2.bf16.msra.mxu0 %v3964
      %4103 = vmatprep.subr.bf16.mxu0 %v3958
      %4104 = vmatpush2.bf16.msra.mxu0 %v3957
      %4105 = vmatprep.subr.bf16.mxu0 %v3951
      %4106 = vmatpush2.bf16.msra.mxu0 %v3950
      %4107 = vmatprep.subr.bf16.mxu0 %v3944
      %4108 = vmatpush2.bf16.msra.mxu0 %v3943
      %4109 = vmatprep.subr.bf16.mxu0 %v3937
      %4110 = vmatpush2.bf16.msra.mxu0 %v3936
      %4111 = vmatprep.subr.bf16.mxu0 %v3930
      %4112 = vmatpush2.bf16.msra.mxu0 %v3929
      %4113 = vmatprep.subr.bf16.mxu0 %v3923
      %4114 = vmatpush2.bf16.msra.mxu0 %v3922
      %4115 = vmatprep.subr.bf16.mxu0 %v3916
      %4116 = vmatpush2.bf16.msra.mxu0 %v3915
      %4117 = vmatprep.mubr.bf16.mxu0 %v3995
      %4118 = vmatmul.mubr.bf16.gmra.mxu0 %v3994
      %v4119 = vpop.f32.mrf.mxu0
      %v4120 = vadd.f32 %v3987, %v4119
      %v4121 = vpop.f32.mrf.mxu0
      %v4122 = vadd.f32 %v3987, %v4121
      %v4123 = vpop.f32.mrf.mxu0
      %v4124 = vpop.f32.mrf.mxu0
      %4125 = vdwg.mxu0
      %4126 = vmatprep.subr.bf16.mxu0 0
      %4127 = vmatpush1.bf16.msra.mxu0 0
      %4128 = vmatprep.subr.bf16.mxu0 0
      %4129 = vmatpush1.bf16.msra.mxu0 0
      %4130 = vmatprep.subr.bf16.mxu0 0
      %4131 = vmatpush1.bf16.msra.mxu0 0
      %4132 = vmatprep.subr.bf16.mxu0 0
      %4133 = vmatpush1.bf16.msra.mxu0 0
      %4134 = vmatprep.subr.bf16.mxu0 0
      %4135 = vmatpush1.bf16.msra.mxu0 0
      %4136 = vmatprep.subr.bf16.mxu0 0
      %4137 = vmatpush1.bf16.msra.mxu0 0
      %4138 = vmatprep.subr.bf16.mxu0 %v3979
      %4139 = vmatpush1.bf16.msra.mxu0 %v3978
      %4140 = vmatprep.subr.bf16.mxu0 %v3972
      %4141 = vmatpush1.bf16.msra.mxu0 %v3971
      %4142 = vmatprep.subr.bf16.mxu0 0
      %4143 = vmatpush2.bf16.msra.mxu0 0
      %4144 = vmatprep.subr.bf16.mxu0 0
      %4145 = vmatpush2.bf16.msra.mxu0 0
      %4146 = vmatprep.subr.bf16.mxu0 0
      %4147 = vmatpush2.bf16.msra.mxu0 0
      %4148 = vmatprep.subr.bf16.mxu0 0
      %4149 = vmatpush2.bf16.msra.mxu0 0
      %4150 = vmatprep.subr.bf16.mxu0 0
      %4151 = vmatpush2.bf16.msra.mxu0 0
      %4152 = vmatprep.subr.bf16.mxu0 0
      %4153 = vmatpush2.bf16.msra.mxu0 0
      %4154 = vmatprep.subr.bf16.mxu0 0
      %4155 = vmatpush2.bf16.msra.mxu0 0
      %4156 = vmatprep.subr.bf16.mxu0 0
      %4157 = vmatpush2.bf16.msra.mxu0 0
      %4158 = vmatprep.mubr.bf16.mxu0 0
      %4159 = vmatmul.mubr.bf16.gmra.mxu0 %v4001
      %v4160 = vpop.f32.mrf.mxu0
      %v4161 = vadd.f32 %v4120, %v4160
      %v4162 = vpop.f32.mrf.mxu0
      %v4163 = vadd.f32 %v4122, %v4162
      %v4164 = vpop.f32.mrf.mxu0
      %v4165 = vpop.f32.mrf.mxu0
      %4166 = vdwg.mxu0
      %4167 = vmatprep.subr.bf16.mxu0 %v3911
      %4168 = vmatpush1.bf16.msra.mxu0 %v3910
      %4169 = vmatprep.subr.bf16.mxu0 %v3904
      %4170 = vmatpush1.bf16.msra.mxu0 %v3903
      %4171 = vmatprep.subr.bf16.mxu0 %v3897
      %4172 = vmatpush1.bf16.msra.mxu0 %v3896
      %4173 = vmatprep.subr.bf16.mxu0 %v3890
      %4174 = vmatpush1.bf16.msra.mxu0 %v3889
      %4175 = vmatprep.subr.bf16.mxu0 %v3883
      %4176 = vmatpush1.bf16.msra.mxu0 %v3882
      %4177 = vmatprep.subr.bf16.mxu0 %v3876
      %4178 = vmatpush1.bf16.msra.mxu0 %v3875
      %4179 = vmatprep.subr.bf16.mxu0 %v3869
      %4180 = vmatpush1.bf16.msra.mxu0 %v3868
      %4181 = vmatprep.subr.bf16.mxu0 %v3862
      %4182 = vmatpush1.bf16.msra.mxu0 %v3861
      %4183 = vmatprep.subr.bf16.mxu0 %v3967
      %4184 = vmatpush2.bf16.msra.mxu0 %v3966
      %4185 = vmatprep.subr.bf16.mxu0 %v3960
      %4186 = vmatpush2.bf16.msra.mxu0 %v3959
      %4187 = vmatprep.subr.bf16.mxu0 %v3953
      %4188 = vmatpush2.bf16.msra.mxu0 %v3952
      %4189 = vmatprep.subr.bf16.mxu0 %v3946
      %4190 = vmatpush2.bf16.msra.mxu0 %v3945
      %4191 = vmatprep.subr.bf16.mxu0 %v3939
      %4192 = vmatpush2.bf16.msra.mxu0 %v3938
      %4193 = vmatprep.subr.bf16.mxu0 %v3932
      %4194 = vmatpush2.bf16.msra.mxu0 %v3931
      %4195 = vmatprep.subr.bf16.mxu0 %v3925
      %4196 = vmatpush2.bf16.msra.mxu0 %v3924
      %4197 = vmatprep.subr.bf16.mxu0 %v3918
      %4198 = vmatpush2.bf16.msra.mxu0 %v3917
      %4199 = vmatprep.mubr.bf16.mxu0 %v3995
      %4200 = vmatmul.mubr.bf16.gmra.mxu0 %v3994
      %v4201 = vpop.f32.mrf.mxu0
      %v4202 = vadd.f32 %v3987, %v4201
      %v4203 = vpop.f32.mrf.mxu0
      %v4204 = vadd.f32 %v3987, %v4203
      %v4205 = vpop.f32.mrf.mxu0
      %v4206 = vpop.f32.mrf.mxu0
      %4207 = vdwg.mxu0
      %4208 = vmatprep.subr.bf16.mxu0 0
      %4209 = vmatpush1.bf16.msra.mxu0 0
      %4210 = vmatprep.subr.bf16.mxu0 0
      %4211 = vmatpush1.bf16.msra.mxu0 0
      %4212 = vmatprep.subr.bf16.mxu0 0
      %4213 = vmatpush1.bf16.msra.mxu0 0
      %4214 = vmatprep.subr.bf16.mxu0 0
      %4215 = vmatpush1.bf16.msra.mxu0 0
      %4216 = vmatprep.subr.bf16.mxu0 0
      %4217 = vmatpush1.bf16.msra.mxu0 0
      %4218 = vmatprep.subr.bf16.mxu0 0
      %4219 = vmatpush1.bf16.msra.mxu0 0
      %4220 = vmatprep.subr.bf16.mxu0 %v3981
      %4221 = vmatpush1.bf16.msra.mxu0 %v3980
      %4222 = vmatprep.subr.bf16.mxu0 %v3974
      %4223 = vmatpush1.bf16.msra.mxu0 %v3973
      %4224 = vmatprep.subr.bf16.mxu0 0
      %4225 = vmatpush2.bf16.msra.mxu0 0
      %4226 = vmatprep.subr.bf16.mxu0 0
      %4227 = vmatpush2.bf16.msra.mxu0 0
      %4228 = vmatprep.subr.bf16.mxu0 0
      %4229 = vmatpush2.bf16.msra.mxu0 0
      %4230 = vmatprep.subr.bf16.mxu0 0
      %4231 = vmatpush2.bf16.msra.mxu0 0
      %4232 = vmatprep.subr.bf16.mxu0 0
      %4233 = vmatpush2.bf16.msra.mxu0 0
      %4234 = vmatprep.subr.bf16.mxu0 0
      %4235 = vmatpush2.bf16.msra.mxu0 0
      %4236 = vmatprep.subr.bf16.mxu0 0
      %4237 = vmatpush2.bf16.msra.mxu0 0
      %4238 = vmatprep.subr.bf16.mxu0 0
      %4239 = vmatpush2.bf16.msra.mxu0 0
      %4240 = vmatprep.mubr.bf16.mxu0 0
      %4241 = vmatmul.mubr.bf16.gmra.mxu0 %v4001
      %v4242 = vpop.f32.mrf.mxu0
      %v4243 = vadd.f32 %v4202, %v4242
      %v4244 = vpop.f32.mrf.mxu0
      %v4245 = vadd.f32 %v4204, %v4244
      %v4246 = vpop.f32.mrf.mxu0
      %v4247 = vpop.f32.mrf.mxu0
      %4248 = vdwg.mxu0
      %4249 = vmatprep.subr.bf16.mxu0 0
      %4250 = vmatpush1.bf16.msra.mxu0 %v3912
      %4251 = vmatprep.subr.bf16.mxu0 0
      %4252 = vmatpush1.bf16.msra.mxu0 %v3905
      %4253 = vmatprep.subr.bf16.mxu0 0
      %4254 = vmatpush1.bf16.msra.mxu0 %v3898
      %4255 = vmatprep.subr.bf16.mxu0 0
      %4256 = vmatpush1.bf16.msra.mxu0 %v3891
      %4257 = vmatprep.subr.bf16.mxu0 0
      %4258 = vmatpush1.bf16.msra.mxu0 %v3884
      %4259 = vmatprep.subr.bf16.mxu0 0
      %4260 = vmatpush1.bf16.msra.mxu0 %v3877
      %4261 = vmatprep.subr.bf16.mxu0 0
      %4262 = vmatpush1.bf16.msra.mxu0 %v3870
      %4263 = vmatprep.subr.bf16.mxu0 0
      %4264 = vmatpush1.bf16.msra.mxu0 %v3863
      %4265 = vmatprep.subr.bf16.mxu0 0
      %4266 = vmatpush2.bf16.msra.mxu0 %v3968
      %4267 = vmatprep.subr.bf16.mxu0 0
      %4268 = vmatpush2.bf16.msra.mxu0 %v3961
      %4269 = vmatprep.subr.bf16.mxu0 0
      %4270 = vmatpush2.bf16.msra.mxu0 %v3954
      %4271 = vmatprep.subr.bf16.mxu0 0
      %4272 = vmatpush2.bf16.msra.mxu0 %v3947
      %4273 = vmatprep.subr.bf16.mxu0 0
      %4274 = vmatpush2.bf16.msra.mxu0 %v3940
      %4275 = vmatprep.subr.bf16.mxu0 0
      %4276 = vmatpush2.bf16.msra.mxu0 %v3933
      %4277 = vmatprep.subr.bf16.mxu0 0
      %4278 = vmatpush2.bf16.msra.mxu0 %v3926
      %4279 = vmatprep.subr.bf16.mxu0 0
      %4280 = vmatpush2.bf16.msra.mxu0 %v3919
      %4281 = vmatprep.mubr.bf16.mxu0 %v3995
      %4282 = vmatmul.mubr.bf16.gmra.mxu0 %v3994
      %v4283 = vpop.f32.mrf.mxu0
      %v4284 = vadd.f32 %v3987, %v4283
      %v4285 = vpop.f32.mrf.mxu0
      %v4286 = vpop.f32.mrf.mxu0
      %v4287 = vpop.f32.mrf.mxu0
      %4288 = vdwg.mxu0
      %4289 = vmatprep.subr.bf16.mxu0 0
      %4290 = vmatpush1.bf16.msra.mxu0 0
      %4291 = vmatprep.subr.bf16.mxu0 0
      %4292 = vmatpush1.bf16.msra.mxu0 0
      %4293 = vmatprep.subr.bf16.mxu0 0
      %4294 = vmatpush1.bf16.msra.mxu0 0
      %4295 = vmatprep.subr.bf16.mxu0 0
      %4296 = vmatpush1.bf16.msra.mxu0 0
      %4297 = vmatprep.subr.bf16.mxu0 0
      %4298 = vmatpush1.bf16.msra.mxu0 0
      %4299 = vmatprep.subr.bf16.mxu0 0
      %4300 = vmatpush1.bf16.msra.mxu0 0
      %4301 = vmatprep.subr.bf16.mxu0 0
      %4302 = vmatpush1.bf16.msra.mxu0 %v3982
      %4303 = vmatprep.subr.bf16.mxu0 0
      %4304 = vmatpush1.bf16.msra.mxu0 %v3975
      %4305 = vmatprep.subr.bf16.mxu0 0
      %4306 = vmatpush2.bf16.msra.mxu0 0
      %4307 = vmatprep.subr.bf16.mxu0 0
      %4308 = vmatpush2.bf16.msra.mxu0 0
      %4309 = vmatprep.subr.bf16.mxu0 0
      %4310 = vmatpush2.bf16.msra.mxu0 0
      %4311 = vmatprep.subr.bf16.mxu0 0
      %4312 = vmatpush2.bf16.msra.mxu0 0
      %4313 = vmatprep.subr.bf16.mxu0 0
      %4314 = vmatpush2.bf16.msra.mxu0 0
      %4315 = vmatprep.subr.bf16.mxu0 0
      %4316 = vmatpush2.bf16.msra.mxu0 0
      %4317 = vmatprep.subr.bf16.mxu0 0
      %4318 = vmatpush2.bf16.msra.mxu0 0
      %4319 = vmatprep.subr.bf16.mxu0 0
      %4320 = vmatpush2.bf16.msra.mxu0 0
      %4321 = vmatprep.mubr.bf16.mxu0 0
      %4322 = vmatmul.mubr.bf16.gmra.mxu0 %v4001
      %v4323 = vpop.f32.mrf.mxu0
      %v4324 = vadd.f32 %v4284, %v4323
      %v4325 = vpop.f32.mrf.mxu0
      %v4326 = vpop.f32.mrf.mxu0
      %v4327 = vpop.f32.mrf.mxu0
      %4328 = vdwg.mxu0
      %v4329 = vand.u32 2147483647, %v4079
      %v4330 = vand.u32 2147483647, %v4081
      %v4331 = vand.u32 2147483647, %v4161
      %v4332 = vand.u32 2147483647, %v4163
      %v4333 = vand.u32 2147483647, %v4243
      %v4334 = vand.u32 2147483647, %v4245
      %v4335 = vand.u32 2147483647, %v4324
      %v4336 = vsub.f32 0.0, %v4329
      %v4337 = vsub.f32 0.0, %v4330
      %v4338 = vsub.f32 0.0, %v4331
      %v4339 = vsub.f32 0.0, %v4332
      %v4340 = vsub.f32 0.0, %v4333
      %v4341 = vsub.f32 0.0, %v4334
      %v4342 = vsub.f32 0.0, %v4335
      %v4343 = vmul.f32 %v4336, 1.442695
      %v4344 = vpow.pop %v4343
      %v4345 = vmul.f32 %v4337, 1.442695
      %v4346 = vpow.pop %v4345
      %v4347 = vmul.f32 %v4338, 1.442695
      %v4348 = vpow.pop %v4347
      %v4349 = vmul.f32 %v4339, 1.442695
      %v4350 = vpow.pop %v4349
      %v4351 = vmul.f32 %v4340, 1.442695
      %v4352 = vpow.pop %v4351
      %v4353 = vmul.f32 %v4341, 1.442695
      %v4354 = vpow.pop %v4353
      %v4355 = vmul.f32 %v4342, 1.442695
      %v4356 = vpow.pop %v4355
      %v4357 = vadd.f32 %v4344, 1.0
      %v4358 = vadd.f32 %v4346, 1.0
      %v4359 = vadd.f32 %v4348, 1.0
      %v4360 = vadd.f32 %v4350, 1.0
      %v4361 = vadd.f32 %v4352, 1.0
      %v4362 = vadd.f32 %v4354, 1.0
      %v4363 = vadd.f32 %v4356, 1.0
      %v4364 = vrcp.pop %v4357
      %v4365 = vmul.f32 1.0, %v4364
      %v4366 = vrcp.pop %v4358
      %v4367 = vmul.f32 1.0, %v4366
      %v4368 = vrcp.pop %v4359
      %v4369 = vmul.f32 1.0, %v4368
      %v4370 = vrcp.pop %v4360
      %v4371 = vmul.f32 1.0, %v4370
      %v4372 = vrcp.pop %v4361
      %v4373 = vmul.f32 1.0, %v4372
      %v4374 = vrcp.pop %v4362
      %v4375 = vmul.f32 1.0, %v4374
      %v4376 = vrcp.pop %v4363
      %v4377 = vmul.f32 1.0, %v4376
      %vm4378 = vcmp.ge.f32.partialorder %v4079, 0.0
      %vm4379 = vcmp.ge.f32.partialorder %v4081, 0.0
      %vm4380 = vcmp.ge.f32.partialorder %v4161, 0.0
      %vm4381 = vcmp.ge.f32.partialorder %v4163, 0.0
      %vm4382 = vcmp.ge.f32.partialorder %v4243, 0.0
      %vm4383 = vcmp.ge.f32.partialorder %v4245, 0.0
      %vm4384 = vcmp.ge.f32.partialorder %v4324, 0.0
      %v4385 = vsub.f32 1.0, %v4365
      %v4386 = vsub.f32 1.0, %v4367
      %v4387 = vsub.f32 1.0, %v4369
      %v4388 = vsub.f32 1.0, %v4371
      %v4389 = vsub.f32 1.0, %v4373
      %v4390 = vsub.f32 1.0, %v4375
      %v4391 = vsub.f32 1.0, %v4377
      %v4392 = vsel %vm4378, %v4365, %v4385
      %v4393 = vsel %vm4379, %v4367, %v4386
      %v4394 = vsel %vm4380, %v4369, %v4387
      %v4395 = vsel %vm4381, %v4371, %v4388
      %v4396 = vsel %vm4382, %v4373, %v4389
      %v4397 = vsel %vm4383, %v4375, %v4390
      %v4398 = vsel %vm4384, %v4377, %v4391
      %v4399 = vmul.f32 %v4392, %v999
      %v4400 = vmul.f32 %v4393, %v1003
      %v4401 = vmul.f32 %v4394, %v1007
      %v4402 = vmul.f32 %v4395, %v1011
      %v4403 = vmul.f32 %v4396, %v1015
      %v4404 = vmul.f32 %v4397, %v1019
      %v4405 = vmul.f32 %v4398, %v1023
      %4407 = vrot.lane.b32.xlu0 %v4405, 51
      %v4408 = vpop.permute.xlu0 %4407
      %4416 = vrot.lane.b32.xlu0 %v4399, 19
      %v4417 = vpop.permute.xlu0 %4416
      %4418 = vrot.lane.b32.xlu0 %v4400, 19
      %v4419 = vpop.permute.xlu0 %4418
      %4420 = vrot.lane.b32.xlu0 %v4401, 19
      %v4421 = vpop.permute.xlu0 %4420
      %4422 = vrot.lane.b32.xlu0 %v4402, 19
      %v4423 = vpop.permute.xlu0 %4422
      %4424 = vrot.lane.b32.xlu0 %v4403, 19
      %v4425 = vpop.permute.xlu0 %4424
      %4426 = vrot.lane.b32.xlu0 %v4404, 19
      %v4427 = vpop.permute.xlu0 %4426
      %4428 = vrot.lane.b32.xlu0 %v4405, 19
      %v4429 = vpop.permute.xlu0 %4428
      %v4430 = vsel %vm377, %v4417, %v4419
      %v4431 = vsel %vm377, %v4419, %v4421
      %v4432 = vsel %vm377, %v4421, %v4423
      %v4433 = vsel %vm377, %v4423, %v4425
      %v4434 = vsel %vm377, %v4425, %v4427
      %v4435 = vsel %vm377, %v4427, %v4429
      %v4443 = vsel %vm377, %v4408, %v4417
      %4444 = vrot.lane.b32.xlu0 %v4405, 50
      %v4445 = vpop.permute.xlu0 %4444
      %4447 = vrot.lane.b32.xlu0 %v4399, 18
      %v4448 = vpop.permute.xlu0 %4447
      %4449 = vrot.lane.b32.xlu0 %v4400, 18
      %v4450 = vpop.permute.xlu0 %4449
      %4451 = vrot.lane.b32.xlu0 %v4401, 18
      %v4452 = vpop.permute.xlu0 %4451
      %4453 = vrot.lane.b32.xlu0 %v4402, 18
      %v4454 = vpop.permute.xlu0 %4453
      %4455 = vrot.lane.b32.xlu0 %v4403, 18
      %v4456 = vpop.permute.xlu0 %4455
      %4457 = vrot.lane.b32.xlu0 %v4404, 18
      %v4458 = vpop.permute.xlu0 %4457
      %4459 = vrot.lane.b32.xlu0 %v4405, 18
      %v4460 = vpop.permute.xlu0 %4459
      %v4461 = vsel %vm409, %v4448, %v4450
      %v4462 = vsel %vm409, %v4450, %v4452
      %v4463 = vsel %vm409, %v4452, %v4454
      %v4464 = vsel %vm409, %v4454, %v4456
      %v4465 = vsel %vm409, %v4456, %v4458
      %v4466 = vsel %vm409, %v4458, %v4460
      %v4468 = vsel %vm409, %v4445, %v4448
      %4469 = vrot.lane.b32.xlu0 %v4405, 49
      %v4470 = vpop.permute.xlu0 %4469
      %4472 = vrot.lane.b32.xlu0 %v4399, 17
      %v4473 = vpop.permute.xlu0 %4472
      %4474 = vrot.lane.b32.xlu0 %v4400, 17
      %v4475 = vpop.permute.xlu0 %4474
      %4476 = vrot.lane.b32.xlu0 %v4401, 17
      %v4477 = vpop.permute.xlu0 %4476
      %4478 = vrot.lane.b32.xlu0 %v4402, 17
      %v4479 = vpop.permute.xlu0 %4478
      %4480 = vrot.lane.b32.xlu0 %v4403, 17
      %v4481 = vpop.permute.xlu0 %4480
      %4482 = vrot.lane.b32.xlu0 %v4404, 17
      %v4483 = vpop.permute.xlu0 %4482
      %4484 = vrot.lane.b32.xlu0 %v4405, 17
      %v4485 = vpop.permute.xlu0 %4484
      %v4486 = vsel %vm435, %v4473, %v4475
      %v4487 = vsel %vm435, %v4475, %v4477
      %v4488 = vsel %vm435, %v4477, %v4479
      %v4489 = vsel %vm435, %v4479, %v4481
      %v4490 = vsel %vm435, %v4481, %v4483
      %v4491 = vsel %vm435, %v4483, %v4485
      %v4499 = vsel %vm435, %v4470, %v4473
      %4500 = vrot.lane.b32.xlu0 %v4405, 33
      %v4501 = vpop.permute.xlu0 %4500
      %4503 = vrot.lane.b32.xlu0 %v4399, 1
      %v4504 = vpop.permute.xlu0 %4503
      %4505 = vrot.lane.b32.xlu0 %v4400, 1
      %v4506 = vpop.permute.xlu0 %4505
      %4507 = vrot.lane.b32.xlu0 %v4401, 1
      %v4508 = vpop.permute.xlu0 %4507
      %4509 = vrot.lane.b32.xlu0 %v4402, 1
      %v4510 = vpop.permute.xlu0 %4509
      %4511 = vrot.lane.b32.xlu0 %v4403, 1
      %v4512 = vpop.permute.xlu0 %4511
      %4513 = vrot.lane.b32.xlu0 %v4404, 1
      %v4514 = vpop.permute.xlu0 %4513
      %4515 = vrot.lane.b32.xlu0 %v4405, 1
      %v4516 = vpop.permute.xlu0 %4515
      %v4517 = vsel %vm461, %v4504, %v4506
      %v4518 = vsel %vm461, %v4506, %v4508
      %v4519 = vsel %vm461, %v4508, %v4510
      %v4520 = vsel %vm461, %v4510, %v4512
      %v4521 = vsel %vm461, %v4512, %v4514
      %v4522 = vsel %vm461, %v4514, %v4516
      %v4524 = vsel %vm461, %v4501, %v4504
      %4525 = vrot.lane.b32.xlu0 %v4399, 127
      %v4526 = vpop.permute.xlu0 %4525
      %4527 = vrot.lane.b32.xlu0 %v4400, 127
      %v4528 = vpop.permute.xlu0 %4527
      %4529 = vrot.lane.b32.xlu0 %v4401, 127
      %v4530 = vpop.permute.xlu0 %4529
      %4531 = vrot.lane.b32.xlu0 %v4402, 127
      %v4532 = vpop.permute.xlu0 %4531
      %4533 = vrot.lane.b32.xlu0 %v4403, 127
      %v4534 = vpop.permute.xlu0 %4533
      %4535 = vrot.lane.b32.xlu0 %v4404, 127
      %v4536 = vpop.permute.xlu0 %4535
      %4537 = vrot.lane.b32.xlu0 %v4405, 127
      %v4538 = vpop.permute.xlu0 %4537
      %v4539 = vsel %vm484, %v4526, %v4528
      %v4540 = vsel %vm484, %v4528, %v4530
      %v4541 = vsel %vm484, %v4530, %v4532
      %v4542 = vsel %vm484, %v4532, %v4534
      %v4543 = vsel %vm484, %v4534, %v4536
      %v4544 = vsel %vm484, %v4536, %v4538
      %4546 = vrot.lane.b32.xlu0 %v4399, 95
      %v4547 = vpop.permute.xlu0 %4546
      %v4549 = vsel %vm495, %v4538, %v4547
      %4550 = vrot.lane.b32.xlu0 %v4399, 111
      %v4551 = vpop.permute.xlu0 %4550
      %4552 = vrot.lane.b32.xlu0 %v4400, 111
      %v4553 = vpop.permute.xlu0 %4552
      %4554 = vrot.lane.b32.xlu0 %v4401, 111
      %v4555 = vpop.permute.xlu0 %4554
      %4556 = vrot.lane.b32.xlu0 %v4402, 111
      %v4557 = vpop.permute.xlu0 %4556
      %4558 = vrot.lane.b32.xlu0 %v4403, 111
      %v4559 = vpop.permute.xlu0 %4558
      %4560 = vrot.lane.b32.xlu0 %v4404, 111
      %v4561 = vpop.permute.xlu0 %4560
      %4562 = vrot.lane.b32.xlu0 %v4405, 111
      %v4563 = vpop.permute.xlu0 %4562
      %v4564 = vsel %vm511, %v4551, %v4553
      %v4565 = vsel %vm511, %v4553, %v4555
      %v4566 = vsel %vm511, %v4555, %v4557
      %v4567 = vsel %vm511, %v4557, %v4559
      %v4568 = vsel %vm511, %v4559, %v4561
      %v4569 = vsel %vm511, %v4561, %v4563
      %4577 = vrot.lane.b32.xlu0 %v4399, 79
      %v4578 = vpop.permute.xlu0 %4577
      %v4580 = vsel %vm522, %v4563, %v4578
      %4581 = vrot.lane.b32.xlu0 %v4399, 110
      %v4582 = vpop.permute.xlu0 %4581
      %4583 = vrot.lane.b32.xlu0 %v4400, 110
      %v4584 = vpop.permute.xlu0 %4583
      %4585 = vrot.lane.b32.xlu0 %v4401, 110
      %v4586 = vpop.permute.xlu0 %4585
      %4587 = vrot.lane.b32.xlu0 %v4402, 110
      %v4588 = vpop.permute.xlu0 %4587
      %4589 = vrot.lane.b32.xlu0 %v4403, 110
      %v4590 = vpop.permute.xlu0 %4589
      %4591 = vrot.lane.b32.xlu0 %v4404, 110
      %v4592 = vpop.permute.xlu0 %4591
      %4593 = vrot.lane.b32.xlu0 %v4405, 110
      %v4594 = vpop.permute.xlu0 %4593
      %v4595 = vsel %vm538, %v4582, %v4584
      %v4596 = vsel %vm538, %v4584, %v4586
      %v4597 = vsel %vm538, %v4586, %v4588
      %v4598 = vsel %vm538, %v4588, %v4590
      %v4599 = vsel %vm538, %v4590, %v4592
      %v4600 = vsel %vm538, %v4592, %v4594
      %4602 = vrot.lane.b32.xlu0 %v4399, 78
      %v4603 = vpop.permute.xlu0 %4602
      %v4605 = vsel %vm549, %v4594, %v4603
      %4606 = vrot.lane.b32.xlu0 %v4399, 109
      %v4607 = vpop.permute.xlu0 %4606
      %4608 = vrot.lane.b32.xlu0 %v4400, 109
      %v4609 = vpop.permute.xlu0 %4608
      %4610 = vrot.lane.b32.xlu0 %v4401, 109
      %v4611 = vpop.permute.xlu0 %4610
      %4612 = vrot.lane.b32.xlu0 %v4402, 109
      %v4613 = vpop.permute.xlu0 %4612
      %4614 = vrot.lane.b32.xlu0 %v4403, 109
      %v4615 = vpop.permute.xlu0 %4614
      %4616 = vrot.lane.b32.xlu0 %v4404, 109
      %v4617 = vpop.permute.xlu0 %4616
      %4618 = vrot.lane.b32.xlu0 %v4405, 109
      %v4619 = vpop.permute.xlu0 %4618
      %v4620 = vsel %vm565, %v4607, %v4609
      %v4621 = vsel %vm565, %v4609, %v4611
      %v4622 = vsel %vm565, %v4611, %v4613
      %v4623 = vsel %vm565, %v4613, %v4615
      %v4624 = vsel %vm565, %v4615, %v4617
      %v4625 = vsel %vm565, %v4617, %v4619
      %4633 = vrot.lane.b32.xlu0 %v4399, 77
      %v4634 = vpop.permute.xlu0 %4633
      %v4636 = vsel %vm582, %v4619, %v4634
      %v4638 = vrot.slane %v4468, 4
      %v4639 = vrot.slane %v4461, 4
      %v4640 = vrot.slane %v4462, 4
      %v4641 = vrot.slane %v4463, 4
      %v4642 = vrot.slane %v4464, 4
      %v4643 = vrot.slane %v4465, 4
      %v4644 = vrot.slane %v4466, 4
      %v4653 = vrot.slane %v4524, 4
      %v4654 = vrot.slane %v4517, 4
      %v4655 = vrot.slane %v4518, 4
      %v4656 = vrot.slane %v4519, 4
      %v4657 = vrot.slane %v4520, 4
      %v4658 = vrot.slane %v4521, 4
      %v4659 = vrot.slane %v4522, 4
      %v4668 = vrot.slane %v4539, 4
      %v4669 = vrot.slane %v4540, 4
      %v4670 = vrot.slane %v4541, 4
      %v4671 = vrot.slane %v4542, 4
      %v4672 = vrot.slane %v4543, 4
      %v4673 = vrot.slane %v4544, 4
      %v4674 = vrot.slane %v4549, 4
      %v4683 = vrot.slane %v4595, 4
      %v4684 = vrot.slane %v4596, 4
      %v4685 = vrot.slane %v4597, 4
      %v4686 = vrot.slane %v4598, 4
      %v4687 = vrot.slane %v4599, 4
      %v4688 = vrot.slane %v4600, 4
      %v4689 = vrot.slane %v4605, 4
      %v4697 = vsel %vm705, %v4443, %v4638
      %v4698 = vsel %vm705, %v4430, %v4639
      %v4699 = vsel %vm705, %v4431, %v4640
      %v4700 = vsel %vm705, %v4432, %v4641
      %v4701 = vsel %vm705, %v4433, %v4642
      %v4702 = vsel %vm705, %v4434, %v4643
      %v4703 = vsel %vm705, %v4435, %v4644
      %v4704 = vsel %vm705, %v4499, %v4653
      %v4705 = vsel %vm705, %v4486, %v4654
      %v4706 = vsel %vm705, %v4487, %v4655
      %v4707 = vsel %vm705, %v4488, %v4656
      %v4708 = vsel %vm705, %v4489, %v4657
      %v4709 = vsel %vm705, %v4490, %v4658
      %v4710 = vsel %vm705, %v4491, %v4659
      %v4711 = vsel %vm705, %v4399, %v4668
      %v4712 = vsel %vm705, %v4400, %v4669
      %v4713 = vsel %vm705, %v4401, %v4670
      %v4714 = vsel %vm705, %v4402, %v4671
      %v4715 = vsel %vm705, %v4403, %v4672
      %v4716 = vsel %vm705, %v4404, %v4673
      %v4717 = vsel %vm705, %v4405, %v4674
      %v4718 = vsel %vm705, %v4564, %v4683
      %v4719 = vsel %vm705, %v4565, %v4684
      %v4720 = vsel %vm705, %v4566, %v4685
      %v4721 = vsel %vm705, %v4567, %v4686
      %v4722 = vsel %vm705, %v4568, %v4687
      %v4723 = vsel %vm705, %v4569, %v4688
      %v4724 = vsel %vm705, %v4580, %v4689
      %v4725 = vsel %vm705, %v4620, 0.0
      %v4726 = vsel %vm705, %v4621, 0.0
      %v4727 = vsel %vm705, %v4622, 0.0
      %v4728 = vsel %vm705, %v4623, 0.0
      %v4729 = vsel %vm705, %v4624, 0.0
      %v4730 = vsel %vm705, %v4625, 0.0
      %v4731 = vsel %vm705, %v4636, 0.0
      %v4732 = vpack.c.bf16 %v4704, %v4697
      %v4733 = vpack.c.bf16 %v4705, %v4698
      %v4734 = vpack.c.bf16 %v4706, %v4699
      %v4735 = vpack.c.bf16 %v4707, %v4700
      %v4736 = vpack.c.bf16 %v4708, %v4701
      %v4737 = vpack.c.bf16 %v4709, %v4702
      %v4738 = vpack.c.bf16 %v4710, %v4703
      %v4739 = vpack.c.bf16 %v4718, %v4711
      %v4740 = vpack.c.bf16 %v4719, %v4712
      %v4741 = vpack.c.bf16 %v4720, %v4713
      %v4742 = vpack.c.bf16 %v4721, %v4714
      %v4743 = vpack.c.bf16 %v4722, %v4715
      %v4744 = vpack.c.bf16 %v4723, %v4716
      %v4745 = vpack.c.bf16 %v4724, %v4717
      %v4746 = vpack.c.bf16 %v4725, %v4725
      %v4747 = vpack.c.bf16 %v4726, %v4726
      %v4748 = vpack.c.bf16 %v4727, %v4727
      %v4749 = vpack.c.bf16 %v4728, %v4728
      %v4750 = vpack.c.bf16 %v4729, %v4729
      %v4751 = vpack.c.bf16 %v4730, %v4730
      %v4752 = vpack.c.bf16 %v4731, %v4731
      %v4753 = vld [vmem:[%s7] sm:$0xf]
      %4754 = vset.pattern.permute.xlu0 4
      %4755 = vperm.xlu0 %4754, %v752
      %v4756 = vpop.permute.xlu0 %4755
      %vm4758 = vcmask 326656
      %v4760 = vsel %vm4758, %v4753, 0
      %v4763 = vsel %vm705, %v4746, 0
      %v4766 = vsel %vm705, %v4747, 0
      %v4769 = vsel %vm705, %v4748, 0
      %v4772 = vsel %vm705, %v4749, 0
      %v4775 = vsel %vm705, %v4750, 0
      %v4778 = vsel %vm705, %v4751, 0
      %v4781 = vsel %vm705, %v4752, 0
      %4783 = vmatprep.subr.bf16.mxu0 0
      %4784 = vmatpush1.bf16.msra.mxu0 0
      %4785 = vmatprep.subr.bf16.mxu0 0
      %4786 = vmatpush1.bf16.msra.mxu0 0
      %4787 = vmatprep.subr.bf16.mxu0 0
      %4788 = vmatpush1.bf16.msra.mxu0 0
      %4789 = vmatprep.subr.bf16.mxu0 0
      %4790 = vmatpush1.bf16.msra.mxu0 0
      %4791 = vmatprep.subr.bf16.mxu0 0
      %4792 = vmatpush1.bf16.msra.mxu0 0
      %4793 = vmatprep.subr.bf16.mxu0 %v4766
      %4794 = vmatpush1.bf16.msra.mxu0 %v4763
      %4795 = vmatprep.subr.bf16.mxu0 %v4740
      %4796 = vmatpush1.bf16.msra.mxu0 %v4739
      %4797 = vmatprep.subr.bf16.mxu0 %v4733
      %4798 = vmatpush1.bf16.msra.mxu0 %v4732
      %4799 = vmatprep.subr.bf16.mxu0 0
      %4800 = vmatpush2.bf16.msra.mxu0 0
      %4801 = vmatprep.subr.bf16.mxu0 0
      %4802 = vmatpush2.bf16.msra.mxu0 0
      %4803 = vmatprep.subr.bf16.mxu0 0
      %4804 = vmatpush2.bf16.msra.mxu0 0
      %4805 = vmatprep.subr.bf16.mxu0 0
      %4806 = vmatpush2.bf16.msra.mxu0 0
      %4807 = vmatprep.subr.bf16.mxu0 0
      %4808 = vmatpush2.bf16.msra.mxu0 0
      %4809 = vmatprep.subr.bf16.mxu0 0
      %4810 = vmatpush2.bf16.msra.mxu0 0
      %4811 = vmatprep.subr.bf16.mxu0 0
      %4812 = vmatpush2.bf16.msra.mxu0 0
      %4813 = vmatprep.subr.bf16.mxu0 0
      %4814 = vmatpush2.bf16.msra.mxu0 0
      %4815 = vmatprep.mubr.bf16.mxu0 0
      %4816 = vmatmul.mubr.bf16.gmra.mxu0 %v4760
      %v4817 = vpop.f32.mrf.mxu0
      %v4818 = vadd.f32 %v4756, %v4817
      %v4819 = vpop.f32.mrf.mxu0
      %v4820 = vadd.f32 %v4756, %v4819
      %v4821 = vpop.f32.mrf.mxu0
      %v4822 = vpop.f32.mrf.mxu0
      %4823 = vdwg.mxu0
      %4824 = vmatprep.subr.bf16.mxu0 0
      %4825 = vmatpush1.bf16.msra.mxu0 0
      %4826 = vmatprep.subr.bf16.mxu0 0
      %4827 = vmatpush1.bf16.msra.mxu0 0
      %4828 = vmatprep.subr.bf16.mxu0 0
      %4829 = vmatpush1.bf16.msra.mxu0 0
      %4830 = vmatprep.subr.bf16.mxu0 0
      %4831 = vmatpush1.bf16.msra.mxu0 0
      %4832 = vmatprep.subr.bf16.mxu0 0
      %4833 = vmatpush1.bf16.msra.mxu0 0
      %4834 = vmatprep.subr.bf16.mxu0 %v4772
      %4835 = vmatpush1.bf16.msra.mxu0 %v4769
      %4836 = vmatprep.subr.bf16.mxu0 %v4742
      %4837 = vmatpush1.bf16.msra.mxu0 %v4741
      %4838 = vmatprep.subr.bf16.mxu0 %v4735
      %4839 = vmatpush1.bf16.msra.mxu0 %v4734
      %4840 = vmatprep.subr.bf16.mxu0 0
      %4841 = vmatpush2.bf16.msra.mxu0 0
      %4842 = vmatprep.subr.bf16.mxu0 0
      %4843 = vmatpush2.bf16.msra.mxu0 0
      %4844 = vmatprep.subr.bf16.mxu0 0
      %4845 = vmatpush2.bf16.msra.mxu0 0
      %4846 = vmatprep.subr.bf16.mxu0 0
      %4847 = vmatpush2.bf16.msra.mxu0 0
      %4848 = vmatprep.subr.bf16.mxu0 0
      %4849 = vmatpush2.bf16.msra.mxu0 0
      %4850 = vmatprep.subr.bf16.mxu0 0
      %4851 = vmatpush2.bf16.msra.mxu0 0
      %4852 = vmatprep.subr.bf16.mxu0 0
      %4853 = vmatpush2.bf16.msra.mxu0 0
      %4854 = vmatprep.subr.bf16.mxu0 0
      %4855 = vmatpush2.bf16.msra.mxu0 0
      %4856 = vmatprep.mubr.bf16.mxu0 0
      %4857 = vmatmul.mubr.bf16.gmra.mxu0 %v4760
      %v4858 = vpop.f32.mrf.mxu0
      %v4859 = vadd.f32 %v4756, %v4858
      %v4860 = vpop.f32.mrf.mxu0
      %v4861 = vadd.f32 %v4756, %v4860
      %v4862 = vpop.f32.mrf.mxu0
      %v4863 = vpop.f32.mrf.mxu0
      %4864 = vdwg.mxu0
      %4865 = vmatprep.subr.bf16.mxu0 0
      %4866 = vmatpush1.bf16.msra.mxu0 0
      %4867 = vmatprep.subr.bf16.mxu0 0
      %4868 = vmatpush1.bf16.msra.mxu0 0
      %4869 = vmatprep.subr.bf16.mxu0 0
      %4870 = vmatpush1.bf16.msra.mxu0 0
      %4871 = vmatprep.subr.bf16.mxu0 0
      %4872 = vmatpush1.bf16.msra.mxu0 0
      %4873 = vmatprep.subr.bf16.mxu0 0
      %4874 = vmatpush1.bf16.msra.mxu0 0
      %4875 = vmatprep.subr.bf16.mxu0 %v4778
      %4876 = vmatpush1.bf16.msra.mxu0 %v4775
      %4877 = vmatprep.subr.bf16.mxu0 %v4744
      %4878 = vmatpush1.bf16.msra.mxu0 %v4743
      %4879 = vmatprep.subr.bf16.mxu0 %v4737
      %4880 = vmatpush1.bf16.msra.mxu0 %v4736
      %4881 = vmatprep.subr.bf16.mxu0 0
      %4882 = vmatpush2.bf16.msra.mxu0 0
      %4883 = vmatprep.subr.bf16.mxu0 0
      %4884 = vmatpush2.bf16.msra.mxu0 0
      %4885 = vmatprep.subr.bf16.mxu0 0
      %4886 = vmatpush2.bf16.msra.mxu0 0
      %4887 = vmatprep.subr.bf16.mxu0 0
      %4888 = vmatpush2.bf16.msra.mxu0 0
      %4889 = vmatprep.subr.bf16.mxu0 0
      %4890 = vmatpush2.bf16.msra.mxu0 0
      %4891 = vmatprep.subr.bf16.mxu0 0
      %4892 = vmatpush2.bf16.msra.mxu0 0
      %4893 = vmatprep.subr.bf16.mxu0 0
      %4894 = vmatpush2.bf16.msra.mxu0 0
      %4895 = vmatprep.subr.bf16.mxu0 0
      %4896 = vmatpush2.bf16.msra.mxu0 0
      %4897 = vmatprep.mubr.bf16.mxu0 0
      %4898 = vmatmul.mubr.bf16.gmra.mxu0 %v4760
      %v4899 = vpop.f32.mrf.mxu0
      %v4900 = vadd.f32 %v4756, %v4899
      %v4901 = vpop.f32.mrf.mxu0
      %v4902 = vadd.f32 %v4756, %v4901
      %v4903 = vpop.f32.mrf.mxu0
      %v4904 = vpop.f32.mrf.mxu0
      %4905 = vdwg.mxu0
      %4906 = vmatprep.subr.bf16.mxu0 0
      %4907 = vmatpush1.bf16.msra.mxu0 0
      %4908 = vmatprep.subr.bf16.mxu0 0
      %4909 = vmatpush1.bf16.msra.mxu0 0
      %4910 = vmatprep.subr.bf16.mxu0 0
      %4911 = vmatpush1.bf16.msra.mxu0 0
      %4912 = vmatprep.subr.bf16.mxu0 0
      %4913 = vmatpush1.bf16.msra.mxu0 0
      %4914 = vmatprep.subr.bf16.mxu0 0
      %4915 = vmatpush1.bf16.msra.mxu0 0
      %4916 = vmatprep.subr.bf16.mxu0 0
      %4917 = vmatpush1.bf16.msra.mxu0 %v4781
      %4918 = vmatprep.subr.bf16.mxu0 0
      %4919 = vmatpush1.bf16.msra.mxu0 %v4745
      %4920 = vmatprep.subr.bf16.mxu0 0
      %4921 = vmatpush1.bf16.msra.mxu0 %v4738
      %4922 = vmatprep.subr.bf16.mxu0 0
      %4923 = vmatpush2.bf16.msra.mxu0 0
      %4924 = vmatprep.subr.bf16.mxu0 0
      %4925 = vmatpush2.bf16.msra.mxu0 0
      %4926 = vmatprep.subr.bf16.mxu0 0
      %4927 = vmatpush2.bf16.msra.mxu0 0
      %4928 = vmatprep.subr.bf16.mxu0 0
      %4929 = vmatpush2.bf16.msra.mxu0 0
      %4930 = vmatprep.subr.bf16.mxu0 0
      %4931 = vmatpush2.bf16.msra.mxu0 0
      %4932 = vmatprep.subr.bf16.mxu0 0
      %4933 = vmatpush2.bf16.msra.mxu0 0
      %4934 = vmatprep.subr.bf16.mxu0 0
      %4935 = vmatpush2.bf16.msra.mxu0 0
      %4936 = vmatprep.subr.bf16.mxu0 0
      %4937 = vmatpush2.bf16.msra.mxu0 0
      %4938 = vmatprep.mubr.bf16.mxu0 0
      %4939 = vmatmul.mubr.bf16.gmra.mxu0 %v4760
      %v4940 = vpop.f32.mrf.mxu0
      %v4941 = vadd.f32 %v4756, %v4940
      %v4942 = vpop.f32.mrf.mxu0
      %v4943 = vpop.f32.mrf.mxu0
      %v4944 = vpop.f32.mrf.mxu0
      %4945 = vdwg.mxu0
      %v4946 = vand.u32 2147483647, %v4818
      %v4947 = vand.u32 2147483647, %v4820
      %v4948 = vand.u32 2147483647, %v4859
      %v4949 = vand.u32 2147483647, %v4861
      %v4950 = vand.u32 2147483647, %v4900
      %v4951 = vand.u32 2147483647, %v4902
      %v4952 = vand.u32 2147483647, %v4941
      %v4953 = vsub.f32 0.0, %v4946
      %v4954 = vsub.f32 0.0, %v4947
      %v4955 = vsub.f32 0.0, %v4948
      %v4956 = vsub.f32 0.0, %v4949
      %v4957 = vsub.f32 0.0, %v4950
      %v4958 = vsub.f32 0.0, %v4951
      %v4959 = vsub.f32 0.0, %v4952
      %v4960 = vmul.f32 %v4953, 1.442695
      %v4961 = vpow.pop %v4960
      %v4962 = vmul.f32 %v4954, 1.442695
      %v4963 = vpow.pop %v4962
      %v4964 = vmul.f32 %v4955, 1.442695
      %v4965 = vpow.pop %v4964
      %v4966 = vmul.f32 %v4956, 1.442695
      %v4967 = vpow.pop %v4966
      %v4968 = vmul.f32 %v4957, 1.442695
      %v4969 = vpow.pop %v4968
      %v4970 = vmul.f32 %v4958, 1.442695
      %v4971 = vpow.pop %v4970
      %v4972 = vmul.f32 %v4959, 1.442695
      %v4973 = vpow.pop %v4972
      %v4974 = vadd.f32 %v4961, 1.0
      %v4975 = vadd.f32 %v4963, 1.0
      %v4976 = vadd.f32 %v4965, 1.0
      %v4977 = vadd.f32 %v4967, 1.0
      %v4978 = vadd.f32 %v4969, 1.0
      %v4979 = vadd.f32 %v4971, 1.0
      %v4980 = vadd.f32 %v4973, 1.0
      %v4981 = vrcp.pop %v4974
      %v4982 = vmul.f32 1.0, %v4981
      %v4983 = vrcp.pop %v4975
      %v4984 = vmul.f32 1.0, %v4983
      %v4985 = vrcp.pop %v4976
      %v4986 = vmul.f32 1.0, %v4985
      %v4987 = vrcp.pop %v4977
      %v4988 = vmul.f32 1.0, %v4987
      %v4989 = vrcp.pop %v4978
      %v4990 = vmul.f32 1.0, %v4989
      %v4991 = vrcp.pop %v4979
      %v4992 = vmul.f32 1.0, %v4991
      %v4993 = vrcp.pop %v4980
      %v4994 = vmul.f32 1.0, %v4993
      %vm4995 = vcmp.ge.f32.partialorder %v4818, 0.0
      %vm4996 = vcmp.ge.f32.partialorder %v4820, 0.0
      %vm4997 = vcmp.ge.f32.partialorder %v4859, 0.0
      %vm4998 = vcmp.ge.f32.partialorder %v4861, 0.0
      %vm4999 = vcmp.ge.f32.partialorder %v4900, 0.0
      %vm5000 = vcmp.ge.f32.partialorder %v4902, 0.0
      %vm5001 = vcmp.ge.f32.partialorder %v4941, 0.0
      %v5002 = vsub.f32 1.0, %v4982
      %v5003 = vsub.f32 1.0, %v4984
      %v5004 = vsub.f32 1.0, %v4986
      %v5005 = vsub.f32 1.0, %v4988
      %v5006 = vsub.f32 1.0, %v4990
      %v5007 = vsub.f32 1.0, %v4992
      %v5008 = vsub.f32 1.0, %v4994
      %v5009 = vsel %vm4995, %v4982, %v5002
      %v5010 = vsel %vm4996, %v4984, %v5003
      %v5011 = vsel %vm4997, %v4986, %v5004
      %v5012 = vsel %vm4998, %v4988, %v5005
      %v5013 = vsel %vm4999, %v4990, %v5006
      %v5014 = vsel %vm5000, %v4992, %v5007
      %v5015 = vsel %vm5001, %v4994, %v5008
      %v5016 = vmul.f32 %v5009, %v999
      %v5017 = vmul.f32 %v5010, %v1003
      %v5018 = vmul.f32 %v5011, %v1007
      %v5019 = vmul.f32 %v5012, %v1011
      %v5020 = vmul.f32 %v5013, %v1015
      %v5021 = vmul.f32 %v5014, %v1019
      %v5022 = vmul.f32 %v5015, %v1023
      %5024 = vrot.lane.b32.xlu0 %v5022, 51
      %v5025 = vpop.permute.xlu0 %5024
      %5033 = vrot.lane.b32.xlu0 %v5016, 19
      %v5034 = vpop.permute.xlu0 %5033
      %5035 = vrot.lane.b32.xlu0 %v5017, 19
      %v5036 = vpop.permute.xlu0 %5035
      %5037 = vrot.lane.b32.xlu0 %v5018, 19
      %v5038 = vpop.permute.xlu0 %5037
      %5039 = vrot.lane.b32.xlu0 %v5019, 19
      %v5040 = vpop.permute.xlu0 %5039
      %5041 = vrot.lane.b32.xlu0 %v5020, 19
      %v5042 = vpop.permute.xlu0 %5041
      %5043 = vrot.lane.b32.xlu0 %v5021, 19
      %v5044 = vpop.permute.xlu0 %5043
      %5045 = vrot.lane.b32.xlu0 %v5022, 19
      %v5046 = vpop.permute.xlu0 %5045
      %v5047 = vsel %vm377, %v5034, %v5036
      %v5048 = vsel %vm377, %v5036, %v5038
      %v5049 = vsel %vm377, %v5038, %v5040
      %v5050 = vsel %vm377, %v5040, %v5042
      %v5051 = vsel %vm377, %v5042, %v5044
      %v5052 = vsel %vm377, %v5044, %v5046
      %v5060 = vsel %vm377, %v5025, %v5034
      %5061 = vrot.lane.b32.xlu0 %v5022, 50
      %v5062 = vpop.permute.xlu0 %5061
      %5064 = vrot.lane.b32.xlu0 %v5016, 18
      %v5065 = vpop.permute.xlu0 %5064
      %5066 = vrot.lane.b32.xlu0 %v5017, 18
      %v5067 = vpop.permute.xlu0 %5066
      %5068 = vrot.lane.b32.xlu0 %v5018, 18
      %v5069 = vpop.permute.xlu0 %5068
      %5070 = vrot.lane.b32.xlu0 %v5019, 18
      %v5071 = vpop.permute.xlu0 %5070
      %5072 = vrot.lane.b32.xlu0 %v5020, 18
      %v5073 = vpop.permute.xlu0 %5072
      %5074 = vrot.lane.b32.xlu0 %v5021, 18
      %v5075 = vpop.permute.xlu0 %5074
      %5076 = vrot.lane.b32.xlu0 %v5022, 18
      %v5077 = vpop.permute.xlu0 %5076
      %v5078 = vsel %vm409, %v5065, %v5067
      %v5079 = vsel %vm409, %v5067, %v5069
      %v5080 = vsel %vm409, %v5069, %v5071
      %v5081 = vsel %vm409, %v5071, %v5073
      %v5082 = vsel %vm409, %v5073, %v5075
      %v5083 = vsel %vm409, %v5075, %v5077
      %v5085 = vsel %vm409, %v5062, %v5065
      %5086 = vrot.lane.b32.xlu0 %v5022, 49
      %v5087 = vpop.permute.xlu0 %5086
      %5089 = vrot.lane.b32.xlu0 %v5016, 17
      %v5090 = vpop.permute.xlu0 %5089
      %5091 = vrot.lane.b32.xlu0 %v5017, 17
      %v5092 = vpop.permute.xlu0 %5091
      %5093 = vrot.lane.b32.xlu0 %v5018, 17
      %v5094 = vpop.permute.xlu0 %5093
      %5095 = vrot.lane.b32.xlu0 %v5019, 17
      %v5096 = vpop.permute.xlu0 %5095
      %5097 = vrot.lane.b32.xlu0 %v5020, 17
      %v5098 = vpop.permute.xlu0 %5097
      %5099 = vrot.lane.b32.xlu0 %v5021, 17
      %v5100 = vpop.permute.xlu0 %5099
      %5101 = vrot.lane.b32.xlu0 %v5022, 17
      %v5102 = vpop.permute.xlu0 %5101
      %v5103 = vsel %vm435, %v5090, %v5092
      %v5104 = vsel %vm435, %v5092, %v5094
      %v5105 = vsel %vm435, %v5094, %v5096
      %v5106 = vsel %vm435, %v5096, %v5098
      %v5107 = vsel %vm435, %v5098, %v5100
      %v5108 = vsel %vm435, %v5100, %v5102
      %v5116 = vsel %vm435, %v5087, %v5090
      %5117 = vrot.lane.b32.xlu0 %v5022, 33
      %v5118 = vpop.permute.xlu0 %5117
      %5120 = vrot.lane.b32.xlu0 %v5016, 1
      %v5121 = vpop.permute.xlu0 %5120
      %5122 = vrot.lane.b32.xlu0 %v5017, 1
      %v5123 = vpop.permute.xlu0 %5122
      %5124 = vrot.lane.b32.xlu0 %v5018, 1
      %v5125 = vpop.permute.xlu0 %5124
      %5126 = vrot.lane.b32.xlu0 %v5019, 1
      %v5127 = vpop.permute.xlu0 %5126
      %5128 = vrot.lane.b32.xlu0 %v5020, 1
      %v5129 = vpop.permute.xlu0 %5128
      %5130 = vrot.lane.b32.xlu0 %v5021, 1
      %v5131 = vpop.permute.xlu0 %5130
      %5132 = vrot.lane.b32.xlu0 %v5022, 1
      %v5133 = vpop.permute.xlu0 %5132
      %v5134 = vsel %vm461, %v5121, %v5123
      %v5135 = vsel %vm461, %v5123, %v5125
      %v5136 = vsel %vm461, %v5125, %v5127
      %v5137 = vsel %vm461, %v5127, %v5129
      %v5138 = vsel %vm461, %v5129, %v5131
      %v5139 = vsel %vm461, %v5131, %v5133
      %v5141 = vsel %vm461, %v5118, %v5121
      %5142 = vrot.lane.b32.xlu0 %v5016, 127
      %v5143 = vpop.permute.xlu0 %5142
      %5144 = vrot.lane.b32.xlu0 %v5017, 127
      %v5145 = vpop.permute.xlu0 %5144
      %5146 = vrot.lane.b32.xlu0 %v5018, 127
      %v5147 = vpop.permute.xlu0 %5146
      %5148 = vrot.lane.b32.xlu0 %v5019, 127
      %v5149 = vpop.permute.xlu0 %5148
      %5150 = vrot.lane.b32.xlu0 %v5020, 127
      %v5151 = vpop.permute.xlu0 %5150
      %5152 = vrot.lane.b32.xlu0 %v5021, 127
      %v5153 = vpop.permute.xlu0 %5152
      %5154 = vrot.lane.b32.xlu0 %v5022, 127
      %v5155 = vpop.permute.xlu0 %5154
      %v5156 = vsel %vm484, %v5143, %v5145
      %v5157 = vsel %vm484, %v5145, %v5147
      %v5158 = vsel %vm484, %v5147, %v5149
      %v5159 = vsel %vm484, %v5149, %v5151
      %v5160 = vsel %vm484, %v5151, %v5153
      %v5161 = vsel %vm484, %v5153, %v5155
      %5163 = vrot.lane.b32.xlu0 %v5016, 95
      %v5164 = vpop.permute.xlu0 %5163
      %v5166 = vsel %vm495, %v5155, %v5164
      %5167 = vrot.lane.b32.xlu0 %v5016, 111
      %v5168 = vpop.permute.xlu0 %5167
      %5169 = vrot.lane.b32.xlu0 %v5017, 111
      %v5170 = vpop.permute.xlu0 %5169
      %5171 = vrot.lane.b32.xlu0 %v5018, 111
      %v5172 = vpop.permute.xlu0 %5171
      %5173 = vrot.lane.b32.xlu0 %v5019, 111
      %v5174 = vpop.permute.xlu0 %5173
      %5175 = vrot.lane.b32.xlu0 %v5020, 111
      %v5176 = vpop.permute.xlu0 %5175
      %5177 = vrot.lane.b32.xlu0 %v5021, 111
      %v5178 = vpop.permute.xlu0 %5177
      %5179 = vrot.lane.b32.xlu0 %v5022, 111
      %v5180 = vpop.permute.xlu0 %5179
      %v5181 = vsel %vm511, %v5168, %v5170
      %v5182 = vsel %vm511, %v5170, %v5172
      %v5183 = vsel %vm511, %v5172, %v5174
      %v5184 = vsel %vm511, %v5174, %v5176
      %v5185 = vsel %vm511, %v5176, %v5178
      %v5186 = vsel %vm511, %v5178, %v5180
      %5194 = vrot.lane.b32.xlu0 %v5016, 79
      %v5195 = vpop.permute.xlu0 %5194
      %v5197 = vsel %vm522, %v5180, %v5195
      %5198 = vrot.lane.b32.xlu0 %v5016, 110
      %v5199 = vpop.permute.xlu0 %5198
      %5200 = vrot.lane.b32.xlu0 %v5017, 110
      %v5201 = vpop.permute.xlu0 %5200
      %5202 = vrot.lane.b32.xlu0 %v5018, 110
      %v5203 = vpop.permute.xlu0 %5202
      %5204 = vrot.lane.b32.xlu0 %v5019, 110
      %v5205 = vpop.permute.xlu0 %5204
      %5206 = vrot.lane.b32.xlu0 %v5020, 110
      %v5207 = vpop.permute.xlu0 %5206
      %5208 = vrot.lane.b32.xlu0 %v5021, 110
      %v5209 = vpop.permute.xlu0 %5208
      %5210 = vrot.lane.b32.xlu0 %v5022, 110
      %v5211 = vpop.permute.xlu0 %5210
      %v5212 = vsel %vm538, %v5199, %v5201
      %v5213 = vsel %vm538, %v5201, %v5203
      %v5214 = vsel %vm538, %v5203, %v5205
      %v5215 = vsel %vm538, %v5205, %v5207
      %v5216 = vsel %vm538, %v5207, %v5209
      %v5217 = vsel %vm538, %v5209, %v5211
      %5219 = vrot.lane.b32.xlu0 %v5016, 78
      %v5220 = vpop.permute.xlu0 %5219
      %v5222 = vsel %vm549, %v5211, %v5220
      %5223 = vrot.lane.b32.xlu0 %v5016, 109
      %v5224 = vpop.permute.xlu0 %5223
      %5225 = vrot.lane.b32.xlu0 %v5017, 109
      %v5226 = vpop.permute.xlu0 %5225
      %5227 = vrot.lane.b32.xlu0 %v5018, 109
      %v5228 = vpop.permute.xlu0 %5227
      %5229 = vrot.lane.b32.xlu0 %v5019, 109
      %v5230 = vpop.permute.xlu0 %5229
      %5231 = vrot.lane.b32.xlu0 %v5020, 109
      %v5232 = vpop.permute.xlu0 %5231
      %5233 = vrot.lane.b32.xlu0 %v5021, 109
      %v5234 = vpop.permute.xlu0 %5233
      %5235 = vrot.lane.b32.xlu0 %v5022, 109
      %v5236 = vpop.permute.xlu0 %5235
      %v5237 = vsel %vm565, %v5224, %v5226
      %v5238 = vsel %vm565, %v5226, %v5228
      %v5239 = vsel %vm565, %v5228, %v5230
      %v5240 = vsel %vm565, %v5230, %v5232
      %v5241 = vsel %vm565, %v5232, %v5234
      %v5242 = vsel %vm565, %v5234, %v5236
      %5250 = vrot.lane.b32.xlu0 %v5016, 77
      %v5251 = vpop.permute.xlu0 %5250
      %v5253 = vsel %vm582, %v5236, %v5251
      %v5255 = vrot.slane %v5085, 4
      %v5256 = vrot.slane %v5078, 4
      %v5257 = vrot.slane %v5079, 4
      %v5258 = vrot.slane %v5080, 4
      %v5259 = vrot.slane %v5081, 4
      %v5260 = vrot.slane %v5082, 4
      %v5261 = vrot.slane %v5083, 4
      %v5270 = vrot.slane %v5141, 4
      %v5271 = vrot.slane %v5134, 4
      %v5272 = vrot.slane %v5135, 4
      %v5273 = vrot.slane %v5136, 4
      %v5274 = vrot.slane %v5137, 4
      %v5275 = vrot.slane %v5138, 4
      %v5276 = vrot.slane %v5139, 4
      %v5285 = vrot.slane %v5156, 4
      %v5286 = vrot.slane %v5157, 4
      %v5287 = vrot.slane %v5158, 4
      %v5288 = vrot.slane %v5159, 4
      %v5289 = vrot.slane %v5160, 4
      %v5290 = vrot.slane %v5161, 4
      %v5291 = vrot.slane %v5166, 4
      %v5300 = vrot.slane %v5212, 4
      %v5301 = vrot.slane %v5213, 4
      %v5302 = vrot.slane %v5214, 4
      %v5303 = vrot.slane %v5215, 4
      %v5304 = vrot.slane %v5216, 4
      %v5305 = vrot.slane %v5217, 4
      %v5306 = vrot.slane %v5222, 4
      %v5314 = vsel %vm705, %v5060, %v5255
      %v5315 = vsel %vm705, %v5047, %v5256
      %v5316 = vsel %vm705, %v5048, %v5257
      %v5317 = vsel %vm705, %v5049, %v5258
      %v5318 = vsel %vm705, %v5050, %v5259
      %v5319 = vsel %vm705, %v5051, %v5260
      %v5320 = vsel %vm705, %v5052, %v5261
      %v5321 = vsel %vm705, %v5116, %v5270
      %v5322 = vsel %vm705, %v5103, %v5271
      %v5323 = vsel %vm705, %v5104, %v5272
      %v5324 = vsel %vm705, %v5105, %v5273
      %v5325 = vsel %vm705, %v5106, %v5274
      %v5326 = vsel %vm705, %v5107, %v5275
      %v5327 = vsel %vm705, %v5108, %v5276
      %v5328 = vsel %vm705, %v5016, %v5285
      %v5329 = vsel %vm705, %v5017, %v5286
      %v5330 = vsel %vm705, %v5018, %v5287
      %v5331 = vsel %vm705, %v5019, %v5288
      %v5332 = vsel %vm705, %v5020, %v5289
      %v5333 = vsel %vm705, %v5021, %v5290
      %v5334 = vsel %vm705, %v5022, %v5291
      %v5335 = vsel %vm705, %v5181, %v5300
      %v5336 = vsel %vm705, %v5182, %v5301
      %v5337 = vsel %vm705, %v5183, %v5302
      %v5338 = vsel %vm705, %v5184, %v5303
      %v5339 = vsel %vm705, %v5185, %v5304
      %v5340 = vsel %vm705, %v5186, %v5305
      %v5341 = vsel %vm705, %v5197, %v5306
      %v5342 = vsel %vm705, %v5237, 0.0
      %v5343 = vsel %vm705, %v5238, 0.0
      %v5344 = vsel %vm705, %v5239, 0.0
      %v5345 = vsel %vm705, %v5240, 0.0
      %v5346 = vsel %vm705, %v5241, 0.0
      %v5347 = vsel %vm705, %v5242, 0.0
      %v5348 = vsel %vm705, %v5253, 0.0
      %v5349 = vpack.c.bf16 %v5321, %v5314
      %v5350 = vpack.c.bf16 %v5322, %v5315
      %v5351 = vpack.c.bf16 %v5323, %v5316
      %v5352 = vpack.c.bf16 %v5324, %v5317
      %v5353 = vpack.c.bf16 %v5325, %v5318
      %v5354 = vpack.c.bf16 %v5326, %v5319
      %v5355 = vpack.c.bf16 %v5327, %v5320
      %v5356 = vpack.c.bf16 %v5335, %v5328
      %v5357 = vpack.c.bf16 %v5336, %v5329
      %v5358 = vpack.c.bf16 %v5337, %v5330
      %v5359 = vpack.c.bf16 %v5338, %v5331
      %v5360 = vpack.c.bf16 %v5339, %v5332
      %v5361 = vpack.c.bf16 %v5340, %v5333
      %v5362 = vpack.c.bf16 %v5341, %v5334
      %v5363 = vpack.c.bf16 %v5342, %v5342
      %v5364 = vpack.c.bf16 %v5343, %v5343
      %v5365 = vpack.c.bf16 %v5344, %v5344
      %v5366 = vpack.c.bf16 %v5345, %v5345
      %v5367 = vpack.c.bf16 %v5346, %v5346
      %v5368 = vpack.c.bf16 %v5347, %v5347
      %v5369 = vpack.c.bf16 %v5348, %v5348
      %v5370 = vld [vmem:[%s8] sm:$0xf]
      %5371 = vset.pattern.permute.xlu0 5
      %5372 = vperm.xlu0 %5371, %v752
      %v5373 = vpop.permute.xlu0 %5372
      %v5376 = vsel %vm4758, %v5370, 0
      %v5379 = vsel %vm705, %v5363, 0
      %v5382 = vsel %vm705, %v5364, 0
      %v5385 = vsel %vm705, %v5365, 0
      %v5388 = vsel %vm705, %v5366, 0
      %v5391 = vsel %vm705, %v5367, 0
      %v5394 = vsel %vm705, %v5368, 0
      %v5397 = vsel %vm705, %v5369, 0
      %5399 = vmatprep.subr.bf16.mxu0 0
      %5400 = vmatpush1.bf16.msra.mxu0 0
      %5401 = vmatprep.subr.bf16.mxu0 0
      %5402 = vmatpush1.bf16.msra.mxu0 0
      %5403 = vmatprep.subr.bf16.mxu0 0
      %5404 = vmatpush1.bf16.msra.mxu0 0
      %5405 = vmatprep.subr.bf16.mxu0 0
      %5406 = vmatpush1.bf16.msra.mxu0 0
      %5407 = vmatprep.subr.bf16.mxu0 0
      %5408 = vmatpush1.bf16.msra.mxu0 0
      %5409 = vmatprep.subr.bf16.mxu0 %v5382
      %5410 = vmatpush1.bf16.msra.mxu0 %v5379
      %5411 = vmatprep.subr.bf16.mxu0 %v5357
      %5412 = vmatpush1.bf16.msra.mxu0 %v5356
      %5413 = vmatprep.subr.bf16.mxu0 %v5350
      %5414 = vmatpush1.bf16.msra.mxu0 %v5349
      %5415 = vmatprep.subr.bf16.mxu0 0
      %5416 = vmatpush2.bf16.msra.mxu0 0
      %5417 = vmatprep.subr.bf16.mxu0 0
      %5418 = vmatpush2.bf16.msra.mxu0 0
      %5419 = vmatprep.subr.bf16.mxu0 0
      %5420 = vmatpush2.bf16.msra.mxu0 0
      %5421 = vmatprep.subr.bf16.mxu0 0
      %5422 = vmatpush2.bf16.msra.mxu0 0
      %5423 = vmatprep.subr.bf16.mxu0 0
      %5424 = vmatpush2.bf16.msra.mxu0 0
      %5425 = vmatprep.subr.bf16.mxu0 0
      %5426 = vmatpush2.bf16.msra.mxu0 0
      %5427 = vmatprep.subr.bf16.mxu0 0
      %5428 = vmatpush2.bf16.msra.mxu0 0
      %5429 = vmatprep.subr.bf16.mxu0 0
      %5430 = vmatpush2.bf16.msra.mxu0 0
      %5431 = vmatprep.mubr.bf16.mxu0 0
      %5432 = vmatmul.mubr.bf16.gmra.mxu0 %v5376
      %v5433 = vpop.f32.mrf.mxu0
      %v5434 = vadd.f32 %v5373, %v5433
      %v5435 = vpop.f32.mrf.mxu0
      %v5436 = vadd.f32 %v5373, %v5435
      %v5437 = vpop.f32.mrf.mxu0
      %v5438 = vpop.f32.mrf.mxu0
      %5439 = vdwg.mxu0
      %5440 = vmatprep.subr.bf16.mxu0 0
      %5441 = vmatpush1.bf16.msra.mxu0 0
      %5442 = vmatprep.subr.bf16.mxu0 0
      %5443 = vmatpush1.bf16.msra.mxu0 0
      %5444 = vmatprep.subr.bf16.mxu0 0
      %5445 = vmatpush1.bf16.msra.mxu0 0
      %5446 = vmatprep.subr.bf16.mxu0 0
      %5447 = vmatpush1.bf16.msra.mxu0 0
      %5448 = vmatprep.subr.bf16.mxu0 0
      %5449 = vmatpush1.bf16.msra.mxu0 0
      %5450 = vmatprep.subr.bf16.mxu0 %v5388
      %5451 = vmatpush1.bf16.msra.mxu0 %v5385
      %5452 = vmatprep.subr.bf16.mxu0 %v5359
      %5453 = vmatpush1.bf16.msra.mxu0 %v5358
      %5454 = vmatprep.subr.bf16.mxu0 %v5352
      %5455 = vmatpush1.bf16.msra.mxu0 %v5351
      %5456 = vmatprep.subr.bf16.mxu0 0
      %5457 = vmatpush2.bf16.msra.mxu0 0
      %5458 = vmatprep.subr.bf16.mxu0 0
      %5459 = vmatpush2.bf16.msra.mxu0 0
      %5460 = vmatprep.subr.bf16.mxu0 0
      %5461 = vmatpush2.bf16.msra.mxu0 0
      %5462 = vmatprep.subr.bf16.mxu0 0
      %5463 = vmatpush2.bf16.msra.mxu0 0
      %5464 = vmatprep.subr.bf16.mxu0 0
      %5465 = vmatpush2.bf16.msra.mxu0 0
      %5466 = vmatprep.subr.bf16.mxu0 0
      %5467 = vmatpush2.bf16.msra.mxu0 0
      %5468 = vmatprep.subr.bf16.mxu0 0
      %5469 = vmatpush2.bf16.msra.mxu0 0
      %5470 = vmatprep.subr.bf16.mxu0 0
      %5471 = vmatpush2.bf16.msra.mxu0 0
      %5472 = vmatprep.mubr.bf16.mxu0 0
      %5473 = vmatmul.mubr.bf16.gmra.mxu0 %v5376
      %v5474 = vpop.f32.mrf.mxu0
      %v5475 = vadd.f32 %v5373, %v5474
      %v5476 = vpop.f32.mrf.mxu0
      %v5477 = vadd.f32 %v5373, %v5476
      %v5478 = vpop.f32.mrf.mxu0
      %v5479 = vpop.f32.mrf.mxu0
      %5480 = vdwg.mxu0
      %5481 = vmatprep.subr.bf16.mxu0 0
      %5482 = vmatpush1.bf16.msra.mxu0 0
      %5483 = vmatprep.subr.bf16.mxu0 0
      %5484 = vmatpush1.bf16.msra.mxu0 0
      %5485 = vmatprep.subr.bf16.mxu0 0
      %5486 = vmatpush1.bf16.msra.mxu0 0
      %5487 = vmatprep.subr.bf16.mxu0 0
      %5488 = vmatpush1.bf16.msra.mxu0 0
      %5489 = vmatprep.subr.bf16.mxu0 0
      %5490 = vmatpush1.bf16.msra.mxu0 0
      %5491 = vmatprep.subr.bf16.mxu0 %v5394
      %5492 = vmatpush1.bf16.msra.mxu0 %v5391
      %5493 = vmatprep.subr.bf16.mxu0 %v5361
      %5494 = vmatpush1.bf16.msra.mxu0 %v5360
      %5495 = vmatprep.subr.bf16.mxu0 %v5354
      %5496 = vmatpush1.bf16.msra.mxu0 %v5353
      %5497 = vmatprep.subr.bf16.mxu0 0
      %5498 = vmatpush2.bf16.msra.mxu0 0
      %5499 = vmatprep.subr.bf16.mxu0 0
      %5500 = vmatpush2.bf16.msra.mxu0 0
      %5501 = vmatprep.subr.bf16.mxu0 0
      %5502 = vmatpush2.bf16.msra.mxu0 0
      %5503 = vmatprep.subr.bf16.mxu0 0
      %5504 = vmatpush2.bf16.msra.mxu0 0
      %5505 = vmatprep.subr.bf16.mxu0 0
      %5506 = vmatpush2.bf16.msra.mxu0 0
      %5507 = vmatprep.subr.bf16.mxu0 0
      %5508 = vmatpush2.bf16.msra.mxu0 0
      %5509 = vmatprep.subr.bf16.mxu0 0
      %5510 = vmatpush2.bf16.msra.mxu0 0
      %5511 = vmatprep.subr.bf16.mxu0 0
      %5512 = vmatpush2.bf16.msra.mxu0 0
      %5513 = vmatprep.mubr.bf16.mxu0 0
      %5514 = vmatmul.mubr.bf16.gmra.mxu0 %v5376
      %v5515 = vpop.f32.mrf.mxu0
      %v5516 = vadd.f32 %v5373, %v5515
      %v5517 = vpop.f32.mrf.mxu0
      %v5518 = vadd.f32 %v5373, %v5517
      %v5519 = vpop.f32.mrf.mxu0
      %v5520 = vpop.f32.mrf.mxu0
      %5521 = vdwg.mxu0
      %5522 = vmatprep.subr.bf16.mxu0 0
      %5523 = vmatpush1.bf16.msra.mxu0 0
      %5524 = vmatprep.subr.bf16.mxu0 0
      %5525 = vmatpush1.bf16.msra.mxu0 0
      %5526 = vmatprep.subr.bf16.mxu0 0
      %5527 = vmatpush1.bf16.msra.mxu0 0
      %5528 = vmatprep.subr.bf16.mxu0 0
      %5529 = vmatpush1.bf16.msra.mxu0 0
      %5530 = vmatprep.subr.bf16.mxu0 0
      %5531 = vmatpush1.bf16.msra.mxu0 0
      %5532 = vmatprep.subr.bf16.mxu0 0
      %5533 = vmatpush1.bf16.msra.mxu0 %v5397
      %5534 = vmatprep.subr.bf16.mxu0 0
      %5535 = vmatpush1.bf16.msra.mxu0 %v5362
      %5536 = vmatprep.subr.bf16.mxu0 0
      %5537 = vmatpush1.bf16.msra.mxu0 %v5355
      %5538 = vmatprep.subr.bf16.mxu0 0
      %5539 = vmatpush2.bf16.msra.mxu0 0
      %5540 = vmatprep.subr.bf16.mxu0 0
      %5541 = vmatpush2.bf16.msra.mxu0 0
      %5542 = vmatprep.subr.bf16.mxu0 0
      %5543 = vmatpush2.bf16.msra.mxu0 0
      %5544 = vmatprep.subr.bf16.mxu0 0
      %5545 = vmatpush2.bf16.msra.mxu0 0
      %5546 = vmatprep.subr.bf16.mxu0 0
      %5547 = vmatpush2.bf16.msra.mxu0 0
      %5548 = vmatprep.subr.bf16.mxu0 0
      %5549 = vmatpush2.bf16.msra.mxu0 0
      %5550 = vmatprep.subr.bf16.mxu0 0
      %5551 = vmatpush2.bf16.msra.mxu0 0
      %5552 = vmatprep.subr.bf16.mxu0 0
      %5553 = vmatpush2.bf16.msra.mxu0 0
      %5554 = vmatprep.mubr.bf16.mxu0 0
      %5555 = vmatmul.mubr.bf16.gmra.mxu0 %v5376
      %v5556 = vpop.f32.mrf.mxu0
      %v5557 = vadd.f32 %v5373, %v5556
      %v5558 = vpop.f32.mrf.mxu0
      %v5559 = vpop.f32.mrf.mxu0
      %v5560 = vpop.f32.mrf.mxu0
      %5561 = vdwg.mxu0
      %v5562 = vand.u32 2147483647, %v5434
      %v5563 = vand.u32 2147483647, %v5436
      %v5564 = vand.u32 2147483647, %v5475
      %v5565 = vand.u32 2147483647, %v5477
      %v5566 = vand.u32 2147483647, %v5516
      %v5567 = vand.u32 2147483647, %v5518
      %v5568 = vand.u32 2147483647, %v5557
      %v5569 = vsub.f32 0.0, %v5562
      %v5570 = vsub.f32 0.0, %v5563
      %v5571 = vsub.f32 0.0, %v5564
      %v5572 = vsub.f32 0.0, %v5565
      %v5573 = vsub.f32 0.0, %v5566
      %v5574 = vsub.f32 0.0, %v5567
      %v5575 = vsub.f32 0.0, %v5568
      %v5576 = vmul.f32 %v5569, 1.442695
      %v5577 = vpow.pop %v5576
      %v5578 = vmul.f32 %v5570, 1.442695
      %v5579 = vpow.pop %v5578
      %v5580 = vmul.f32 %v5571, 1.442695
      %v5581 = vpow.pop %v5580
      %v5582 = vmul.f32 %v5572, 1.442695
      %v5583 = vpow.pop %v5582
      %v5584 = vmul.f32 %v5573, 1.442695
      %v5585 = vpow.pop %v5584
      %v5586 = vmul.f32 %v5574, 1.442695
      %v5587 = vpow.pop %v5586
      %v5588 = vmul.f32 %v5575, 1.442695
      %v5589 = vpow.pop %v5588
      %v5590 = vadd.f32 %v5577, 1.0
      %v5591 = vadd.f32 %v5579, 1.0
      %v5592 = vadd.f32 %v5581, 1.0
      %v5593 = vadd.f32 %v5583, 1.0
      %v5594 = vadd.f32 %v5585, 1.0
      %v5595 = vadd.f32 %v5587, 1.0
      %v5596 = vadd.f32 %v5589, 1.0
      %v5597 = vrcp.pop %v5590
      %v5598 = vmul.f32 1.0, %v5597
      %v5599 = vrcp.pop %v5591
      %v5600 = vmul.f32 1.0, %v5599
      %v5601 = vrcp.pop %v5592
      %v5602 = vmul.f32 1.0, %v5601
      %v5603 = vrcp.pop %v5593
      %v5604 = vmul.f32 1.0, %v5603
      %v5605 = vrcp.pop %v5594
      %v5606 = vmul.f32 1.0, %v5605
      %v5607 = vrcp.pop %v5595
      %v5608 = vmul.f32 1.0, %v5607
      %v5609 = vrcp.pop %v5596
      %v5610 = vmul.f32 1.0, %v5609
      %vm5611 = vcmp.ge.f32.partialorder %v5434, 0.0
      %vm5612 = vcmp.ge.f32.partialorder %v5436, 0.0
      %vm5613 = vcmp.ge.f32.partialorder %v5475, 0.0
      %vm5614 = vcmp.ge.f32.partialorder %v5477, 0.0
      %vm5615 = vcmp.ge.f32.partialorder %v5516, 0.0
      %vm5616 = vcmp.ge.f32.partialorder %v5518, 0.0
      %vm5617 = vcmp.ge.f32.partialorder %v5557, 0.0
      %v5618 = vsub.f32 1.0, %v5598
      %v5619 = vsub.f32 1.0, %v5600
      %v5620 = vsub.f32 1.0, %v5602
      %v5621 = vsub.f32 1.0, %v5604
      %v5622 = vsub.f32 1.0, %v5606
      %v5623 = vsub.f32 1.0, %v5608
      %v5624 = vsub.f32 1.0, %v5610
      %v5625 = vsel %vm5611, %v5598, %v5618
      %v5626 = vsel %vm5612, %v5600, %v5619
      %v5627 = vsel %vm5613, %v5602, %v5620
      %v5628 = vsel %vm5614, %v5604, %v5621
      %v5629 = vsel %vm5615, %v5606, %v5622
      %v5630 = vsel %vm5616, %v5608, %v5623
      %v5631 = vsel %vm5617, %v5610, %v5624
      %v5639 = vcombine.low %v5625, %v5626
      %v5640 = vcombine.low %v5627, %v5628
      %v5641 = vcombine.low %v5629, %v5630
      %v5643 = vunpack.c.l.s4 1966171168
      %v5644 = vunpack.c.0.s8 %v5643
      %v5645 = vlaneseq
      %v5646 = vshrl.u32 %v5645, 7
      %v5647 = vsub.s32 %v5644, %v5646
      %v5648 = vrot.slane %v5639, %v5647
      %v5650 = vunpack.c.l.s4 1966171168
      %v5651 = vunpack.c.0.s8 %v5650
      %v5652 = vlaneseq
      %v5653 = vshrl.u32 %v5652, 7
      %v5654 = vsub.s32 %v5651, %v5653
      %v5655 = vrot.slane %v5640, %v5654
      %v5657 = vunpack.c.l.s4 1966171168
      %v5658 = vunpack.c.0.s8 %v5657
      %v5659 = vlaneseq
      %v5660 = vshrl.u32 %v5659, 7
      %v5661 = vsub.s32 %v5658, %v5660
      %v5662 = vrot.slane %v5641, %v5661
      %v5664 = vunpack.c.l.s4 1966171168
      %v5665 = vunpack.c.0.s8 %v5664
      %v5666 = vlaneseq
      %v5667 = vshrl.u32 %v5666, 7
      %v5668 = vsub.s32 %v5665, %v5667
      %v5669 = vrot.slane %v5631, %v5668
      %v5670 = vcombine.low %v5648, %v5655
      %v5671 = vcombine.low %v5662, %v5669
      %v5673 = vunpack.c.l.s4 1966171168
      %v5674 = vunpack.c.0.s8 %v5673
      %v5675 = vlaneseq
      %v5676 = vshrl.u32 %v5675, 7
      %v5677 = vsub.s32 %v5674, %v5676
      %v5678 = vrot.slane %v5670, %v5677
      %v5680 = vunpack.c.l.s4 1966171168
      %v5681 = vunpack.c.0.s8 %v5680
      %v5682 = vlaneseq
      %v5683 = vshrl.u32 %v5682, 7
      %v5684 = vsub.s32 %v5681, %v5683
      %v5685 = vrot.slane %v5671, %v5684
      %v5686 = vcombine.low %v5678, %v5685
      %v5688 = vlaneseq
      %vm5689 = vcmp.ge.s32.totalorder %v5688, 0
      %vm5690 = vcmp.lt.s32.totalorder %v5688, 864
      %vm5691 = vmand %vm5689, %vm5690
      %5692 = vst.msk [vmem:[%s327] sm:$0x7f] %vm5691, %v5686
      %p5693 = scmp.lt.s32.totalorder %s20, 1
      %s5694 = scalar_select %p5693, %s20, 1
      %s5695 = smul.addr %s5694, 7
      %s5696 = scalar_lea.vmem %s9, %s5695
      // Predicated region
      $region57: #{cae_m_forward.1} parent=55 // pred_check
        %p5697 = pneg %p232
      $region58: #{cae_m_forward.1} parent=55 // pred_check_branch
        %5699 = sbr.rel (%p5697) target = $region60
      $region59: #{cae_m_forward.1} parent=55 // pred_region
        _
      $region60: #{cae_m_forward.1} parent=55 // pred_fallthru
        _
    $region56: #{cae_m_forward.1} parent=5 // pred_fallthru
      _
    %p5700 = scmp.le.s32.totalorder 2, %s15
    // Predicated region
    $region61: #{cae_m_forward.1} parent=5 // pred_check
      %p5701 = pneg %p5700
    $region62: #{cae_m_forward.1} parent=5 // pred_check_branch
      %5703 = sbr.rel (%p5701) target = $region64
    $region63: #{cae_m_forward.1} parent=5 // pred_region
      %s5704 = ssub.s32 %s15, 2
      // Predicated region
      $region65: #{cae_m_forward.1} parent=63 // pred_check
        %p5705 = pneg %p238
      $region66: #{cae_m_forward.1} parent=63 // pred_check_branch
        %5707 = sbr.rel (%p5705) target = $region68
      $region67: #{cae_m_forward.1} parent=63 // pred_region
        %p5708 = scmp.lt.s32.totalorder %s21, 1
        %s5709 = scalar_select %p5708, %s21, 1
        %s5710 = smul.addr %s5709, 7
        %s5711 = scalar_lea.vmem %s9, %s5710
      $region68: #{cae_m_forward.1} parent=63 // pred_fallthru
        _
    $region64: #{cae_m_forward.1} parent=5 // pred_fallthru
      _
  $region6: #{cae_m_forward.1} parent=0 // loop_footer
    %s19 = sadd.s32 1, %s15
  $region7: #{cae_m_forward.1} parent=0 // loop_footer_branch
    %14 = sbr.rel target = $region3
  $region8: #{cae_m_forward.1} parent=0 // loop_exit
    _

</llo_original>
